<compile_context>
chip_gen: v7x
topology: tpu7x:2x2x1
jax: 0.10.0
libtpu: 0.0.40
codegen_flags: <defaults>
</compile_context>

<pallas_src>
import numpy as np
import jax
import jax.numpy as jnp
from jax.experimental import pallas as pl
from jax.experimental.pallas import tpu as pltpu  # noqa: F401  (TPU backend)

# ---------------- config (small shapes consistent with the module) ----------
B = 2            # batch
W = 4            # window_size
OBS_DIM = 8      # lowdim obs feature dim (obs key "state": [B, W, OBS_DIM])
D = 32           # token_embedding_size
NH = 2           # attention heads
DH = D // NH
MLP = 64         # transformer mlp dim
L = 2            # transformer layers
A = 3            # action_dim
P = 1            # pred_horizon
VH = 32          # value head hidden
BW = B * W       # obs rows == readout rows (8)
TT = 2 * BW      # folded token rows (16)
HOUT = A + 5     # packed output: [action(A), logp, q1_s, q2_s, q1_p, q2_p]

LOG_STD_MIN, LOG_STD_MAX = -20.0, 2.0
LN_EPS = 1e-5


# ---------------- parameter-slab layout (static, 8-aligned row offsets) ------
def _layout(entries, align=8):
    offs, r = {}, 0
    for name, rows in entries:
        r = -(-r // align) * align
        offs[name] = r
        r += rows
    return offs, -(-r // align) * align


O32, S32_ROWS = _layout([
    ('proj', OBS_DIM), ('emb', TT), ('mask', TT), ('ln', 2 * (2 * L + 1)),
    ('wo', L * D), ('bo', L), ('w2', L * MLP), ('b2', L),
    ('pi_w', D), ('pi_b', 1), ('bounds', 2), ('vw3', 2 * VH), ('vb3', 1),
    ('sel', B),
])
O64, S64_ROWS = _layout([
    ('w1', L * D), ('b1', L), ('vw1e', D), ('vw1a', A), ('vb1', 1),
    ('vw2', 2 * VH), ('vb2', 1),
])
O96, S96_ROWS = _layout([('wqkv', L * D), ('bqkv', L)])


# ---------------- the single fused kernel ------------------------------------
def fused_kernel(obs_ref, an_ref, hsel_ref, s32_ref, s64_ref, s96_ref, out_ref):
    scale = 1.0 / np.sqrt(DH)

    def ln_apply(x, idx):
        r = O32['ln'] + 2 * idx
        g = s32_ref[r:r + 1, :]
        sh = s32_ref[r + 1:r + 2, :]
        mu = jnp.mean(x, axis=-1, keepdims=True)
        xc = x - mu
        var = jnp.mean(xc * xc, axis=-1, keepdims=True)
        return xc * jax.lax.rsqrt(var + LN_EPS) * g + sh

    # ---- tokenize: obs tokens then readout tokens (readout half starts at
    # sublane row BW = 8, a tile boundary) ----
    proj = s32_ref[O32['proj']:O32['proj'] + OBS_DIM, :]
    emb_o = s32_ref[O32['emb']:O32['emb'] + BW, :]          # pos-embed (+ proj bias)
    emb_r = s32_ref[O32['emb'] + BW:O32['emb'] + TT, :]     # readout embeddings
    x_obs = jnp.dot(obs_ref[...], proj, preferred_element_type=jnp.float32) + emb_o
    x = jnp.concatenate([x_obs, emb_r], axis=0)             # (TT, D)

    mask = s32_ref[O32['mask']:O32['mask'] + TT, 0:TT]      # block-diag per batch, causal
    hsel = hsel_ref[...]                                    # (NH, 1, D) head-lane selector

    for l in range(L):
        wqkv = s96_ref[O96['wqkv'] + D * l:O96['wqkv'] + D * (l + 1), :]
        bqkv = s96_ref[O96['bqkv'] + l:O96['bqkv'] + l + 1, :]
        wo = s32_ref[O32['wo'] + D * l:O32['wo'] + D * (l + 1), :]
        bo = s32_ref[O32['bo'] + l:O32['bo'] + l + 1, :]
        w1 = s64_ref[O64['w1'] + D * l:O64['w1'] + D * (l + 1), :]
        b1 = s64_ref[O64['b1'] + l:O64['b1'] + l + 1, :]
        w2 = s32_ref[O32['w2'] + MLP * l:O32['w2'] + MLP * (l + 1), :]
        b2 = s32_ref[O32['b2'] + l:O32['b2'] + l + 1, :]

        ln1 = ln_apply(x, 2 * l)
        # fused QKV projection: one (TT,D)x(D,3D) matmul
        qkv = jnp.dot(ln1, wqkv, preferred_element_type=jnp.float32) + bqkv
        q = qkv[:, 0 * D:1 * D]
        k = qkv[:, 1 * D:2 * D]
        v = qkv[:, 2 * D:3 * D]

        # multi-head attention without per-head lane slicing: heads live on a
        # leading batch axis; k/v masked per head so the head-sum is the concat.
        km = k[None, :, :] * hsel
        vm = v[None, :, :] * hsel
        qb = jnp.broadcast_to(q[None, :, :], (NH, TT, D))
        s = jnp.einsum('htd,hsd->hts', qb, km,
                       preferred_element_type=jnp.float32) * scale
        s = s + mask[None, :, :]
        s = s - jnp.max(s, axis=-1, keepdims=True)
        p = jnp.exp(s)
        p = p * pl.reciprocal(jnp.sum(p, axis=-1, keepdims=True), approx=True)
        ao = jnp.sum(jnp.einsum('hts,hsd->htd', p, vm,
                                preferred_element_type=jnp.float32), axis=0)
        x = x + jnp.dot(ao, wo, preferred_element_type=jnp.float32) + bo

        ln2 = ln_apply(x, 2 * l + 1)
        # TODO(synk): PyTorch nn.GELU defaults to exact erf; tanh approx used here.
        hmid = jax.nn.gelu(jnp.dot(ln2, w1, preferred_element_type=jnp.float32) + b1)
        x = x + jnp.dot(hmid, w2, preferred_element_type=jnp.float32) + b2

    e = ln_apply(x[BW:, :], 2 * L)                           # (BW, D) readout rows

    # ---- squashed-Gaussian action head (mu / log_std in one matmul) --------
    pi_w = s32_ref[O32['pi_w']:O32['pi_w'] + D, :]           # lanes [0, 2A) used
    pi_b = s32_ref[O32['pi_b']:O32['pi_b'] + 1, :]
    bnd = s32_ref[O32['bounds']:O32['bounds'] + 2, :]
    ms = jnp.dot(e, pi_w, preferred_element_type=jnp.float32) + pi_b
    mu = ms[:, 0:A]
    log_std = jnp.clip(ms[:, A:2 * A], LOG_STD_MIN, LOG_STD_MAX)
    std = jnp.exp(log_std)
    act_s = an_ref[0:BW, :]                                  # external (sample) action
    noise = an_ref[BW:2 * BW, :]                             # N(0,1) rsample noise
    pi_pre = mu + std * noise
    logp = jnp.sum(-0.5 * noise * noise - log_std - 0.5 * np.log(2.0 * np.pi),
                   axis=-1, keepdims=True)
    corr = 2.0 * (np.log(2.0) - pi_pre - jax.nn.softplus(-2.0 * pi_pre))
    logp = logp - jnp.sum(corr, axis=-1, keepdims=True)
    # TODO(synk): tanh-rescale log-det omitted; exact only for (-1, 1) bounds.
    t = jnp.tanh(pi_pre)
    amin = bnd[0:1, 0:A]
    amax = bnd[1:2, 0:A]
    act_pi = amin + 0.5 * (t + 1.0) * (amax - amin)          # (BW, A)

    # ---- twin Q heads: both action sets stacked along rows -----------------
    vw1e = s64_ref[O64['vw1e']:O64['vw1e'] + D, :]
    vw1a = s64_ref[O64['vw1a']:O64['vw1a'] + A, :]
    vb1 = s64_ref[O64['vb1']:O64['vb1'] + 1, :]
    vw2 = s64_ref[O64['vw2']:O64['vw2'] + 2 * VH, :]
    vb2 = s64_ref[O64['vb2']:O64['vb2'] + 1, :]
    vw3 = s32_ref[O32['vw3']:O32['vw3'] + 2 * VH, :]         # lanes [0, 2) used
    vb3 = s32_ref[O32['vb3']:O32['vb3'] + 1, :]

    h1e = jnp.dot(e, vw1e, preferred_element_type=jnp.float32) + vb1     # (BW, 2VH)
    a_stack = jnp.concatenate([act_s, act_pi], axis=0)                   # (2BW, A)
    h1 = jnp.maximum(
        jnp.concatenate([h1e, h1e], axis=0)
        + jnp.dot(a_stack, vw1a, preferred_element_type=jnp.float32), 0.0)
    h2 = jnp.maximum(jnp.dot(h1, vw2, preferred_element_type=jnp.float32) + vb2, 0.0)
    q = jnp.dot(h2, vw3, preferred_element_type=jnp.float32) + vb3       # (2BW, D)

    # ---- gather last-window-step row per batch, single packed (B, 8) store --
    rows = jnp.concatenate(
        [act_pi, logp, q[0:BW, 0:2], q[BW:2 * BW, 0:2]], axis=-1)        # (BW, HOUT)
    sel = s32_ref[O32['sel']:O32['sel'] + B, 0:BW]                       # (B, BW)
    out_ref[...] = jnp.dot(sel, rows, preferred_element_type=jnp.float32)


# ---------------- pallas_call wrapper -----------------------------------------
def _full_spec(shape):
    nd = len(shape)
    return pl.BlockSpec(shape, lambda *_, nd=nd: (0,) * nd)


def run_fused(obs_flat, act_noise, p):
    ins = [obs_flat, act_noise, p['hsel'], p['s32'], p['s64'], p['s96']]
    return pl.pallas_call(
        fused_kernel,
        out_shape=jax.ShapeDtypeStruct((B, HOUT), jnp.float32),
        grid=(1,),
        in_specs=[_full_spec(a.shape) for a in ins],
        out_specs=_full_spec((B, HOUT)),
    )(*ins)


# ---------------- deterministic parameter init (packed slabs) -----------------
def _place(slab, off, arr):
    arr = np.asarray(arr, np.float32)
    slab[off:off + arr.shape[0], :arr.shape[1]] = arr


def init_params(key):
    ks = iter(jax.random.split(key, 32))

    def w(shape, scale=0.05):
        return np.asarray(scale * jax.random.normal(next(ks), shape), np.float32)

    s32 = np.zeros((S32_ROWS, D), np.float32)
    s64 = np.zeros((S64_ROWS, MLP), np.float32)
    s96 = np.zeros((S96_ROWS, 3 * D), np.float32)

    # obs tokenizer (lowdim -> token) + positional / readout embeddings
    _place(s32, O32['proj'], w((OBS_DIM, D)))
    pb = np.zeros((1, D), np.float32)                # tokenizer bias, folded into emb
    pos = w((W, D))
    re = w((W, D))
    emb = np.zeros((TT, D), np.float32)
    for b in range(B):
        emb[b * W:(b + 1) * W] = pos + pb            # obs token rows
        emb[BW + b * W:BW + (b + 1) * W] = re        # readout token rows
    _place(s32, O32['emb'], emb)

    # block-diagonal (per batch) block-causal attention mask
    def tok(i):
        ro = i >= BW
        j = i - BW if ro else i
        return j // W, j % W, ro

    m = np.full((TT, TT), -1e9, np.float32)
    for i in range(TT):
        bi, ti, ri = tok(i)
        for j in range(TT):
            bj, tj, rj = tok(j)
            if bi == bj and tj <= ti and ((not rj) or ri):
                m[i, j] = 0.0
    _place(s32, O32['mask'], m)

    # LN params: even rows = scale (1), odd rows = shift (0)
    ln = np.zeros((2 * (2 * L + 1), D), np.float32)
    ln[0::2, :] = 1.0
    _place(s32, O32['ln'], ln)

    # transformer blocks (QKV fused, stacked over layers); biases stay zero
    wq, wk, wv = w((L, D, D)), w((L, D, D)), w((L, D, D))
    _place(s96, O96['wqkv'], np.concatenate([wq, wk, wv], axis=-1).reshape(L * D, 3 * D))
    _place(s32, O32['wo'], w((L * D, D)))
    _place(s32, O32['w2'], w((L * MLP, D)))
    _place(s64, O64['w1'], w((L * D, MLP)))

    # action head (squashed Gaussian); mu / log_std weights fused
    _place(s32, O32['pi_w'], np.concatenate([w((D, A)), w((D, A))], axis=1))
    bounds = np.zeros((2, A), np.float32)
    bounds[0, :] = -1.0                              # action_space.low
    bounds[1, :] = 1.0                               # action_space.high
    _place(s32, O32['bounds'], bounds)

    # twin Q heads (embedding_size = D + A), stacked along hidden / output dims
    v1w1, v2w1 = w((D + A, VH)), w((D + A, VH))
    v1w2, v2w2 = w((VH, VH)), w((VH, VH))
    v1w3, v2w3 = w((VH, 1)), w((VH, 1))
    _place(s64, O64['vw1e'], np.concatenate([v1w1[:D], v2w1[:D]], axis=1))
    _place(s64, O64['vw1a'], np.concatenate([v1w1[D:], v2w1[D:]], axis=1))
    vw2 = np.zeros((2 * VH, 2 * VH), np.float32)
    vw2[:VH, :VH], vw2[VH:, VH:] = v1w2, v2w2
    _place(s64, O64['vw2'], vw2)
    vw3 = np.zeros((2 * VH, 2), np.float32)
    vw3[:VH, 0], vw3[VH:, 1] = v1w3[:, 0], v2w3[:, 0]
    _place(s32, O32['vw3'], vw3)

    # last-window-step row selector (row b*W + W-1 of the readout block)
    sel = np.zeros((B, BW), np.float32)
    for b in range(B):
        sel[b, b * W + W - 1] = 1.0
    _place(s32, O32['sel'], sel)

    # per-head feature-lane selector (kept as its own tiny operand)
    hs = np.zeros((NH, 1, D), np.float32)
    for h in range(NH):
        hs[h, 0, h * DH:(h + 1) * DH] = 1.0

    return {'s32': jnp.asarray(s32), 's64': jnp.asarray(s64),
            's96': jnp.asarray(s96), 'hsel': jnp.asarray(hs)}


# ---------------- full forward (mirrors SACTransformerActorCritic.forward) ----
def sac_forward(obs, action, params, noise):
    obs_flat = obs['state'].reshape(BW, OBS_DIM)                 # rows ordered (b, t)
    act_noise = jnp.concatenate([action.reshape(BW, A), noise], axis=0)   # (2BW, A)
    packed = run_fused(obs_flat, act_noise, params)              # (B, HOUT)
    # TODO(synk): reference code indexes the (q1, q2) tuple like a tensor
    # (`q_policy[:, -1, 0, 0]`), which would raise in PyTorch; we report q1 of
    # the policy action and discard q2_policy (packed[:, A + 4]).
    return {
        'action': packed[:, 0:A],          # [B, A]
        'logp_action': packed[:, A],       # [B]
        'q1_sample': packed[:, A + 1],     # [B]
        'q2_sample': packed[:, A + 2],     # [B]
        'q_policy': packed[:, A + 3],      # [B]
    }


if __name__ == "__main__":
    key = jax.random.PRNGKey(0)
    kp, ko, ka, kn = jax.random.split(key, 4)
    params = init_params(kp)

    obs = {'state': jax.random.normal(ko, (B, W, OBS_DIM), dtype=jnp.float32)}
    action = jnp.clip(jax.random.normal(ka, (B, W, A), dtype=jnp.float32), -1.0, 1.0)
    # rsample noise for the Gaussian policy (randomness hoisted out of the kernel)
    noise = jax.random.normal(kn, (BW, A), dtype=jnp.float32)

    fwd = jax.jit(sac_forward)
    out = fwd(obs, action, params, noise)
    out = jax.block_until_ready(out)

    assert out['action'].shape == (B, A)
    assert out['logp_action'].shape == (B,)
    assert out['q1_sample'].shape == (B,)
    assert out['q2_sample'].shape == (B,)
    assert out['q_policy'].shape == (B,)
    assert all(bool(jnp.all(jnp.isfinite(v))) for v in out.values())
    print("KERNEL_OK")
</pallas_src>

<mosaic_0001>
module attributes {stable_mosaic.version = 11 : i64} {
  func.func @fused_kernel(%arg0: i32, %arg1: memref<8x8xf32, #tpu.memory_space<vmem>>, %arg2: memref<16x3xf32, #tpu.memory_space<vmem>>, %arg3: memref<2x1x32xf32, #tpu.memory_space<vmem>>, %arg4: memref<392x32xf32, #tpu.memory_space<vmem>>, %arg5: memref<192x64xf32, #tpu.memory_space<vmem>>, %arg6: memref<72x96xf32, #tpu.memory_space<vmem>>, %arg7: memref<2x8xf32, #tpu.memory_space<vmem>>) attributes {dimension_semantics = [#tpu.dimension_semantics<arbitrary>], iteration_bounds = array<i64: 1>, scalar_prefetch = 0 : i64, scratch_operands = 0 : i64, tpu.core_type = #tpu.core_type<tc>, window_params = [{pipeline_mode = #tpu.pipeline_mode<synchronous>, transform_indices = @transform_0, window_bounds = array<i64: 8, 8>}, {pipeline_mode = #tpu.pipeline_mode<synchronous>, transform_indices = @transform_1, window_bounds = array<i64: 16, 3>}, {pipeline_mode = #tpu.pipeline_mode<synchronous>, transform_indices = @transform_2, window_bounds = array<i64: 2, 1, 32>}, {pipeline_mode = #tpu.pipeline_mode<synchronous>, transform_indices = @transform_3, window_bounds = array<i64: 392, 32>}, {pipeline_mode = #tpu.pipeline_mode<synchronous>, transform_indices = @transform_4, window_bounds = array<i64: 192, 64>}, {pipeline_mode = #tpu.pipeline_mode<synchronous>, transform_indices = @transform_5, window_bounds = array<i64: 72, 96>}, {pipeline_mode = #tpu.pipeline_mode<synchronous>, transform_indices = @transform_6, window_bounds = array<i64: 2, 8>}]} {
    %c0 = arith.constant 0 : index
    %c0_0 = arith.constant 0 : index
    %0 = vector.load %arg4[%c0, %c0_0] : memref<392x32xf32, #tpu.memory_space<vmem>>, vector<8x32xf32>
    %c8 = arith.constant 8 : index
    %c0_1 = arith.constant 0 : index
    %1 = vector.load %arg4[%c8, %c0_1] : memref<392x32xf32, #tpu.memory_space<vmem>>, vector<8x32xf32>
    %c16 = arith.constant 16 : index
    %c0_2 = arith.constant 0 : index
    %2 = vector.load %arg4[%c16, %c0_2] : memref<392x32xf32, #tpu.memory_space<vmem>>, vector<8x32xf32>
    %c0_3 = arith.constant 0 : index
    %c0_4 = arith.constant 0 : index
    %3 = vector.load %arg1[%c0_3, %c0_4] : memref<8x8xf32, #tpu.memory_space<vmem>>, vector<8x8xf32>
    %cst = arith.constant dense<0.000000e+00> : vector<8x32xf32>
    %4 = tpu.matmul %3, %0, %cst {dimension_numbers = #tpu.dot_dimension_numbers<[1], [0], [0], [1], [0, 0, 1, 1], [], []>} : vector<8x8xf32>, vector<8x32xf32>, vector<8x32xf32> -> vector<8x32xf32>
    %5 = arith.addf %4, %1 : vector<8x32xf32>
    %6 = tpu.concatenate %5, %2 in 0 : vector<8x32xf32>, vector<8x32xf32> -> vector<16x32xf32>
    %c24 = arith.constant 24 : index
    %c0_5 = arith.constant 0 : index
    %7 = vector.load %arg4[%c24, %c0_5] : memref<392x32xf32, #tpu.memory_space<vmem>>, vector<16x16xf32>
    %c0_6 = arith.constant 0 : index
    %c0_7 = arith.constant 0 : index
    %c0_8 = arith.constant 0 : index
    %8 = vector.load %arg3[%c0_6, %c0_7, %c0_8] : memref<2x1x32xf32, #tpu.memory_space<vmem>>, vector<2x1x32xf32>
    %c0_9 = arith.constant 0 : index
    %c0_10 = arith.constant 0 : index
    %9 = vector.load %arg6[%c0_9, %c0_10] : memref<72x96xf32, #tpu.memory_space<vmem>>, vector<32x96xf32>
    %c64 = arith.constant 64 : index
    %c0_11 = arith.constant 0 : index
    %10 = vector.load %arg6[%c64, %c0_11] : memref<72x96xf32, #tpu.memory_space<vmem>>, vector<1x96xf32>
    %c56 = arith.constant 56 : index
    %c0_12 = arith.constant 0 : index
    %11 = vector.load %arg4[%c56, %c0_12] : memref<392x32xf32, #tpu.memory_space<vmem>>, vector<32x32xf32>
    %c120 = arith.constant 120 : index
    %c0_13 = arith.constant 0 : index
    %12 = vector.load %arg4[%c120, %c0_13] : memref<392x32xf32, #tpu.memory_space<vmem>>, vector<1x32xf32>
    %c0_14 = arith.constant 0 : index
    %c0_15 = arith.constant 0 : index
    %13 = vector.load %arg5[%c0_14, %c0_15] : memref<192x64xf32, #tpu.memory_space<vmem>>, vector<32x64xf32>
    %c64_16 = arith.constant 64 : index
    %c0_17 = arith.constant 0 : index
    %14 = vector.load %arg5[%c64_16, %c0_17] : memref<192x64xf32, #tpu.memory_space<vmem>>, vector<1x64xf32>
    %c128 = arith.constant 128 : index
    %c0_18 = arith.constant 0 : index
    %15 = vector.load %arg4[%c128, %c0_18] : memref<392x32xf32, #tpu.memory_space<vmem>>, vector<64x32xf32>
    %c256 = arith.constant 256 : index
    %c0_19 = arith.constant 0 : index
    %16 = vector.load %arg4[%c256, %c0_19] : memref<392x32xf32, #tpu.memory_space<vmem>>, vector<1x32xf32>
    %c40 = arith.constant 40 : index
    %c0_20 = arith.constant 0 : index
    %17 = vector.load %arg4[%c40, %c0_20] : memref<392x32xf32, #tpu.memory_space<vmem>>, vector<1x32xf32>
    %c41 = arith.constant 41 : index
    %c0_21 = arith.constant 0 : index
    %18 = vector.load %arg4[%c41, %c0_21] : memref<392x32xf32, #tpu.memory_space<vmem>>, vector<1x32xf32>
    %cst_22 = arith.constant dense<0.000000e+00> : vector<16xf32>
    %19 = vector.multi_reduction <add>, %6, %cst_22 [1] : vector<16x32xf32> to vector<16xf32>
    %20 = vector.shape_cast %19 : vector<16xf32> to vector<16x1xf32>
    %cst_23 = arith.constant 3.200000e+01 : f32
    %21 = vector.broadcast %cst_23 : f32 to vector<16x1xf32>
    %22 = arith.divf %20, %21 : vector<16x1xf32>
    %23 = vector.broadcast %22 : vector<16x1xf32> to vector<16x32xf32>
    %24 = arith.subf %6, %23 : vector<16x32xf32>
    %25 = arith.mulf %24, %24 : vector<16x32xf32>
    %cst_24 = arith.constant dense<0.000000e+00> : vector<16xf32>
    %26 = vector.multi_reduction <add>, %25, %cst_24 [1] : vector<16x32xf32> to vector<16xf32>
    %27 = vector.shape_cast %26 : vector<16xf32> to vector<16x1xf32>
    %cst_25 = arith.constant 3.200000e+01 : f32
    %28 = vector.broadcast %cst_25 : f32 to vector<16x1xf32>
    %29 = arith.divf %27, %28 : vector<16x1xf32>
    %cst_26 = arith.constant 9.99999974E-6 : f32
    %30 = vector.broadcast %cst_26 : f32 to vector<16x1xf32>
    %31 = arith.addf %29, %30 : vector<16x1xf32>
    %32 = math.rsqrt %31 : vector<16x1xf32>
    %33 = vector.broadcast %32 : vector<16x1xf32> to vector<16x32xf32>
    %34 = arith.mulf %24, %33 : vector<16x32xf32>
    %35 = vector.broadcast %17 : vector<1x32xf32> to vector<16x32xf32>
    %36 = arith.mulf %34, %35 : vector<16x32xf32>
    %37 = vector.broadcast %18 : vector<1x32xf32> to vector<16x32xf32>
    %38 = arith.addf %36, %37 : vector<16x32xf32>
    %cst_27 = arith.constant dense<0.000000e+00> : vector<16x96xf32>
    %39 = tpu.matmul %38, %9, %cst_27 {dimension_numbers = #tpu.dot_dimension_numbers<[1], [0], [0], [1], [0, 0, 1, 1], [], []>} : vector<16x32xf32>, vector<32x96xf32>, vector<16x96xf32> -> vector<16x96xf32>
    %40 = vector.broadcast %10 : vector<1x96xf32> to vector<16x96xf32>
    %41 = arith.addf %39, %40 : vector<16x96xf32>
    %42 = vector.extract_strided_slice %41 {offsets = [0, 0], sizes = [16, 32], strides = [1, 1]} : vector<16x96xf32> to vector<16x32xf32>
    %43 = vector.extract_strided_slice %41 {offsets = [0, 32], sizes = [16, 32], strides = [1, 1]} : vector<16x96xf32> to vector<16x32xf32>
    %44 = vector.extract_strided_slice %41 {offsets = [0, 64], sizes = [16, 32], strides = [1, 1]} : vector<16x96xf32> to vector<16x32xf32>
    %45 = vector.shape_cast %43 : vector<16x32xf32> to vector<1x16x32xf32>
    %46 = vector.broadcast %45 : vector<1x16x32xf32> to vector<2x16x32xf32>
    %47 = vector.broadcast %8 : vector<2x1x32xf32> to vector<2x16x32xf32>
    %48 = arith.mulf %46, %47 : vector<2x16x32xf32>
    %49 = vector.shape_cast %44 : vector<16x32xf32> to vector<1x16x32xf32>
    %50 = vector.broadcast %49 : vector<1x16x32xf32> to vector<2x16x32xf32>
    %51 = vector.broadcast %8 : vector<2x1x32xf32> to vector<2x16x32xf32>
    %52 = arith.mulf %50, %51 : vector<2x16x32xf32>
    %53 = vector.shape_cast %42 : vector<16x32xf32> to vector<1x16x32xf32>
    %54 = vector.shape_cast %53 : vector<1x16x32xf32> to vector<1x16x32xf32>
    %55 = vector.broadcast %54 : vector<1x16x32xf32> to vector<2x16x32xf32>
    "tpu.trace_start"() <{level = 10 : i32, message = "htd,hsd->hts"}> : () -> ()
    %cst_28 = arith.constant dense<0.000000e+00> : vector<2x16x16xf32>
    %56 = tpu.matmul %55, %48, %cst_28 {dimension_numbers = #tpu.dot_dimension_numbers<[2], [2], [1], [1], [0, 0, 0, 1, 1, 1], [0], [0]>} : vector<2x16x32xf32>, vector<2x16x32xf32>, vector<2x16x16xf32> -> vector<2x16x16xf32>
    "tpu.trace_stop"() : () -> ()
    %cst_29 = arith.constant 2.500000e-01 : f32
    %57 = vector.broadcast %cst_29 : f32 to vector<2x16x16xf32>
    %58 = arith.mulf %56, %57 : vector<2x16x16xf32>
    %59 = vector.shape_cast %7 : vector<16x16xf32> to vector<1x16x16xf32>
    %60 = vector.broadcast %59 : vector<1x16x16xf32> to vector<2x16x16xf32>
    %61 = arith.addf %58, %60 : vector<2x16x16xf32>
    %cst_30 = arith.constant dense<0xFF800000> : vector<2x16xf32>
    %62 = vector.multi_reduction <maximumf>, %61, %cst_30 [2] : vector<2x16x16xf32> to vector<2x16xf32>
    %63 = vector.shape_cast %62 : vector<2x16xf32> to vector<2x16x1xf32>
    %64 = vector.broadcast %63 : vector<2x16x1xf32> to vector<2x16x16xf32>
    %65 = arith.subf %61, %64 : vector<2x16x16xf32>
    %66 = math.exp %65 : vector<2x16x16xf32>
    %cst_31 = arith.constant dense<0.000000e+00> : vector<2x16xf32>
    %67 = vector.multi_reduction <add>, %66, %cst_31 [2] : vector<2x16x16xf32> to vector<2x16xf32>
    %68 = vector.shape_cast %67 : vector<2x16xf32> to vector<2x16x1xf32>
    %69 = tpu.reciprocal %68 {approx = true} : vector<2x16x1xf32> -> vector<2x16x1xf32>
    %70 = vector.broadcast %69 : vector<2x16x1xf32> to vector<2x16x16xf32>
    %71 = arith.mulf %66, %70 : vector<2x16x16xf32>
    "tpu.trace_start"() <{level = 10 : i32, message = "hts,hsd->htd"}> : () -> ()
    %cst_32 = arith.constant dense<0.000000e+00> : vector<2x16x32xf32>
    %72 = tpu.matmul %71, %52, %cst_32 {dimension_numbers = #tpu.dot_dimension_numbers<[2], [1], [1], [2], [0, 0, 0, 1, 1, 2], [0], [0]>} : vector<2x16x16xf32>, vector<2x16x32xf32>, vector<2x16x32xf32> -> vector<2x16x32xf32>
    "tpu.trace_stop"() : () -> ()
    %cst_33 = arith.constant dense<0.000000e+00> : vector<16x32xf32>
    %73 = vector.multi_reduction <add>, %72, %cst_33 [0] : vector<2x16x32xf32> to vector<16x32xf32>
    %cst_34 = arith.constant dense<0.000000e+00> : vector<16x32xf32>
    %74 = tpu.matmul %73, %11, %cst_34 {dimension_numbers = #tpu.dot_dimension_numbers<[1], [0], [0], [1], [0, 0, 1, 1], [], []>} : vector<16x32xf32>, vector<32x32xf32>, vector<16x32xf32> -> vector<16x32xf32>
    %75 = arith.addf %6, %74 : vector<16x32xf32>
    %76 = vector.broadcast %12 : vector<1x32xf32> to vector<16x32xf32>
    %77 = arith.addf %75, %76 : vector<16x32xf32>
    %c42 = arith.constant 42 : index
    %c0_35 = arith.constant 0 : index
    %78 = vector.load %arg4[%c42, %c0_35] : memref<392x32xf32, #tpu.memory_space<vmem>>, vector<1x32xf32>
    %c43 = arith.constant 43 : index
    %c0_36 = arith.constant 0 : index
    %79 = vector.load %arg4[%c43, %c0_36] : memref<392x32xf32, #tpu.memory_space<vmem>>, vector<1x32xf32>
    %cst_37 = arith.constant dense<0.000000e+00> : vector<16xf32>
    %80 = vector.multi_reduction <add>, %77, %cst_37 [1] : vector<16x32xf32> to vector<16xf32>
    %81 = vector.shape_cast %80 : vector<16xf32> to vector<16x1xf32>
    %cst_38 = arith.constant 3.200000e+01 : f32
    %82 = vector.broadcast %cst_38 : f32 to vector<16x1xf32>
    %83 = arith.divf %81, %82 : vector<16x1xf32>
    %84 = vector.broadcast %83 : vector<16x1xf32> to vector<16x32xf32>
    %85 = arith.subf %77, %84 : vector<16x32xf32>
    %86 = arith.mulf %85, %85 : vector<16x32xf32>
    %cst_39 = arith.constant dense<0.000000e+00> : vector<16xf32>
    %87 = vector.multi_reduction <add>, %86, %cst_39 [1] : vector<16x32xf32> to vector<16xf32>
    %88 = vector.shape_cast %87 : vector<16xf32> to vector<16x1xf32>
    %cst_40 = arith.constant 3.200000e+01 : f32
    %89 = vector.broadcast %cst_40 : f32 to vector<16x1xf32>
    %90 = arith.divf %88, %89 : vector<16x1xf32>
    %cst_41 = arith.constant 9.99999974E-6 : f32
    %91 = vector.broadcast %cst_41 : f32 to vector<16x1xf32>
    %92 = arith.addf %90, %91 : vector<16x1xf32>
    %93 = math.rsqrt %92 : vector<16x1xf32>
    %94 = vector.broadcast %93 : vector<16x1xf32> to vector<16x32xf32>
    %95 = arith.mulf %85, %94 : vector<16x32xf32>
    %96 = vector.broadcast %78 : vector<1x32xf32> to vector<16x32xf32>
    %97 = arith.mulf %95, %96 : vector<16x32xf32>
    %98 = vector.broadcast %79 : vector<1x32xf32> to vector<16x32xf32>
    %99 = arith.addf %97, %98 : vector<16x32xf32>
    %cst_42 = arith.constant dense<0.000000e+00> : vector<16x64xf32>
    %100 = tpu.matmul %99, %13, %cst_42 {dimension_numbers = #tpu.dot_dimension_numbers<[1], [0], [0], [1], [0, 0, 1, 1], [], []>} : vector<16x32xf32>, vector<32x64xf32>, vector<16x64xf32> -> vector<16x64xf32>
    %101 = vector.broadcast %14 : vector<1x64xf32> to vector<16x64xf32>
    %102 = arith.addf %100, %101 : vector<16x64xf32>
    %103 = arith.mulf %102, %102 : vector<16x64xf32>
    %104 = arith.mulf %102, %103 : vector<16x64xf32>
    %cst_43 = arith.constant 4.471500e-02 : f32
    %105 = vector.broadcast %cst_43 : f32 to vector<16x64xf32>
    %106 = arith.mulf %105, %104 : vector<16x64xf32>
    %107 = arith.addf %102, %106 : vector<16x64xf32>
    %cst_44 = arith.constant 0.797884583 : f32
    %108 = vector.broadcast %cst_44 : f32 to vector<16x64xf32>
    %109 = arith.mulf %108, %107 : vector<16x64xf32>
    %110 = math.tanh %109 : vector<16x64xf32>
    %cst_45 = arith.constant 1.000000e+00 : f32
    %111 = vector.broadcast %cst_45 : f32 to vector<16x64xf32>
    %112 = arith.addf %111, %110 : vector<16x64xf32>
    %cst_46 = arith.constant 5.000000e-01 : f32
    %113 = vector.broadcast %cst_46 : f32 to vector<16x64xf32>
    %114 = arith.mulf %113, %112 : vector<16x64xf32>
    %115 = arith.mulf %102, %114 : vector<16x64xf32>
    %cst_47 = arith.constant dense<0.000000e+00> : vector<16x32xf32>
    %116 = tpu.matmul %115, %15, %cst_47 {dimension_numbers = #tpu.dot_dimension_numbers<[1], [0], [0], [1], [0, 0, 1, 1], [], []>} : vector<16x64xf32>, vector<64x32xf32>, vector<16x32xf32> -> vector<16x32xf32>
    %117 = arith.addf %77, %116 : vector<16x32xf32>
    %118 = vector.broadcast %16 : vector<1x32xf32> to vector<16x32xf32>
    %119 = arith.addf %117, %118 : vector<16x32xf32>
    %c32 = arith.constant 32 : index
    %c0_48 = arith.constant 0 : index
    %120 = vector.load %arg6[%c32, %c0_48] : memref<72x96xf32, #tpu.memory_space<vmem>>, vector<32x96xf32>
    %c65 = arith.constant 65 : index
    %c0_49 = arith.constant 0 : index
    %121 = vector.load %arg6[%c65, %c0_49] : memref<72x96xf32, #tpu.memory_space<vmem>>, vector<1x96xf32>
    %c88 = arith.constant 88 : index
    %c0_50 = arith.constant 0 : index
    %122 = vector.load %arg4[%c88, %c0_50] : memref<392x32xf32, #tpu.memory_space<vmem>>, vector<32x32xf32>
    %c121 = arith.constant 121 : index
    %c0_51 = arith.constant 0 : index
    %123 = vector.load %arg4[%c121, %c0_51] : memref<392x32xf32, #tpu.memory_space<vmem>>, vector<1x32xf32>
    %c32_52 = arith.constant 32 : index
    %c0_53 = arith.constant 0 : index
    %124 = vector.load %arg5[%c32_52, %c0_53] : memref<192x64xf32, #tpu.memory_space<vmem>>, vector<32x64xf32>
    %c65_54 = arith.constant 65 : index
    %c0_55 = arith.constant 0 : index
    %125 = vector.load %arg5[%c65_54, %c0_55] : memref<192x64xf32, #tpu.memory_space<vmem>>, vector<1x64xf32>
    %c192 = arith.constant 192 : index
    %c0_56 = arith.constant 0 : index
    %126 = vector.load %arg4[%c192, %c0_56] : memref<392x32xf32, #tpu.memory_space<vmem>>, vector<64x32xf32>
    %c257 = arith.constant 257 : index
    %c0_57 = arith.constant 0 : index
    %127 = vector.load %arg4[%c257, %c0_57] : memref<392x32xf32, #tpu.memory_space<vmem>>, vector<1x32xf32>
    %c44 = arith.constant 44 : index
    %c0_58 = arith.constant 0 : index
    %128 = vector.load %arg4[%c44, %c0_58] : memref<392x32xf32, #tpu.memory_space<vmem>>, vector<1x32xf32>
    %c45 = arith.constant 45 : index
    %c0_59 = arith.constant 0 : index
    %129 = vector.load %arg4[%c45, %c0_59] : memref<392x32xf32, #tpu.memory_space<vmem>>, vector<1x32xf32>
    %cst_60 = arith.constant dense<0.000000e+00> : vector<16xf32>
    %130 = vector.multi_reduction <add>, %119, %cst_60 [1] : vector<16x32xf32> to vector<16xf32>
    %131 = vector.shape_cast %130 : vector<16xf32> to vector<16x1xf32>
    %cst_61 = arith.constant 3.200000e+01 : f32
    %132 = vector.broadcast %cst_61 : f32 to vector<16x1xf32>
    %133 = arith.divf %131, %132 : vector<16x1xf32>
    %134 = vector.broadcast %133 : vector<16x1xf32> to vector<16x32xf32>
    %135 = arith.subf %119, %134 : vector<16x32xf32>
    %136 = arith.mulf %135, %135 : vector<16x32xf32>
    %cst_62 = arith.constant dense<0.000000e+00> : vector<16xf32>
    %137 = vector.multi_reduction <add>, %136, %cst_62 [1] : vector<16x32xf32> to vector<16xf32>
    %138 = vector.shape_cast %137 : vector<16xf32> to vector<16x1xf32>
    %cst_63 = arith.constant 3.200000e+01 : f32
    %139 = vector.broadcast %cst_63 : f32 to vector<16x1xf32>
    %140 = arith.divf %138, %139 : vector<16x1xf32>
    %cst_64 = arith.constant 9.99999974E-6 : f32
    %141 = vector.broadcast %cst_64 : f32 to vector<16x1xf32>
    %142 = arith.addf %140, %141 : vector<16x1xf32>
    %143 = math.rsqrt %142 : vector<16x1xf32>
    %144 = vector.broadcast %143 : vector<16x1xf32> to vector<16x32xf32>
    %145 = arith.mulf %135, %144 : vector<16x32xf32>
    %146 = vector.broadcast %128 : vector<1x32xf32> to vector<16x32xf32>
    %147 = arith.mulf %145, %146 : vector<16x32xf32>
    %148 = vector.broadcast %129 : vector<1x32xf32> to vector<16x32xf32>
    %149 = arith.addf %147, %148 : vector<16x32xf32>
    %cst_65 = arith.constant dense<0.000000e+00> : vector<16x96xf32>
    %150 = tpu.matmul %149, %120, %cst_65 {dimension_numbers = #tpu.dot_dimension_numbers<[1], [0], [0], [1], [0, 0, 1, 1], [], []>} : vector<16x32xf32>, vector<32x96xf32>, vector<16x96xf32> -> vector<16x96xf32>
    %151 = vector.broadcast %121 : vector<1x96xf32> to vector<16x96xf32>
    %152 = arith.addf %150, %151 : vector<16x96xf32>
    %153 = vector.extract_strided_slice %152 {offsets = [0, 0], sizes = [16, 32], strides = [1, 1]} : vector<16x96xf32> to vector<16x32xf32>
    %154 = vector.extract_strided_slice %152 {offsets = [0, 32], sizes = [16, 32], strides = [1, 1]} : vector<16x96xf32> to vector<16x32xf32>
    %155 = vector.extract_strided_slice %152 {offsets = [0, 64], sizes = [16, 32], strides = [1, 1]} : vector<16x96xf32> to vector<16x32xf32>
    %156 = vector.shape_cast %154 : vector<16x32xf32> to vector<1x16x32xf32>
    %157 = vector.broadcast %156 : vector<1x16x32xf32> to vector<2x16x32xf32>
    %158 = vector.broadcast %8 : vector<2x1x32xf32> to vector<2x16x32xf32>
    %159 = arith.mulf %157, %158 : vector<2x16x32xf32>
    %160 = vector.shape_cast %155 : vector<16x32xf32> to vector<1x16x32xf32>
    %161 = vector.broadcast %160 : vector<1x16x32xf32> to vector<2x16x32xf32>
    %162 = vector.broadcast %8 : vector<2x1x32xf32> to vector<2x16x32xf32>
    %163 = arith.mulf %161, %162 : vector<2x16x32xf32>
    %164 = vector.shape_cast %153 : vector<16x32xf32> to vector<1x16x32xf32>
    %165 = vector.shape_cast %164 : vector<1x16x32xf32> to vector<1x16x32xf32>
    %166 = vector.broadcast %165 : vector<1x16x32xf32> to vector<2x16x32xf32>
    "tpu.trace_start"() <{level = 10 : i32, message = "htd,hsd->hts"}> : () -> ()
    %cst_66 = arith.constant dense<0.000000e+00> : vector<2x16x16xf32>
    %167 = tpu.matmul %166, %159, %cst_66 {dimension_numbers = #tpu.dot_dimension_numbers<[2], [2], [1], [1], [0, 0, 0, 1, 1, 1], [0], [0]>} : vector<2x16x32xf32>, vector<2x16x32xf32>, vector<2x16x16xf32> -> vector<2x16x16xf32>
    "tpu.trace_stop"() : () -> ()
    %cst_67 = arith.constant 2.500000e-01 : f32
    %168 = vector.broadcast %cst_67 : f32 to vector<2x16x16xf32>
    %169 = arith.mulf %167, %168 : vector<2x16x16xf32>
    %170 = vector.shape_cast %7 : vector<16x16xf32> to vector<1x16x16xf32>
    %171 = vector.broadcast %170 : vector<1x16x16xf32> to vector<2x16x16xf32>
    %172 = arith.addf %169, %171 : vector<2x16x16xf32>
    %cst_68 = arith.constant dense<0xFF800000> : vector<2x16xf32>
    %173 = vector.multi_reduction <maximumf>, %172, %cst_68 [2] : vector<2x16x16xf32> to vector<2x16xf32>
    %174 = vector.shape_cast %173 : vector<2x16xf32> to vector<2x16x1xf32>
    %175 = vector.broadcast %174 : vector<2x16x1xf32> to vector<2x16x16xf32>
    %176 = arith.subf %172, %175 : vector<2x16x16xf32>
    %177 = math.exp %176 : vector<2x16x16xf32>
    %cst_69 = arith.constant dense<0.000000e+00> : vector<2x16xf32>
    %178 = vector.multi_reduction <add>, %177, %cst_69 [2] : vector<2x16x16xf32> to vector<2x16xf32>
    %179 = vector.shape_cast %178 : vector<2x16xf32> to vector<2x16x1xf32>
    %180 = tpu.reciprocal %179 {approx = true} : vector<2x16x1xf32> -> vector<2x16x1xf32>
    %181 = vector.broadcast %180 : vector<2x16x1xf32> to vector<2x16x16xf32>
    %182 = arith.mulf %177, %181 : vector<2x16x16xf32>
    "tpu.trace_start"() <{level = 10 : i32, message = "hts,hsd->htd"}> : () -> ()
    %cst_70 = arith.constant dense<0.000000e+00> : vector<2x16x32xf32>
    %183 = tpu.matmul %182, %163, %cst_70 {dimension_numbers = #tpu.dot_dimension_numbers<[2], [1], [1], [2], [0, 0, 0, 1, 1, 2], [0], [0]>} : vector<2x16x16xf32>, vector<2x16x32xf32>, vector<2x16x32xf32> -> vector<2x16x32xf32>
    "tpu.trace_stop"() : () -> ()
    %cst_71 = arith.constant dense<0.000000e+00> : vector<16x32xf32>
    %184 = vector.multi_reduction <add>, %183, %cst_71 [0] : vector<2x16x32xf32> to vector<16x32xf32>
    %cst_72 = arith.constant dense<0.000000e+00> : vector<16x32xf32>
    %185 = tpu.matmul %184, %122, %cst_72 {dimension_numbers = #tpu.dot_dimension_numbers<[1], [0], [0], [1], [0, 0, 1, 1], [], []>} : vector<16x32xf32>, vector<32x32xf32>, vector<16x32xf32> -> vector<16x32xf32>
    %186 = arith.addf %119, %185 : vector<16x32xf32>
    %187 = vector.broadcast %123 : vector<1x32xf32> to vector<16x32xf32>
    %188 = arith.addf %186, %187 : vector<16x32xf32>
    %c46 = arith.constant 46 : index
    %c0_73 = arith.constant 0 : index
    %189 = vector.load %arg4[%c46, %c0_73] : memref<392x32xf32, #tpu.memory_space<vmem>>, vector<1x32xf32>
    %c47 = arith.constant 47 : index
    %c0_74 = arith.constant 0 : index
    %190 = vector.load %arg4[%c47, %c0_74] : memref<392x32xf32, #tpu.memory_space<vmem>>, vector<1x32xf32>
    %cst_75 = arith.constant dense<0.000000e+00> : vector<16xf32>
    %191 = vector.multi_reduction <add>, %188, %cst_75 [1] : vector<16x32xf32> to vector<16xf32>
    %192 = vector.shape_cast %191 : vector<16xf32> to vector<16x1xf32>
    %cst_76 = arith.constant 3.200000e+01 : f32
    %193 = vector.broadcast %cst_76 : f32 to vector<16x1xf32>
    %194 = arith.divf %192, %193 : vector<16x1xf32>
    %195 = vector.broadcast %194 : vector<16x1xf32> to vector<16x32xf32>
    %196 = arith.subf %188, %195 : vector<16x32xf32>
    %197 = arith.mulf %196, %196 : vector<16x32xf32>
    %cst_77 = arith.constant dense<0.000000e+00> : vector<16xf32>
    %198 = vector.multi_reduction <add>, %197, %cst_77 [1] : vector<16x32xf32> to vector<16xf32>
    %199 = vector.shape_cast %198 : vector<16xf32> to vector<16x1xf32>
    %cst_78 = arith.constant 3.200000e+01 : f32
    %200 = vector.broadcast %cst_78 : f32 to vector<16x1xf32>
    %201 = arith.divf %199, %200 : vector<16x1xf32>
    %cst_79 = arith.constant 9.99999974E-6 : f32
    %202 = vector.broadcast %cst_79 : f32 to vector<16x1xf32>
    %203 = arith.addf %201, %202 : vector<16x1xf32>
    %204 = math.rsqrt %203 : vector<16x1xf32>
    %205 = vector.broadcast %204 : vector<16x1xf32> to vector<16x32xf32>
    %206 = arith.mulf %196, %205 : vector<16x32xf32>
    %207 = vector.broadcast %189 : vector<1x32xf32> to vector<16x32xf32>
    %208 = arith.mulf %206, %207 : vector<16x32xf32>
    %209 = vector.broadcast %190 : vector<1x32xf32> to vector<16x32xf32>
    %210 = arith.addf %208, %209 : vector<16x32xf32>
    %cst_80 = arith.constant dense<0.000000e+00> : vector<16x64xf32>
    %211 = tpu.matmul %210, %124, %cst_80 {dimension_numbers = #tpu.dot_dimension_numbers<[1], [0], [0], [1], [0, 0, 1, 1], [], []>} : vector<16x32xf32>, vector<32x64xf32>, vector<16x64xf32> -> vector<16x64xf32>
    %212 = vector.broadcast %125 : vector<1x64xf32> to vector<16x64xf32>
    %213 = arith.addf %211, %212 : vector<16x64xf32>
    %214 = arith.mulf %213, %213 : vector<16x64xf32>
    %215 = arith.mulf %213, %214 : vector<16x64xf32>
    %cst_81 = arith.constant 4.471500e-02 : f32
    %216 = vector.broadcast %cst_81 : f32 to vector<16x64xf32>
    %217 = arith.mulf %216, %215 : vector<16x64xf32>
    %218 = arith.addf %213, %217 : vector<16x64xf32>
    %cst_82 = arith.constant 0.797884583 : f32
    %219 = vector.broadcast %cst_82 : f32 to vector<16x64xf32>
    %220 = arith.mulf %219, %218 : vector<16x64xf32>
    %221 = math.tanh %220 : vector<16x64xf32>
    %cst_83 = arith.constant 1.000000e+00 : f32
    %222 = vector.broadcast %cst_83 : f32 to vector<16x64xf32>
    %223 = arith.addf %222, %221 : vector<16x64xf32>
    %cst_84 = arith.constant 5.000000e-01 : f32
    %224 = vector.broadcast %cst_84 : f32 to vector<16x64xf32>
    %225 = arith.mulf %224, %223 : vector<16x64xf32>
    %226 = arith.mulf %213, %225 : vector<16x64xf32>
    %cst_85 = arith.constant dense<0.000000e+00> : vector<16x32xf32>
    %227 = tpu.matmul %226, %126, %cst_85 {dimension_numbers = #tpu.dot_dimension_numbers<[1], [0], [0], [1], [0, 0, 1, 1], [], []>} : vector<16x64xf32>, vector<64x32xf32>, vector<16x32xf32> -> vector<16x32xf32>
    %228 = arith.addf %188, %227 : vector<16x32xf32>
    %229 = vector.broadcast %127 : vector<1x32xf32> to vector<16x32xf32>
    %230 = arith.addf %228, %229 : vector<16x32xf32>
    %231 = vector.extract_strided_slice %230 {offsets = [8, 0], sizes = [8, 32], strides = [1, 1]} : vector<16x32xf32> to vector<8x32xf32>
    %c48 = arith.constant 48 : index
    %c0_86 = arith.constant 0 : index
    %232 = vector.load %arg4[%c48, %c0_86] : memref<392x32xf32, #tpu.memory_space<vmem>>, vector<1x32xf32>
    %c49 = arith.constant 49 : index
    %c0_87 = arith.constant 0 : index
    %233 = vector.load %arg4[%c49, %c0_87] : memref<392x32xf32, #tpu.memory_space<vmem>>, vector<1x32xf32>
    %cst_88 = arith.constant dense<0.000000e+00> : vector<8xf32>
    %234 = vector.multi_reduction <add>, %231, %cst_88 [1] : vector<8x32xf32> to vector<8xf32>
    %235 = vector.shape_cast %234 : vector<8xf32> to vector<8x1xf32>
    %cst_89 = arith.constant 3.200000e+01 : f32
    %236 = vector.broadcast %cst_89 : f32 to vector<8x1xf32>
    %237 = arith.divf %235, %236 : vector<8x1xf32>
    %238 = vector.broadcast %237 : vector<8x1xf32> to vector<8x32xf32>
    %239 = arith.subf %231, %238 : vector<8x32xf32>
    %240 = arith.mulf %239, %239 : vector<8x32xf32>
    %cst_90 = arith.constant dense<0.000000e+00> : vector<8xf32>
    %241 = vector.multi_reduction <add>, %240, %cst_90 [1] : vector<8x32xf32> to vector<8xf32>
    %242 = vector.shape_cast %241 : vector<8xf32> to vector<8x1xf32>
    %cst_91 = arith.constant 3.200000e+01 : f32
    %243 = vector.broadcast %cst_91 : f32 to vector<8x1xf32>
    %244 = arith.divf %242, %243 : vector<8x1xf32>
    %cst_92 = arith.constant 9.99999974E-6 : f32
    %245 = vector.broadcast %cst_92 : f32 to vector<8x1xf32>
    %246 = arith.addf %244, %245 : vector<8x1xf32>
    %247 = math.rsqrt %246 : vector<8x1xf32>
    %248 = vector.broadcast %247 : vector<8x1xf32> to vector<8x32xf32>
    %249 = arith.mulf %239, %248 : vector<8x32xf32>
    %250 = vector.broadcast %232 : vector<1x32xf32> to vector<8x32xf32>
    %251 = arith.mulf %249, %250 : vector<8x32xf32>
    %252 = vector.broadcast %233 : vector<1x32xf32> to vector<8x32xf32>
    %253 = arith.addf %251, %252 : vector<8x32xf32>
    %c264 = arith.constant 264 : index
    %c0_93 = arith.constant 0 : index
    %254 = vector.load %arg4[%c264, %c0_93] : memref<392x32xf32, #tpu.memory_space<vmem>>, vector<32x32xf32>
    %c296 = arith.constant 296 : index
    %c0_94 = arith.constant 0 : index
    %255 = vector.load %arg4[%c296, %c0_94] : memref<392x32xf32, #tpu.memory_space<vmem>>, vector<1x32xf32>
    %c304 = arith.constant 304 : index
    %c0_95 = arith.constant 0 : index
    %256 = vector.load %arg4[%c304, %c0_95] : memref<392x32xf32, #tpu.memory_space<vmem>>, vector<2x32xf32>
    %cst_96 = arith.constant dense<0.000000e+00> : vector<8x32xf32>
    %257 = tpu.matmul %253, %254, %cst_96 {dimension_numbers = #tpu.dot_dimension_numbers<[1], [0], [0], [1], [0, 0, 1, 1], [], []>} : vector<8x32xf32>, vector<32x32xf32>, vector<8x32xf32> -> vector<8x32xf32>
    %258 = vector.broadcast %255 : vector<1x32xf32> to vector<8x32xf32>
    %259 = arith.addf %257, %258 : vector<8x32xf32>
    %260 = vector.extract_strided_slice %259 {offsets = [0, 0], sizes = [8, 3], strides = [1, 1]} : vector<8x32xf32> to vector<8x3xf32>
    %261 = vector.extract_strided_slice %259 {offsets = [0, 3], sizes = [8, 3], strides = [1, 1]} : vector<8x32xf32> to vector<8x3xf32>
    %cst_97 = arith.constant -2.000000e+01 : f32
    %cst_98 = arith.constant 2.000000e+00 : f32
    %262 = vector.broadcast %cst_97 : f32 to vector<8x3xf32>
    %263 = arith.maximumf %262, %261 : vector<8x3xf32>
    %264 = vector.broadcast %cst_98 : f32 to vector<8x3xf32>
    %265 = arith.minimumf %264, %263 : vector<8x3xf32>
    %266 = math.exp %265 : vector<8x3xf32>
    %c0_99 = arith.constant 0 : index
    %c0_100 = arith.constant 0 : index
    %267 = vector.load %arg2[%c0_99, %c0_100] : memref<16x3xf32, #tpu.memory_space<vmem>>, vector<8x3xf32>
    %c8_101 = arith.constant 8 : index
    %c0_102 = arith.constant 0 : index
    %268 = vector.load %arg2[%c8_101, %c0_102] : memref<16x3xf32, #tpu.memory_space<vmem>>, vector<8x3xf32>
    %269 = arith.mulf %266, %268 : vector<8x3xf32>
    %270 = arith.addf %260, %269 : vector<8x3xf32>
    %cst_103 = arith.constant -5.000000e-01 : f32
    %271 = vector.broadcast %cst_103 : f32 to vector<8x3xf32>
    %272 = arith.mulf %271, %268 : vector<8x3xf32>
    %273 = arith.mulf %272, %268 : vector<8x3xf32>
    %274 = arith.subf %273, %265 : vector<8x3xf32>
    %cst_104 = arith.constant 0.918938517 : f32
    %275 = vector.broadcast %cst_104 : f32 to vector<8x3xf32>
    %276 = arith.subf %274, %275 : vector<8x3xf32>
    %cst_105 = arith.constant dense<0.000000e+00> : vector<8xf32>
    %277 = vector.multi_reduction <add>, %276, %cst_105 [1] : vector<8x3xf32> to vector<8xf32>
    %278 = vector.shape_cast %277 : vector<8xf32> to vector<8x1xf32>
    %cst_106 = arith.constant 0.693147182 : f32
    %279 = vector.broadcast %cst_106 : f32 to vector<8x3xf32>
    %280 = arith.subf %279, %270 : vector<8x3xf32>
    %cst_107 = arith.constant -2.000000e+00 : f32
    %281 = vector.broadcast %cst_107 : f32 to vector<8x3xf32>
    %282 = arith.mulf %281, %270 : vector<8x3xf32>
    %cst_108 = arith.constant 0.000000e+00 : f32
    %283 = vector.broadcast %cst_108 : f32 to vector<8x3xf32>
    %284 = arith.maximumf %282, %283 : vector<8x3xf32>
    %285 = vector.broadcast %cst_108 : f32 to vector<8x3xf32>
    %286 = arith.subf %282, %285 : vector<8x3xf32>
    %287 = arith.cmpf one, %286, %286 : vector<8x3xf32>
    %288 = vector.broadcast %cst_108 : f32 to vector<8x3xf32>
    %289 = arith.addf %282, %288 : vector<8x3xf32>
    %290 = math.absf %286 : vector<8x3xf32>
    %cst_109 = arith.constant 0.000000e+00 : f32
    %291 = vector.broadcast %cst_109 : f32 to vector<8x3xf32>
    %292 = arith.subf %291, %290 : vector<8x3xf32>
    %293 = math.exp %292 : vector<8x3xf32>
    %294 = math.log1p %293 : vector<8x3xf32>
    %295 = arith.addf %284, %294 : vector<8x3xf32>
    %296 = arith.select %287, %289, %295 : vector<8x3xi1>, vector<8x3xf32>
    %297 = arith.subf %280, %296 : vector<8x3xf32>
    %cst_110 = arith.constant 2.000000e+00 : f32
    %298 = vector.broadcast %cst_110 : f32 to vector<8x3xf32>
    %299 = arith.mulf %298, %297 : vector<8x3xf32>
    %cst_111 = arith.constant dense<0.000000e+00> : vector<8xf32>
    %300 = vector.multi_reduction <add>, %299, %cst_111 [1] : vector<8x3xf32> to vector<8xf32>
    %301 = vector.shape_cast %300 : vector<8xf32> to vector<8x1xf32>
    %302 = arith.subf %278, %301 : vector<8x1xf32>
    %303 = math.tanh %270 : vector<8x3xf32>
    %304 = vector.extract_strided_slice %256 {offsets = [0, 0], sizes = [1, 3], strides = [1, 1]} : vector<2x32xf32> to vector<1x3xf32>
    %305 = vector.extract_strided_slice %256 {offsets = [1, 0], sizes = [1, 3], strides = [1, 1]} : vector<2x32xf32> to vector<1x3xf32>
    %cst_112 = arith.constant 1.000000e+00 : f32
    %306 = vector.broadcast %cst_112 : f32 to vector<8x3xf32>
    %307 = arith.addf %303, %306 : vector<8x3xf32>
    %cst_113 = arith.constant 5.000000e-01 : f32
    %308 = vector.broadcast %cst_113 : f32 to vector<8x3xf32>
    %309 = arith.mulf %308, %307 : vector<8x3xf32>
    %310 = arith.subf %305, %304 : vector<1x3xf32>
    %311 = vector.broadcast %310 : vector<1x3xf32> to vector<8x3xf32>
    %312 = arith.mulf %309, %311 : vector<8x3xf32>
    %313 = vector.broadcast %304 : vector<1x3xf32> to vector<8x3xf32>
    %314 = arith.addf %313, %312 : vector<8x3xf32>
    %c72 = arith.constant 72 : index
    %c0_114 = arith.constant 0 : index
    %315 = vector.load %arg5[%c72, %c0_114] : memref<192x64xf32, #tpu.memory_space<vmem>>, vector<32x64xf32>
    %c104 = arith.constant 104 : index
    %c0_115 = arith.constant 0 : index
    %316 = vector.load %arg5[%c104, %c0_115] : memref<192x64xf32, #tpu.memory_space<vmem>>, vector<3x64xf32>
    %c112 = arith.constant 112 : index
    %c0_116 = arith.constant 0 : index
    %317 = vector.load %arg5[%c112, %c0_116] : memref<192x64xf32, #tpu.memory_space<vmem>>, vector<1x64xf32>
    %c120_117 = arith.constant 120 : index
    %c0_118 = arith.constant 0 : index
    %318 = vector.load %arg5[%c120_117, %c0_118] : memref<192x64xf32, #tpu.memory_space<vmem>>, vector<64x64xf32>
    %c184 = arith.constant 184 : index
    %c0_119 = arith.constant 0 : index
    %319 = vector.load %arg5[%c184, %c0_119] : memref<192x64xf32, #tpu.memory_space<vmem>>, vector<1x64xf32>
    %c312 = arith.constant 312 : index
    %c0_120 = arith.constant 0 : index
    %320 = vector.load %arg4[%c312, %c0_120] : memref<392x32xf32, #tpu.memory_space<vmem>>, vector<64x32xf32>
    %c376 = arith.constant 376 : index
    %c0_121 = arith.constant 0 : index
    %321 = vector.load %arg4[%c376, %c0_121] : memref<392x32xf32, #tpu.memory_space<vmem>>, vector<1x32xf32>
    %cst_122 = arith.constant dense<0.000000e+00> : vector<8x64xf32>
    %322 = tpu.matmul %253, %315, %cst_122 {dimension_numbers = #tpu.dot_dimension_numbers<[1], [0], [0], [1], [0, 0, 1, 1], [], []>} : vector<8x32xf32>, vector<32x64xf32>, vector<8x64xf32> -> vector<8x64xf32>
    %323 = vector.broadcast %317 : vector<1x64xf32> to vector<8x64xf32>
    %324 = arith.addf %322, %323 : vector<8x64xf32>
    %325 = tpu.concatenate %267, %314 in 0 : vector<8x3xf32>, vector<8x3xf32> -> vector<16x3xf32>
    %326 = tpu.concatenate %324, %324 in 0 : vector<8x64xf32>, vector<8x64xf32> -> vector<16x64xf32>
    %cst_123 = arith.constant dense<0.000000e+00> : vector<16x64xf32>
    %327 = tpu.matmul %325, %316, %cst_123 {dimension_numbers = #tpu.dot_dimension_numbers<[1], [0], [0], [1], [0, 0, 1, 1], [], []>} : vector<16x3xf32>, vector<3x64xf32>, vector<16x64xf32> -> vector<16x64xf32>
    %328 = arith.addf %326, %327 : vector<16x64xf32>
    %cst_124 = arith.constant 0.000000e+00 : f32
    %329 = vector.broadcast %cst_124 : f32 to vector<16x64xf32>
    %330 = arith.maximumf %328, %329 : vector<16x64xf32>
    %cst_125 = arith.constant dense<0.000000e+00> : vector<16x64xf32>
    %331 = tpu.matmul %330, %318, %cst_125 {dimension_numbers = #tpu.dot_dimension_numbers<[1], [0], [0], [1], [0, 0, 1, 1], [], []>} : vector<16x64xf32>, vector<64x64xf32>, vector<16x64xf32> -> vector<16x64xf32>
    %332 = vector.broadcast %319 : vector<1x64xf32> to vector<16x64xf32>
    %333 = arith.addf %331, %332 : vector<16x64xf32>
    %cst_126 = arith.constant 0.000000e+00 : f32
    %334 = vector.broadcast %cst_126 : f32 to vector<16x64xf32>
    %335 = arith.maximumf %333, %334 : vector<16x64xf32>
    %cst_127 = arith.constant dense<0.000000e+00> : vector<16x32xf32>
    %336 = tpu.matmul %335, %320, %cst_127 {dimension_numbers = #tpu.dot_dimension_numbers<[1], [0], [0], [1], [0, 0, 1, 1], [], []>} : vector<16x64xf32>, vector<64x32xf32>, vector<16x32xf32> -> vector<16x32xf32>
    %337 = vector.broadcast %321 : vector<1x32xf32> to vector<16x32xf32>
    %338 = arith.addf %336, %337 : vector<16x32xf32>
    %339 = vector.extract_strided_slice %338 {offsets = [0, 0], sizes = [8, 2], strides = [1, 1]} : vector<16x32xf32> to vector<8x2xf32>
    %340 = vector.extract_strided_slice %338 {offsets = [8, 0], sizes = [8, 2], strides = [1, 1]} : vector<16x32xf32> to vector<8x2xf32>
    %341 = tpu.concatenate %314, %302, %339, %340 in 1 : vector<8x3xf32>, vector<8x1xf32>, vector<8x2xf32>, vector<8x2xf32> -> vector<8x8xf32>
    %c384 = arith.constant 384 : index
    %c0_128 = arith.constant 0 : index
    %342 = vector.load %arg4[%c384, %c0_128] : memref<392x32xf32, #tpu.memory_space<vmem>>, vector<2x8xf32>
    %cst_129 = arith.constant dense<0.000000e+00> : vector<2x8xf32>
    %343 = tpu.matmul %342, %341, %cst_129 {dimension_numbers = #tpu.dot_dimension_numbers<[1], [0], [0], [1], [0, 0, 1, 1], [], []>} : vector<2x8xf32>, vector<8x8xf32>, vector<2x8xf32> -> vector<2x8xf32>
    %c0_130 = arith.constant 0 : index
    %c0_131 = arith.constant 0 : index
    %344 = vector.load %arg7[%c0_130, %c0_131] : memref<2x8xf32, #tpu.memory_space<vmem>>, vector<2x8xf32>
    tpu.vector_store %arg7[%c0_130, %c0_131], %343 {strides = array<i32>} : memref<2x8xf32, #tpu.memory_space<vmem>>, vector<2x8xf32>,
    return
  }
  func.func @transform_0(%arg0: i32) -> (i32, i32) {
    %c0_i32 = arith.constant 0 : i32
    %c0_i32_0 = arith.constant 0 : i32
    %c0_i32_1 = arith.constant 0 : i32
    return %c0_i32, %c0_i32_0 : i32, i32
  }
  func.func @transform_1(%arg0: i32) -> (i32, i32) {
    %c0_i32 = arith.constant 0 : i32
    %c0_i32_0 = arith.constant 0 : i32
    %c0_i32_1 = arith.constant 0 : i32
    return %c0_i32, %c0_i32_0 : i32, i32
  }
  func.func @transform_2(%arg0: i32) -> (i32, i32, i32) {
    %c0_i32 = arith.constant 0 : i32
    %c0_i32_0 = arith.constant 0 : i32
    %c0_i32_1 = arith.constant 0 : i32
    %c0_i32_2 = arith.constant 0 : i32
    return %c0_i32, %c0_i32_0, %c0_i32_1 : i32, i32, i32
  }
  func.func @transform_3(%arg0: i32) -> (i32, i32) {
    %c0_i32 = arith.constant 0 : i32
    %c0_i32_0 = arith.constant 0 : i32
    %c0_i32_1 = arith.constant 0 : i32
    return %c0_i32, %c0_i32_0 : i32, i32
  }
  func.func @transform_4(%arg0: i32) -> (i32, i32) {
    %c0_i32 = arith.constant 0 : i32
    %c0_i32_0 = arith.constant 0 : i32
    %c0_i32_1 = arith.constant 0 : i32
    return %c0_i32, %c0_i32_0 : i32, i32
  }
  func.func @transform_5(%arg0: i32) -> (i32, i32) {
    %c0_i32 = arith.constant 0 : i32
    %c0_i32_0 = arith.constant 0 : i32
    %c0_i32_1 = arith.constant 0 : i32
    return %c0_i32, %c0_i32_0 : i32, i32
  }
  func.func @transform_6(%arg0: i32) -> (i32, i32) {
    %c0_i32 = arith.constant 0 : i32
    %c0_i32_0 = arith.constant 0 : i32
    %c0_i32_1 = arith.constant 0 : i32
    return %c0_i32, %c0_i32_0 : i32, i32
  }
}

</mosaic_0001>

<llo_original>
// kernel: sac_forward.1
$region0: #{sac_forward.1}
  #allocation0 [shape = 'u32[]', space=smem, size = 0x4, offset = 0x4, fixed_abs, tag = 'smem constant byte address 0x4 - core index']
  #allocation1 [shape = 'u32[144,128]{1,0:T(1,128)}', space=vmem, size = 0x12000, scoped, tag = 'internal scratch']
  %s0 = inlined_call_operand.vmem [shape: f32[8,8], index: 0, kind: input, shape index: {}]
  %s1 = inlined_call_operand.vmem [shape: f32[16,3], index: 1, kind: input, shape index: {}]
  %s2 = inlined_call_operand.vmem [shape: f32[2,1,32], index: 2, kind: input, shape index: {}]
  %s3 = inlined_call_operand.vmem [shape: f32[392,32], index: 3, kind: input, shape index: {}]
  %s4 = inlined_call_operand.vmem [shape: f32[192,64], index: 4, kind: input, shape index: {}]
  %s5 = inlined_call_operand.vmem [shape: f32[72,96], index: 5, kind: input, shape index: {}]
  %s6 = inlined_call_operand.vmem [shape: f32[2,8], index: 6, kind: output, shape index: {}]
  %s7 = sld [smem:[#allocation0]]
  $region34: #{sac_forward.1} parent=0
    _
  %s9 = ssub.s32 1, %s7
  %s10 = scalar_select 0, %s9, %s7
  // Predicated region
  $region2: #{sac_forward.1} parent=0 // pred_check
    _
  $region3: #{sac_forward.1} parent=0 // pred_check_branch
    %12 = sbr.rel (0) target = $region5
  $region4: #{sac_forward.1} parent=0 // pred_region
    _
  $region5: #{sac_forward.1} parent=0 // pred_fallthru
    _
  // Predicated region
  $region6: #{sac_forward.1} parent=0 // pred_check
    _
  $region7: #{sac_forward.1} parent=0 // pred_check_branch
    %14 = sbr.rel (0) target = $region9
  $region8: #{sac_forward.1} parent=0 // pred_region
    _
  $region9: #{sac_forward.1} parent=0 // pred_fallthru
    _
  // Predicated region
  $region10: #{sac_forward.1} parent=0 // pred_check
    _
  $region11: #{sac_forward.1} parent=0 // pred_check_branch
    %16 = sbr.rel (0) target = $region13
  $region12: #{sac_forward.1} parent=0 // pred_region
    _
  $region13: #{sac_forward.1} parent=0 // pred_fallthru
    _
  // Predicated region
  $region14: #{sac_forward.1} parent=0 // pred_check
    _
  $region15: #{sac_forward.1} parent=0 // pred_check_branch
    %18 = sbr.rel (0) target = $region17
  $region16: #{sac_forward.1} parent=0 // pred_region
    _
  $region17: #{sac_forward.1} parent=0 // pred_fallthru
    _
  // Predicated region
  $region18: #{sac_forward.1} parent=0 // pred_check
    _
  $region19: #{sac_forward.1} parent=0 // pred_check_branch
    %20 = sbr.rel (0) target = $region21
  $region20: #{sac_forward.1} parent=0 // pred_region
    _
  $region21: #{sac_forward.1} parent=0 // pred_fallthru
    _
  // Predicated region
  $region22: #{sac_forward.1} parent=0 // pred_check
    _
  $region23: #{sac_forward.1} parent=0 // pred_check_branch
    %22 = sbr.rel (0) target = $region25
  $region24: #{sac_forward.1} parent=0 // pred_region
    _
  $region25: #{sac_forward.1} parent=0 // pred_fallthru
    _
  %v23 = vld [vmem:[%s3] sm:$0xff]
  %v24 = vld [vmem:[%s3 + $0x8] sm:$0xff]
  %v25 = vld [vmem:[%s3 + $0x10] sm:$0xff]
  %v26 = vld [vmem:[%s0] sm:$0xff]
  %vm27 = vcmask 64512
  %v29 = vsel %vm27, %v26, 0
  %31 = vmatprep.subr.mxu0 0.0
  %32 = vmatpush1.msra.mxu0 %v23
  %33 = vmatprep.subr.mxu0 0.0
  %34 = vmatpush1.msra.mxu0 0.0
  %35 = vmatprep.subr.mxu0 0.0
  %36 = vmatpush1.msra.mxu0 0.0
  %37 = vmatprep.subr.mxu0 0.0
  %38 = vmatpush1.msra.mxu0 0.0
  %39 = vmatprep.subr.mxu0 0.0
  %40 = vmatpush1.msra.mxu0 0.0
  %41 = vmatprep.subr.mxu0 0.0
  %42 = vmatpush1.msra.mxu0 0.0
  %43 = vmatprep.subr.mxu0 0.0
  %44 = vmatpush1.msra.mxu0 0.0
  %45 = vmatprep.subr.mxu0 0.0
  %46 = vmatpush1.msra.mxu0 0.0
  %47 = vmatprep.subr.mxu0 0.0
  %48 = vmatpush1.msra.mxu0 0.0
  %49 = vmatprep.subr.mxu0 0.0
  %50 = vmatpush1.msra.mxu0 0.0
  %51 = vmatprep.subr.mxu0 0.0
  %52 = vmatpush1.msra.mxu0 0.0
  %53 = vmatprep.subr.mxu0 0.0
  %54 = vmatpush1.msra.mxu0 0.0
  %55 = vmatprep.subr.mxu0 0.0
  %56 = vmatpush1.msra.mxu0 0.0
  %57 = vmatprep.subr.mxu0 0.0
  %58 = vmatpush1.msra.mxu0 0.0
  %59 = vmatprep.subr.mxu0 0.0
  %60 = vmatpush1.msra.mxu0 0.0
  %61 = vmatprep.subr.mxu0 0.0
  %62 = vmatpush1.msra.mxu0 0.0
  %63 = vmatprep.subr.mxu0 0.0
  %64 = vmatpush1.msra.mxu0 0.0
  %65 = vmatprep.subr.mxu0 0.0
  %66 = vmatpush1.msra.mxu0 0.0
  %67 = vmatprep.subr.mxu0 0.0
  %68 = vmatpush1.msra.mxu0 0.0
  %69 = vmatprep.subr.mxu0 0.0
  %70 = vmatpush1.msra.mxu0 0.0
  %71 = vmatprep.subr.mxu0 0.0
  %72 = vmatpush1.msra.mxu0 0.0
  %73 = vmatprep.subr.mxu0 0.0
  %74 = vmatpush1.msra.mxu0 0.0
  %75 = vmatprep.subr.mxu0 0.0
  %76 = vmatpush1.msra.mxu0 0.0
  %77 = vmatprep.subr.mxu0 0.0
  %78 = vmatpush1.msra.mxu0 0.0
  %79 = vmatprep.subr.mxu0 0.0
  %80 = vmatpush1.msra.mxu0 0.0
  %81 = vmatprep.subr.mxu0 0.0
  %82 = vmatpush1.msra.mxu0 0.0
  %83 = vmatprep.subr.mxu0 0.0
  %84 = vmatpush1.msra.mxu0 0.0
  %85 = vmatprep.subr.mxu0 0.0
  %86 = vmatpush1.msra.mxu0 0.0
  %87 = vmatprep.subr.mxu0 0.0
  %88 = vmatpush1.msra.mxu0 0.0
  %89 = vmatprep.subr.mxu0 0.0
  %90 = vmatpush1.msra.mxu0 0.0
  %91 = vmatprep.subr.mxu0 0.0
  %92 = vmatpush1.msra.mxu0 0.0
  %93 = vmatprep.subr.mxu0 0.0
  %94 = vmatpush1.msra.mxu0 0.0
  %95 = vmatprep.mubr.f32.mxu0 0.0
  %96 = vmatmul.mubr.f32.gmra.mrb[0].mxu0 %v29
  %v97 = vpop.f32.mrb[0].mxu0
  %v98 = vadd.f32 %v24, %v97
  %v99 = vpop.f32.mrb[0].mxu0
  %100 = vdwg.mxu0
  %v101 = vld [vmem:[%s3 + $0x18] sm:$0xff]
  %v102 = vld [vmem:[%s3 + $0x20] sm:$0xff]
  %v103 = vld [vmem:[%s2] sm:$0x1]
  %v104 = vld [vmem:[%s2 + $0x1] sm:$0x1]
  %v105 = vld [vmem:[%s5] sm:$0xff]
  %v106 = vld [vmem:[%s5 + $0x8] sm:$0xff]
  %v107 = vld [vmem:[%s5 + $0x10] sm:$0xff]
  %v108 = vld [vmem:[%s5 + $0x18] sm:$0xff]
  %v109 = vld [vmem:[%s5 + $0x40] sm:$0x1]
  %v110 = vld [vmem:[%s3 + $0x38] sm:$0xff]
  %v111 = vld [vmem:[%s3 + $0x40] sm:$0xff]
  %v112 = vld [vmem:[%s3 + $0x48] sm:$0xff]
  %v113 = vld [vmem:[%s3 + $0x50] sm:$0xff]
  %v114 = vld [vmem:[%s3 + $0x78] sm:$0x1]
  %v115 = vld [vmem:[%s4] sm:$0xff]
  %v116 = vld [vmem:[%s4 + $0x8] sm:$0xff]
  %v117 = vld [vmem:[%s4 + $0x10] sm:$0xff]
  %v118 = vld [vmem:[%s4 + $0x18] sm:$0xff]
  %v119 = vld [vmem:[%s4 + $0x40] sm:$0x1]
  %v120 = vld [vmem:[%s3 + $0x80] sm:$0xff]
  %v121 = vld [vmem:[%s3 + $0x88] sm:$0xff]
  %v122 = vld [vmem:[%s3 + $0x90] sm:$0xff]
  %v123 = vld [vmem:[%s3 + $0x98] sm:$0xff]
  %v124 = vld [vmem:[%s3 + $0xa0] sm:$0xff]
  %v125 = vld [vmem:[%s3 + $0xa8] sm:$0xff]
  %v126 = vld [vmem:[%s3 + $0xb0] sm:$0xff]
  %v127 = vld [vmem:[%s3 + $0xb8] sm:$0xff]
  %v128 = vld [vmem:[%s3 + $0x100] sm:$0x1]
  %v129 = vld [vmem:[%s3 + $0x28] sm:$0x1]
  %v130 = vld [vmem:[%s3 + $0x29] sm:$0x1]
  %vm131 = vcmask 261120
  %v132 = vsel %vm131, %v98, 0.0
  %133 = vadd.xlane.f32.xlu0 %v132
  %v134 = vpop.xlane.xlu0 %133
  %v135 = vsel %vm131, %v25, 0.0
  %136 = vadd.xlane.f32.xlu0 %v135
  %v137 = vpop.xlane.xlu0 %136
  %v138 = vrcp.pop 32.0
  %v139 = vmul.f32 %v134, %v138
  %v140 = vmul.f32 %v137, %v138
  %v141 = vsub.f32 %v98, %v139
  %v142 = vsub.f32 %v25, %v140
  %v143 = vmul.f32 %v141, %v141
  %v144 = vmul.f32 %v142, %v142
  %v145 = vsel %vm131, %v143, 0.0
  %146 = vadd.xlane.f32.xlu0 %v145
  %v147 = vpop.xlane.xlu0 %146
  %v148 = vsel %vm131, %v144, 0.0
  %149 = vadd.xlane.f32.xlu0 %v148
  %v150 = vpop.xlane.xlu0 %149
  %v151 = vmul.f32 %v147, %v138
  %v152 = vmul.f32 %v150, %v138
  %v153 = vadd.f32 %v151, 1e-05
  %v154 = vadd.f32 %v152, 1e-05
  %v155 = vrsqrt.pop %v153
  %v156 = vrsqrt.pop %v154
  %v157 = vmul.f32 %v141, %v155
  %v158 = vmul.f32 %v142, %v156
  %v159 = vlaneseq
  %v160 = vshrl.u32 %v159, 7
  %v161 = vsub.s32 0, %v160
  %v162 = vrot.slane %v129, %v161
  %v163 = vmul.f32 %v157, %v162
  %v164 = vmul.f32 %v158, %v162
  %v165 = vlaneseq
  %v166 = vshrl.u32 %v165, 7
  %v167 = vsub.s32 0, %v166
  %v168 = vrot.slane %v130, %v167
  %v169 = vadd.f32 %v163, %v168
  %v170 = vadd.f32 %v164, %v168
  %v171 = vlaneseq
  %v172 = vshrl.u32 %v171, 7
  %v173 = vsub.s32 0, %v172
  %v174 = vrot.slane %v109, %v173
  %v176 = vsel %vm131, %v169, 0
  %v179 = vsel %vm131, %v170, 0
  %181 = vmatprep.subr.mxu0 0.0
  %182 = vmatpush1.msra.mxu0 %v105
  %183 = vmatprep.subr.mxu0 0.0
  %184 = vmatpush1.msra.mxu0 %v106
  %185 = vmatprep.subr.mxu0 0.0
  %186 = vmatpush1.msra.mxu0 %v107
  %187 = vmatprep.subr.mxu0 0.0
  %188 = vmatpush1.msra.mxu0 %v108
  %189 = vmatprep.subr.mxu0 0.0
  %190 = vmatpush1.msra.mxu0 0.0
  %191 = vmatprep.subr.mxu0 0.0
  %192 = vmatpush1.msra.mxu0 0.0
  %193 = vmatprep.subr.mxu0 0.0
  %194 = vmatpush1.msra.mxu0 0.0
  %195 = vmatprep.subr.mxu0 0.0
  %196 = vmatpush1.msra.mxu0 0.0
  %197 = vmatprep.subr.mxu0 0.0
  %198 = vmatpush1.msra.mxu0 0.0
  %199 = vmatprep.subr.mxu0 0.0
  %200 = vmatpush1.msra.mxu0 0.0
  %201 = vmatprep.subr.mxu0 0.0
  %202 = vmatpush1.msra.mxu0 0.0
  %203 = vmatprep.subr.mxu0 0.0
  %204 = vmatpush1.msra.mxu0 0.0
  %205 = vmatprep.subr.mxu0 0.0
  %206 = vmatpush1.msra.mxu0 0.0
  %207 = vmatprep.subr.mxu0 0.0
  %208 = vmatpush1.msra.mxu0 0.0
  %209 = vmatprep.subr.mxu0 0.0
  %210 = vmatpush1.msra.mxu0 0.0
  %211 = vmatprep.subr.mxu0 0.0
  %212 = vmatpush1.msra.mxu0 0.0
  %213 = vmatprep.subr.mxu0 0.0
  %214 = vmatpush1.msra.mxu0 0.0
  %215 = vmatprep.subr.mxu0 0.0
  %216 = vmatpush1.msra.mxu0 0.0
  %217 = vmatprep.subr.mxu0 0.0
  %218 = vmatpush1.msra.mxu0 0.0
  %219 = vmatprep.subr.mxu0 0.0
  %220 = vmatpush1.msra.mxu0 0.0
  %221 = vmatprep.subr.mxu0 0.0
  %222 = vmatpush1.msra.mxu0 0.0
  %223 = vmatprep.subr.mxu0 0.0
  %224 = vmatpush1.msra.mxu0 0.0
  %225 = vmatprep.subr.mxu0 0.0
  %226 = vmatpush1.msra.mxu0 0.0
  %227 = vmatprep.subr.mxu0 0.0
  %228 = vmatpush1.msra.mxu0 0.0
  %229 = vmatprep.subr.mxu0 0.0
  %230 = vmatpush1.msra.mxu0 0.0
  %231 = vmatprep.subr.mxu0 0.0
  %232 = vmatpush1.msra.mxu0 0.0
  %233 = vmatprep.subr.mxu0 0.0
  %234 = vmatpush1.msra.mxu0 0.0
  %235 = vmatprep.subr.mxu0 0.0
  %236 = vmatpush1.msra.mxu0 0.0
  %237 = vmatprep.subr.mxu0 0.0
  %238 = vmatpush1.msra.mxu0 0.0
  %239 = vmatprep.subr.mxu0 0.0
  %240 = vmatpush1.msra.mxu0 0.0
  %241 = vmatprep.subr.mxu0 0.0
  %242 = vmatpush1.msra.mxu0 0.0
  %243 = vmatprep.subr.mxu0 0.0
  %244 = vmatpush1.msra.mxu0 0.0
  %245 = vmatprep.mubr.f32.mxu0 0.0
  %246 = vmatmul.mubr.f32.gmra.mrb[0].mxu0 %v176
  %v247 = vpop.f32.mrb[0].mxu0
  %v248 = vadd.f32 %v174, %v247
  %v249 = vpop.f32.mrb[0].mxu0
  %250 = vmatprep.mubr.f32.mxu0 0.0
  %251 = vmatmul.mubr.f32.gmra.mrb[0].mxu0 %v179
  %v252 = vpop.f32.mrb[0].mxu0
  %v253 = vadd.f32 %v174, %v252
  %v254 = vpop.f32.mrb[0].mxu0
  %255 = vdwg.mxu0
  %v258 = vlaneseq
  %v259 = vshrl.u32 %v258, 7
  %v260 = vsub.s32 0, %v259
  %v261 = vrot.slane %v103, %v260
  %v262 = vlaneseq
  %v263 = vshrl.u32 %v262, 7
  %v264 = vsub.s32 0, %v263
  %v265 = vrot.slane %v104, %v264
  %266 = vrot.lane.b32.xlu0 %v261, 32
  %v267 = vpop.permute.xlu0 %266
  %268 = vrot.lane.b32.xlu0 %v265, 32
  %v269 = vpop.permute.xlu0 %268
  %v272 = vmul.f32 %v248, %v267
  %v273 = vmul.f32 %v253, %v267
  %v274 = vmul.f32 %v248, %v269
  %v275 = vmul.f32 %v253, %v269
  %276 = vrot.lane.b32.xlu0 %v261, 64
  %v277 = vpop.permute.xlu0 %276
  %278 = vrot.lane.b32.xlu0 %v265, 64
  %v279 = vpop.permute.xlu0 %278
  %v282 = vmul.f32 %v248, %v277
  %v283 = vmul.f32 %v253, %v277
  %v284 = vmul.f32 %v248, %v279
  %v285 = vmul.f32 %v253, %v279
  %288 = vrot.lane.b32.xlu0 %v272, 96
  %v289 = vpop.permute.xlu0 %288
  %290 = vrot.lane.b32.xlu0 %v273, 96
  %v291 = vpop.permute.xlu0 %290
  %v293 = vsel %vm131, %v248, 0
  %v296 = vsel %vm131, %v253, 0
  %v298 = vsel %vm131, %v289, 0
  %v300 = vsel %vm131, %v291, 0
  %302 = vmatprep.subr.mxu0 0.0
  %303 = vmatpush1.xpose.msra.mxu0 %v298
  %304 = vmatprep.subr.mxu0 0.0
  %305 = vmatpush1.xpose.msra.mxu0 %v300
  %306 = vmatprep.subr.mxu0 0.0
  %307 = vmatpush1.xpose.msra.mxu0 0.0
  %308 = vmatprep.subr.mxu0 0.0
  %309 = vmatpush1.xpose.msra.mxu0 0.0
  %310 = vmatprep.subr.mxu0 0.0
  %311 = vmatpush1.xpose.msra.mxu0 0.0
  %312 = vmatprep.subr.mxu0 0.0
  %313 = vmatpush1.xpose.msra.mxu0 0.0
  %314 = vmatprep.subr.mxu0 0.0
  %315 = vmatpush1.xpose.msra.mxu0 0.0
  %316 = vmatprep.subr.mxu0 0.0
  %317 = vmatpush1.xpose.msra.mxu0 0.0
  %318 = vmatprep.subr.mxu0 0.0
  %319 = vmatpush1.xpose.msra.mxu0 0.0
  %320 = vmatprep.subr.mxu0 0.0
  %321 = vmatpush1.xpose.msra.mxu0 0.0
  %322 = vmatprep.subr.mxu0 0.0
  %323 = vmatpush1.xpose.msra.mxu0 0.0
  %324 = vmatprep.subr.mxu0 0.0
  %325 = vmatpush1.xpose.msra.mxu0 0.0
  %326 = vmatprep.subr.mxu0 0.0
  %327 = vmatpush1.xpose.msra.mxu0 0.0
  %328 = vmatprep.subr.mxu0 0.0
  %329 = vmatpush1.xpose.msra.mxu0 0.0
  %330 = vmatprep.subr.mxu0 0.0
  %331 = vmatpush1.xpose.msra.mxu0 0.0
  %332 = vmatprep.subr.mxu0 0.0
  %333 = vmatpush1.xpose.msra.mxu0 0.0
  %334 = vmatprep.subr.mxu0 0.0
  %335 = vmatpush1.xpose.msra.mxu0 0.0
  %336 = vmatprep.subr.mxu0 0.0
  %337 = vmatpush1.xpose.msra.mxu0 0.0
  %338 = vmatprep.subr.mxu0 0.0
  %339 = vmatpush1.xpose.msra.mxu0 0.0
  %340 = vmatprep.subr.mxu0 0.0
  %341 = vmatpush1.xpose.msra.mxu0 0.0
  %342 = vmatprep.subr.mxu0 0.0
  %343 = vmatpush1.xpose.msra.mxu0 0.0
  %344 = vmatprep.subr.mxu0 0.0
  %345 = vmatpush1.xpose.msra.mxu0 0.0
  %346 = vmatprep.subr.mxu0 0.0
  %347 = vmatpush1.xpose.msra.mxu0 0.0
  %348 = vmatprep.subr.mxu0 0.0
  %349 = vmatpush1.xpose.msra.mxu0 0.0
  %350 = vmatprep.subr.mxu0 0.0
  %351 = vmatpush1.xpose.msra.mxu0 0.0
  %352 = vmatprep.subr.mxu0 0.0
  %353 = vmatpush1.xpose.msra.mxu0 0.0
  %354 = vmatprep.subr.mxu0 0.0
  %355 = vmatpush1.xpose.msra.mxu0 0.0
  %356 = vmatprep.subr.mxu0 0.0
  %357 = vmatpush1.xpose.msra.mxu0 0.0
  %358 = vmatprep.subr.mxu0 0.0
  %359 = vmatpush1.xpose.msra.mxu0 0.0
  %360 = vmatprep.subr.mxu0 0.0
  %361 = vmatpush1.xpose.msra.mxu0 0.0
  %362 = vmatprep.subr.mxu0 0.0
  %363 = vmatpush1.xpose.msra.mxu0 0.0
  %364 = vmatprep.subr.mxu0 0.0
  %365 = vmatpush1.xpose.msra.mxu0 0.0
  %366 = vmatprep.mubr.f32.mxu0 0.0
  %367 = vmatmul.mubr.f32.gmra.mrb[0].mxu0 %v293
  %v368 = vpop.f32.mrb[0].mxu0
  %v369 = vadd.f32 0.0, %v368
  %v370 = vpop.f32.mrb[0].mxu0
  %371 = vmatprep.mubr.f32.mxu0 0.0
  %372 = vmatmul.mubr.f32.gmra.mrb[0].mxu0 %v296
  %v373 = vpop.f32.mrb[0].mxu0
  %v374 = vadd.f32 0.0, %v373
  %v375 = vpop.f32.mrb[0].mxu0
  %376 = vdwg.mxu0
  %379 = vrot.lane.b32.xlu0 %v274, 96
  %v380 = vpop.permute.xlu0 %379
  %381 = vrot.lane.b32.xlu0 %v275, 96
  %v382 = vpop.permute.xlu0 %381
  %v383 = vsel %vm131, %v380, 0
  %v385 = vsel %vm131, %v382, 0
  %387 = vmatprep.subr.mxu0 0.0
  %388 = vmatpush1.xpose.msra.mxu0 %v383
  %389 = vmatprep.subr.mxu0 0.0
  %390 = vmatpush1.xpose.msra.mxu0 %v385
  %391 = vmatprep.subr.mxu0 0.0
  %392 = vmatpush1.xpose.msra.mxu0 0.0
  %393 = vmatprep.subr.mxu0 0.0
  %394 = vmatpush1.xpose.msra.mxu0 0.0
  %395 = vmatprep.subr.mxu0 0.0
  %396 = vmatpush1.xpose.msra.mxu0 0.0
  %397 = vmatprep.subr.mxu0 0.0
  %398 = vmatpush1.xpose.msra.mxu0 0.0
  %399 = vmatprep.subr.mxu0 0.0
  %400 = vmatpush1.xpose.msra.mxu0 0.0
  %401 = vmatprep.subr.mxu0 0.0
  %402 = vmatpush1.xpose.msra.mxu0 0.0
  %403 = vmatprep.subr.mxu0 0.0
  %404 = vmatpush1.xpose.msra.mxu0 0.0
  %405 = vmatprep.subr.mxu0 0.0
  %406 = vmatpush1.xpose.msra.mxu0 0.0
  %407 = vmatprep.subr.mxu0 0.0
  %408 = vmatpush1.xpose.msra.mxu0 0.0
  %409 = vmatprep.subr.mxu0 0.0
  %410 = vmatpush1.xpose.msra.mxu0 0.0
  %411 = vmatprep.subr.mxu0 0.0
  %412 = vmatpush1.xpose.msra.mxu0 0.0
  %413 = vmatprep.subr.mxu0 0.0
  %414 = vmatpush1.xpose.msra.mxu0 0.0
  %415 = vmatprep.subr.mxu0 0.0
  %416 = vmatpush1.xpose.msra.mxu0 0.0
  %417 = vmatprep.subr.mxu0 0.0
  %418 = vmatpush1.xpose.msra.mxu0 0.0
  %419 = vmatprep.subr.mxu0 0.0
  %420 = vmatpush1.xpose.msra.mxu0 0.0
  %421 = vmatprep.subr.mxu0 0.0
  %422 = vmatpush1.xpose.msra.mxu0 0.0
  %423 = vmatprep.subr.mxu0 0.0
  %424 = vmatpush1.xpose.msra.mxu0 0.0
  %425 = vmatprep.subr.mxu0 0.0
  %426 = vmatpush1.xpose.msra.mxu0 0.0
  %427 = vmatprep.subr.mxu0 0.0
  %428 = vmatpush1.xpose.msra.mxu0 0.0
  %429 = vmatprep.subr.mxu0 0.0
  %430 = vmatpush1.xpose.msra.mxu0 0.0
  %431 = vmatprep.subr.mxu0 0.0
  %432 = vmatpush1.xpose.msra.mxu0 0.0
  %433 = vmatprep.subr.mxu0 0.0
  %434 = vmatpush1.xpose.msra.mxu0 0.0
  %435 = vmatprep.subr.mxu0 0.0
  %436 = vmatpush1.xpose.msra.mxu0 0.0
  %437 = vmatprep.subr.mxu0 0.0
  %438 = vmatpush1.xpose.msra.mxu0 0.0
  %439 = vmatprep.subr.mxu0 0.0
  %440 = vmatpush1.xpose.msra.mxu0 0.0
  %441 = vmatprep.subr.mxu0 0.0
  %442 = vmatpush1.xpose.msra.mxu0 0.0
  %443 = vmatprep.subr.mxu0 0.0
  %444 = vmatpush1.xpose.msra.mxu0 0.0
  %445 = vmatprep.subr.mxu0 0.0
  %446 = vmatpush1.xpose.msra.mxu0 0.0
  %447 = vmatprep.subr.mxu0 0.0
  %448 = vmatpush1.xpose.msra.mxu0 0.0
  %449 = vmatprep.subr.mxu0 0.0
  %450 = vmatpush1.xpose.msra.mxu0 0.0
  %451 = vmatprep.mubr.f32.mxu0 0.0
  %452 = vmatmul.mubr.f32.gmra.mrb[0].mxu0 %v293
  %v453 = vpop.f32.mrb[0].mxu0
  %v454 = vadd.f32 0.0, %v453
  %v455 = vpop.f32.mrb[0].mxu0
  %456 = vmatprep.mubr.f32.mxu0 0.0
  %457 = vmatmul.mubr.f32.gmra.mrb[0].mxu0 %v296
  %v458 = vpop.f32.mrb[0].mxu0
  %v459 = vadd.f32 0.0, %v458
  %v460 = vpop.f32.mrb[0].mxu0
  %461 = vdwg.mxu0
  %v462 = vmul.f32 %v369, 0.25
  %v463 = vmul.f32 %v374, 0.25
  %v464 = vmul.f32 %v454, 0.25
  %v465 = vmul.f32 %v459, 0.25
  %v466 = vadd.f32 %v462, %v101
  %v467 = vadd.f32 %v463, %v102
  %v468 = vadd.f32 %v464, %v101
  %v469 = vadd.f32 %v465, %v102
  %vm470 = vcmask 130048
  %v471 = vsel %vm470, %v466, -inf
  %472 = vmax.xlane.f32.xlu0 %v471
  %v473 = vpop.xlane.xlu0 %472
  %v474 = vsel %vm470, %v467, -inf
  %475 = vmax.xlane.f32.xlu0 %v474
  %v476 = vpop.xlane.xlu0 %475
  %v477 = vsel %vm470, %v468, -inf
  %478 = vmax.xlane.f32.xlu0 %v477
  %v479 = vpop.xlane.xlu0 %478
  %v480 = vsel %vm470, %v469, -inf
  %481 = vmax.xlane.f32.xlu0 %v480
  %v482 = vpop.xlane.xlu0 %481
  %v483 = vsub.f32 %v466, %v473
  %v484 = vsub.f32 %v467, %v476
  %v485 = vsub.f32 %v468, %v479
  %v486 = vsub.f32 %v469, %v482
  %v487 = vmul.f32 %v483, 1.442695
  %v488 = vpow.pop %v487
  %v489 = vmul.f32 %v484, 1.442695
  %v490 = vpow.pop %v489
  %v491 = vmul.f32 %v485, 1.442695
  %v492 = vpow.pop %v491
  %v493 = vmul.f32 %v486, 1.442695
  %v494 = vpow.pop %v493
  %v495 = vsel %vm470, %v488, 0.0
  %496 = vadd.xlane.f32.xlu0 %v495
  %v497 = vpop.xlane.xlu0 %496
  %v498 = vsel %vm470, %v490, 0.0
  %499 = vadd.xlane.f32.xlu0 %v498
  %v500 = vpop.xlane.xlu0 %499
  %v501 = vsel %vm470, %v492, 0.0
  %502 = vadd.xlane.f32.xlu0 %v501
  %v503 = vpop.xlane.xlu0 %502
  %v504 = vsel %vm470, %v494, 0.0
  %505 = vadd.xlane.f32.xlu0 %v504
  %v506 = vpop.xlane.xlu0 %505
  %v507 = vrcp.pop %v497
  %v508 = vrcp.pop %v500
  %v509 = vrcp.pop %v503
  %v510 = vrcp.pop %v506
  %v511 = vmul.f32 %v488, %v507
  %v512 = vmul.f32 %v490, %v508
  %v513 = vmul.f32 %v492, %v509
  %v514 = vmul.f32 %v494, %v510
  %517 = vrot.lane.b32.xlu0 %v282, 64
  %v518 = vpop.permute.xlu0 %517
  %519 = vrot.lane.b32.xlu0 %v283, 64
  %v520 = vpop.permute.xlu0 %519
  %v524 = vsel %vm470, %v511, 0
  %v527 = vsel %vm470, %v512, 0
  %529 = vmatprep.subr.mxu0 0.0
  %530 = vmatpush1.msra.mxu0 %v518
  %531 = vmatprep.subr.mxu0 0.0
  %532 = vmatpush1.msra.mxu0 %v520
  %533 = vmatprep.subr.mxu0 0.0
  %534 = vmatpush1.msra.mxu0 0.0
  %535 = vmatprep.subr.mxu0 0.0
  %536 = vmatpush1.msra.mxu0 0.0
  %537 = vmatprep.subr.mxu0 0.0
  %538 = vmatpush1.msra.mxu0 0.0
  %539 = vmatprep.subr.mxu0 0.0
  %540 = vmatpush1.msra.mxu0 0.0
  %541 = vmatprep.subr.mxu0 0.0
  %542 = vmatpush1.msra.mxu0 0.0
  %543 = vmatprep.subr.mxu0 0.0
  %544 = vmatpush1.msra.mxu0 0.0
  %545 = vmatprep.subr.mxu0 0.0
  %546 = vmatpush1.msra.mxu0 0.0
  %547 = vmatprep.subr.mxu0 0.0
  %548 = vmatpush1.msra.mxu0 0.0
  %549 = vmatprep.subr.mxu0 0.0
  %550 = vmatpush1.msra.mxu0 0.0
  %551 = vmatprep.subr.mxu0 0.0
  %552 = vmatpush1.msra.mxu0 0.0
  %553 = vmatprep.subr.mxu0 0.0
  %554 = vmatpush1.msra.mxu0 0.0
  %555 = vmatprep.subr.mxu0 0.0
  %556 = vmatpush1.msra.mxu0 0.0
  %557 = vmatprep.subr.mxu0 0.0
  %558 = vmatpush1.msra.mxu0 0.0
  %559 = vmatprep.subr.mxu0 0.0
  %560 = vmatpush1.msra.mxu0 0.0
  %561 = vmatprep.subr.mxu0 0.0
  %562 = vmatpush1.msra.mxu0 0.0
  %563 = vmatprep.subr.mxu0 0.0
  %564 = vmatpush1.msra.mxu0 0.0
  %565 = vmatprep.subr.mxu0 0.0
  %566 = vmatpush1.msra.mxu0 0.0
  %567 = vmatprep.subr.mxu0 0.0
  %568 = vmatpush1.msra.mxu0 0.0
  %569 = vmatprep.subr.mxu0 0.0
  %570 = vmatpush1.msra.mxu0 0.0
  %571 = vmatprep.subr.mxu0 0.0
  %572 = vmatpush1.msra.mxu0 0.0
  %573 = vmatprep.subr.mxu0 0.0
  %574 = vmatpush1.msra.mxu0 0.0
  %575 = vmatprep.subr.mxu0 0.0
  %576 = vmatpush1.msra.mxu0 0.0
  %577 = vmatprep.subr.mxu0 0.0
  %578 = vmatpush1.msra.mxu0 0.0
  %579 = vmatprep.subr.mxu0 0.0
  %580 = vmatpush1.msra.mxu0 0.0
  %581 = vmatprep.subr.mxu0 0.0
  %582 = vmatpush1.msra.mxu0 0.0
  %583 = vmatprep.subr.mxu0 0.0
  %584 = vmatpush1.msra.mxu0 0.0
  %585 = vmatprep.subr.mxu0 0.0
  %586 = vmatpush1.msra.mxu0 0.0
  %587 = vmatprep.subr.mxu0 0.0
  %588 = vmatpush1.msra.mxu0 0.0
  %589 = vmatprep.subr.mxu0 0.0
  %590 = vmatpush1.msra.mxu0 0.0
  %591 = vmatprep.subr.mxu0 0.0
  %592 = vmatpush1.msra.mxu0 0.0
  %593 = vmatprep.mubr.f32.mxu0 0.0
  %594 = vmatmul.mubr.f32.gmra.mrb[0].mxu0 %v524
  %v595 = vpop.f32.mrb[0].mxu0
  %v596 = vadd.f32 0.0, %v595
  %v597 = vpop.f32.mrb[0].mxu0
  %598 = vmatprep.mubr.f32.mxu0 0.0
  %599 = vmatmul.mubr.f32.gmra.mrb[0].mxu0 %v527
  %v600 = vpop.f32.mrb[0].mxu0
  %v601 = vadd.f32 0.0, %v600
  %v602 = vpop.f32.mrb[0].mxu0
  %603 = vdwg.mxu0
  %606 = vrot.lane.b32.xlu0 %v284, 64
  %v607 = vpop.permute.xlu0 %606
  %608 = vrot.lane.b32.xlu0 %v285, 64
  %v609 = vpop.permute.xlu0 %608
  %v613 = vsel %vm470, %v513, 0
  %v616 = vsel %vm470, %v514, 0
  %618 = vmatprep.subr.mxu0 0.0
  %619 = vmatpush1.msra.mxu0 %v607
  %620 = vmatprep.subr.mxu0 0.0
  %621 = vmatpush1.msra.mxu0 %v609
  %622 = vmatprep.subr.mxu0 0.0
  %623 = vmatpush1.msra.mxu0 0.0
  %624 = vmatprep.subr.mxu0 0.0
  %625 = vmatpush1.msra.mxu0 0.0
  %626 = vmatprep.subr.mxu0 0.0
  %627 = vmatpush1.msra.mxu0 0.0
  %628 = vmatprep.subr.mxu0 0.0
  %629 = vmatpush1.msra.mxu0 0.0
  %630 = vmatprep.subr.mxu0 0.0
  %631 = vmatpush1.msra.mxu0 0.0
  %632 = vmatprep.subr.mxu0 0.0
  %633 = vmatpush1.msra.mxu0 0.0
  %634 = vmatprep.subr.mxu0 0.0
  %635 = vmatpush1.msra.mxu0 0.0
  %636 = vmatprep.subr.mxu0 0.0
  %637 = vmatpush1.msra.mxu0 0.0
  %638 = vmatprep.subr.mxu0 0.0
  %639 = vmatpush1.msra.mxu0 0.0
  %640 = vmatprep.subr.mxu0 0.0
  %641 = vmatpush1.msra.mxu0 0.0
  %642 = vmatprep.subr.mxu0 0.0
  %643 = vmatpush1.msra.mxu0 0.0
  %644 = vmatprep.subr.mxu0 0.0
  %645 = vmatpush1.msra.mxu0 0.0
  %646 = vmatprep.subr.mxu0 0.0
  %647 = vmatpush1.msra.mxu0 0.0
  %648 = vmatprep.subr.mxu0 0.0
  %649 = vmatpush1.msra.mxu0 0.0
  %650 = vmatprep.subr.mxu0 0.0
  %651 = vmatpush1.msra.mxu0 0.0
  %652 = vmatprep.subr.mxu0 0.0
  %653 = vmatpush1.msra.mxu0 0.0
  %654 = vmatprep.subr.mxu0 0.0
  %655 = vmatpush1.msra.mxu0 0.0
  %656 = vmatprep.subr.mxu0 0.0
  %657 = vmatpush1.msra.mxu0 0.0
  %658 = vmatprep.subr.mxu0 0.0
  %659 = vmatpush1.msra.mxu0 0.0
  %660 = vmatprep.subr.mxu0 0.0
  %661 = vmatpush1.msra.mxu0 0.0
  %662 = vmatprep.subr.mxu0 0.0
  %663 = vmatpush1.msra.mxu0 0.0
  %664 = vmatprep.subr.mxu0 0.0
  %665 = vmatpush1.msra.mxu0 0.0
  %666 = vmatprep.subr.mxu0 0.0
  %667 = vmatpush1.msra.mxu0 0.0
  %668 = vmatprep.subr.mxu0 0.0
  %669 = vmatpush1.msra.mxu0 0.0
  %670 = vmatprep.subr.mxu0 0.0
  %671 = vmatpush1.msra.mxu0 0.0
  %672 = vmatprep.subr.mxu0 0.0
  %673 = vmatpush1.msra.mxu0 0.0
  %674 = vmatprep.subr.mxu0 0.0
  %675 = vmatpush1.msra.mxu0 0.0
  %676 = vmatprep.subr.mxu0 0.0
  %677 = vmatpush1.msra.mxu0 0.0
  %678 = vmatprep.subr.mxu0 0.0
  %679 = vmatpush1.msra.mxu0 0.0
  %680 = vmatprep.subr.mxu0 0.0
  %681 = vmatpush1.msra.mxu0 0.0
  %682 = vmatprep.mubr.f32.mxu0 0.0
  %683 = vmatmul.mubr.f32.gmra.mrb[0].mxu0 %v613
  %v684 = vpop.f32.mrb[0].mxu0
  %v685 = vadd.f32 0.0, %v684
  %v686 = vpop.f32.mrb[0].mxu0
  %687 = vmatprep.mubr.f32.mxu0 0.0
  %688 = vmatmul.mubr.f32.gmra.mrb[0].mxu0 %v616
  %v689 = vpop.f32.mrb[0].mxu0
  %v690 = vadd.f32 0.0, %v689
  %v691 = vpop.f32.mrb[0].mxu0
  %692 = vdwg.mxu0
  %v693 = vsel %vm131, %v596, 0.0
  %v694 = vsel %vm131, %v685, 0.0
  %v695 = vadd.f32 %v693, %v694
  %v696 = vsel %vm131, %v601, 0.0
  %v697 = vsel %vm131, %v690, 0.0
  %v698 = vadd.f32 %v696, %v697
  %v700 = vsel %vm131, %v695, 0
  %v703 = vsel %vm131, %v698, 0
  %705 = vmatprep.subr.mxu0 0.0
  %706 = vmatpush1.msra.mxu0 %v110
  %707 = vmatprep.subr.mxu0 0.0
  %708 = vmatpush1.msra.mxu0 %v111
  %709 = vmatprep.subr.mxu0 0.0
  %710 = vmatpush1.msra.mxu0 %v112
  %711 = vmatprep.subr.mxu0 0.0
  %712 = vmatpush1.msra.mxu0 %v113
  %713 = vmatprep.subr.mxu0 0.0
  %714 = vmatpush1.msra.mxu0 0.0
  %715 = vmatprep.subr.mxu0 0.0
  %716 = vmatpush1.msra.mxu0 0.0
  %717 = vmatprep.subr.mxu0 0.0
  %718 = vmatpush1.msra.mxu0 0.0
  %719 = vmatprep.subr.mxu0 0.0
  %720 = vmatpush1.msra.mxu0 0.0
  %721 = vmatprep.subr.mxu0 0.0
  %722 = vmatpush1.msra.mxu0 0.0
  %723 = vmatprep.subr.mxu0 0.0
  %724 = vmatpush1.msra.mxu0 0.0
  %725 = vmatprep.subr.mxu0 0.0
  %726 = vmatpush1.msra.mxu0 0.0
  %727 = vmatprep.subr.mxu0 0.0
  %728 = vmatpush1.msra.mxu0 0.0
  %729 = vmatprep.subr.mxu0 0.0
  %730 = vmatpush1.msra.mxu0 0.0
  %731 = vmatprep.subr.mxu0 0.0
  %732 = vmatpush1.msra.mxu0 0.0
  %733 = vmatprep.subr.mxu0 0.0
  %734 = vmatpush1.msra.mxu0 0.0
  %735 = vmatprep.subr.mxu0 0.0
  %736 = vmatpush1.msra.mxu0 0.0
  %737 = vmatprep.subr.mxu0 0.0
  %738 = vmatpush1.msra.mxu0 0.0
  %739 = vmatprep.subr.mxu0 0.0
  %740 = vmatpush1.msra.mxu0 0.0
  %741 = vmatprep.subr.mxu0 0.0
  %742 = vmatpush1.msra.mxu0 0.0
  %743 = vmatprep.subr.mxu0 0.0
  %744 = vmatpush1.msra.mxu0 0.0
  %745 = vmatprep.subr.mxu0 0.0
  %746 = vmatpush1.msra.mxu0 0.0
  %747 = vmatprep.subr.mxu0 0.0
  %748 = vmatpush1.msra.mxu0 0.0
  %749 = vmatprep.subr.mxu0 0.0
  %750 = vmatpush1.msra.mxu0 0.0
  %751 = vmatprep.subr.mxu0 0.0
  %752 = vmatpush1.msra.mxu0 0.0
  %753 = vmatprep.subr.mxu0 0.0
  %754 = vmatpush1.msra.mxu0 0.0
  %755 = vmatprep.subr.mxu0 0.0
  %756 = vmatpush1.msra.mxu0 0.0
  %757 = vmatprep.subr.mxu0 0.0
  %758 = vmatpush1.msra.mxu0 0.0
  %759 = vmatprep.subr.mxu0 0.0
  %760 = vmatpush1.msra.mxu0 0.0
  %761 = vmatprep.subr.mxu0 0.0
  %762 = vmatpush1.msra.mxu0 0.0
  %763 = vmatprep.subr.mxu0 0.0
  %764 = vmatpush1.msra.mxu0 0.0
  %765 = vmatprep.subr.mxu0 0.0
  %766 = vmatpush1.msra.mxu0 0.0
  %767 = vmatprep.subr.mxu0 0.0
  %768 = vmatpush1.msra.mxu0 0.0
  %769 = vmatprep.mubr.f32.mxu0 0.0
  %770 = vmatmul.mubr.f32.gmra.mrb[0].mxu0 %v700
  %v771 = vpop.f32.mrb[0].mxu0
  %v772 = vadd.f32 0.0, %v771
  %v773 = vpop.f32.mrb[0].mxu0
  %774 = vmatprep.mubr.f32.mxu0 0.0
  %775 = vmatmul.mubr.f32.gmra.mrb[0].mxu0 %v703
  %v776 = vpop.f32.mrb[0].mxu0
  %v777 = vadd.f32 0.0, %v776
  %v778 = vpop.f32.mrb[0].mxu0
  %779 = vdwg.mxu0
  %v780 = vadd.f32 %v98, %v772
  %v781 = vadd.f32 %v25, %v777
  %v782 = vlaneseq
  %v783 = vshrl.u32 %v782, 7
  %v784 = vsub.s32 0, %v783
  %v785 = vrot.slane %v114, %v784
  %v786 = vadd.f32 %v780, %v785
  %v787 = vadd.f32 %v781, %v785
  %v788 = vld [vmem:[%s3 + $0x2a] sm:$0x1]
  %v789 = vld [vmem:[%s3 + $0x2b] sm:$0x1]
  %v790 = vsel %vm131, %v786, 0.0
  %791 = vadd.xlane.f32.xlu0 %v790
  %v792 = vpop.xlane.xlu0 %791
  %v793 = vsel %vm131, %v787, 0.0
  %794 = vadd.xlane.f32.xlu0 %v793
  %v795 = vpop.xlane.xlu0 %794
  %v796 = vmul.f32 %v792, %v138
  %v797 = vmul.f32 %v795, %v138
  %v798 = vsub.f32 %v786, %v796
  %v799 = vsub.f32 %v787, %v797
  %v800 = vmul.f32 %v798, %v798
  %v801 = vmul.f32 %v799, %v799
  %v802 = vsel %vm131, %v800, 0.0
  %803 = vadd.xlane.f32.xlu0 %v802
  %v804 = vpop.xlane.xlu0 %803
  %v805 = vsel %vm131, %v801, 0.0
  %806 = vadd.xlane.f32.xlu0 %v805
  %v807 = vpop.xlane.xlu0 %806
  %v808 = vmul.f32 %v804, %v138
  %v809 = vmul.f32 %v807, %v138
  %v810 = vadd.f32 %v808, 1e-05
  %v811 = vadd.f32 %v809, 1e-05
  %v812 = vrsqrt.pop %v810
  %v813 = vrsqrt.pop %v811
  %v814 = vmul.f32 %v798, %v812
  %v815 = vmul.f32 %v799, %v813
  %v816 = vlaneseq
  %v817 = vshrl.u32 %v816, 7
  %v818 = vsub.s32 0, %v817
  %v819 = vrot.slane %v788, %v818
  %v820 = vmul.f32 %v814, %v819
  %v821 = vmul.f32 %v815, %v819
  %v822 = vlaneseq
  %v823 = vshrl.u32 %v822, 7
  %v824 = vsub.s32 0, %v823
  %v825 = vrot.slane %v789, %v824
  %v826 = vadd.f32 %v820, %v825
  %v827 = vadd.f32 %v821, %v825
  %v828 = vlaneseq
  %v829 = vshrl.u32 %v828, 7
  %v830 = vsub.s32 0, %v829
  %v831 = vrot.slane %v119, %v830
  %v833 = vsel %vm131, %v826, 0
  %v836 = vsel %vm131, %v827, 0
  %838 = vmatprep.subr.mxu0 0.0
  %839 = vmatpush1.msra.mxu0 %v115
  %840 = vmatprep.subr.mxu0 0.0
  %841 = vmatpush1.msra.mxu0 %v116
  %842 = vmatprep.subr.mxu0 0.0
  %843 = vmatpush1.msra.mxu0 %v117
  %844 = vmatprep.subr.mxu0 0.0
  %845 = vmatpush1.msra.mxu0 %v118
  %846 = vmatprep.subr.mxu0 0.0
  %847 = vmatpush1.msra.mxu0 0.0
  %848 = vmatprep.subr.mxu0 0.0
  %849 = vmatpush1.msra.mxu0 0.0
  %850 = vmatprep.subr.mxu0 0.0
  %851 = vmatpush1.msra.mxu0 0.0
  %852 = vmatprep.subr.mxu0 0.0
  %853 = vmatpush1.msra.mxu0 0.0
  %854 = vmatprep.subr.mxu0 0.0
  %855 = vmatpush1.msra.mxu0 0.0
  %856 = vmatprep.subr.mxu0 0.0
  %857 = vmatpush1.msra.mxu0 0.0
  %858 = vmatprep.subr.mxu0 0.0
  %859 = vmatpush1.msra.mxu0 0.0
  %860 = vmatprep.subr.mxu0 0.0
  %861 = vmatpush1.msra.mxu0 0.0
  %862 = vmatprep.subr.mxu0 0.0
  %863 = vmatpush1.msra.mxu0 0.0
  %864 = vmatprep.subr.mxu0 0.0
  %865 = vmatpush1.msra.mxu0 0.0
  %866 = vmatprep.subr.mxu0 0.0
  %867 = vmatpush1.msra.mxu0 0.0
  %868 = vmatprep.subr.mxu0 0.0
  %869 = vmatpush1.msra.mxu0 0.0
  %870 = vmatprep.subr.mxu0 0.0
  %871 = vmatpush1.msra.mxu0 0.0
  %872 = vmatprep.subr.mxu0 0.0
  %873 = vmatpush1.msra.mxu0 0.0
  %874 = vmatprep.subr.mxu0 0.0
  %875 = vmatpush1.msra.mxu0 0.0
  %876 = vmatprep.subr.mxu0 0.0
  %877 = vmatpush1.msra.mxu0 0.0
  %878 = vmatprep.subr.mxu0 0.0
  %879 = vmatpush1.msra.mxu0 0.0
  %880 = vmatprep.subr.mxu0 0.0
  %881 = vmatpush1.msra.mxu0 0.0
  %882 = vmatprep.subr.mxu0 0.0
  %883 = vmatpush1.msra.mxu0 0.0
  %884 = vmatprep.subr.mxu0 0.0
  %885 = vmatpush1.msra.mxu0 0.0
  %886 = vmatprep.subr.mxu0 0.0
  %887 = vmatpush1.msra.mxu0 0.0
  %888 = vmatprep.subr.mxu0 0.0
  %889 = vmatpush1.msra.mxu0 0.0
  %890 = vmatprep.subr.mxu0 0.0
  %891 = vmatpush1.msra.mxu0 0.0
  %892 = vmatprep.subr.mxu0 0.0
  %893 = vmatpush1.msra.mxu0 0.0
  %894 = vmatprep.subr.mxu0 0.0
  %895 = vmatpush1.msra.mxu0 0.0
  %896 = vmatprep.subr.mxu0 0.0
  %897 = vmatpush1.msra.mxu0 0.0
  %898 = vmatprep.subr.mxu0 0.0
  %899 = vmatpush1.msra.mxu0 0.0
  %900 = vmatprep.subr.mxu0 0.0
  %901 = vmatpush1.msra.mxu0 0.0
  %902 = vmatprep.mubr.f32.mxu0 0.0
  %903 = vmatmul.mubr.f32.gmra.mrb[0].mxu0 %v833
  %v904 = vpop.f32.mrb[0].mxu0
  %v905 = vadd.f32 %v831, %v904
  %v906 = vpop.f32.mrb[0].mxu0
  %907 = vmatprep.mubr.f32.mxu0 0.0
  %908 = vmatmul.mubr.f32.gmra.mrb[0].mxu0 %v836
  %v909 = vpop.f32.mrb[0].mxu0
  %v910 = vadd.f32 %v831, %v909
  %v911 = vpop.f32.mrb[0].mxu0
  %912 = vdwg.mxu0
  %v913 = vmul.f32 %v905, %v905
  %v914 = vmul.f32 %v910, %v910
  %v915 = vmul.f32 %v905, %v913
  %v916 = vmul.f32 %v910, %v914
  %v917 = vmul.f32 %v915, 0.044715
  %v918 = vmul.f32 %v916, 0.044715
  %v919 = vadd.f32 %v905, %v917
  %v920 = vadd.f32 %v910, %v918
  %v921 = vmul.f32 %v919, 0.7978846
  %v922 = vmul.f32 %v920, 0.7978846
  %v923 = vtanh.pop %v921
  %v924 = vtanh.pop %v922
  %v925 = vadd.f32 %v923, 1.0
  %v926 = vadd.f32 %v924, 1.0
  %v927 = vmul.f32 %v925, 0.5
  %v928 = vmul.f32 %v926, 0.5
  %v929 = vmul.f32 %v905, %v927
  %v930 = vmul.f32 %v910, %v928
  %vm931 = vcmask 523264
  %v933 = vsel %vm931, %v929, 0
  %v936 = vsel %vm931, %v930, 0
  %938 = vmatprep.subr.mxu0 0.0
  %939 = vmatpush1.msra.mxu0 %v120
  %940 = vmatprep.subr.mxu0 0.0
  %941 = vmatpush1.msra.mxu0 %v121
  %942 = vmatprep.subr.mxu0 0.0
  %943 = vmatpush1.msra.mxu0 %v122
  %944 = vmatprep.subr.mxu0 0.0
  %945 = vmatpush1.msra.mxu0 %v123
  %946 = vmatprep.subr.mxu0 0.0
  %947 = vmatpush1.msra.mxu0 %v124
  %948 = vmatprep.subr.mxu0 0.0
  %949 = vmatpush1.msra.mxu0 %v125
  %950 = vmatprep.subr.mxu0 0.0
  %951 = vmatpush1.msra.mxu0 %v126
  %952 = vmatprep.subr.mxu0 0.0
  %953 = vmatpush1.msra.mxu0 %v127
  %954 = vmatprep.subr.mxu0 0.0
  %955 = vmatpush1.msra.mxu0 0.0
  %956 = vmatprep.subr.mxu0 0.0
  %957 = vmatpush1.msra.mxu0 0.0
  %958 = vmatprep.subr.mxu0 0.0
  %959 = vmatpush1.msra.mxu0 0.0
  %960 = vmatprep.subr.mxu0 0.0
  %961 = vmatpush1.msra.mxu0 0.0
  %962 = vmatprep.subr.mxu0 0.0
  %963 = vmatpush1.msra.mxu0 0.0
  %964 = vmatprep.subr.mxu0 0.0
  %965 = vmatpush1.msra.mxu0 0.0
  %966 = vmatprep.subr.mxu0 0.0
  %967 = vmatpush1.msra.mxu0 0.0
  %968 = vmatprep.subr.mxu0 0.0
  %969 = vmatpush1.msra.mxu0 0.0
  %970 = vmatprep.subr.mxu0 0.0
  %971 = vmatpush1.msra.mxu0 0.0
  %972 = vmatprep.subr.mxu0 0.0
  %973 = vmatpush1.msra.mxu0 0.0
  %974 = vmatprep.subr.mxu0 0.0
  %975 = vmatpush1.msra.mxu0 0.0
  %976 = vmatprep.subr.mxu0 0.0
  %977 = vmatpush1.msra.mxu0 0.0
  %978 = vmatprep.subr.mxu0 0.0
  %979 = vmatpush1.msra.mxu0 0.0
  %980 = vmatprep.subr.mxu0 0.0
  %981 = vmatpush1.msra.mxu0 0.0
  %982 = vmatprep.subr.mxu0 0.0
  %983 = vmatpush1.msra.mxu0 0.0
  %984 = vmatprep.subr.mxu0 0.0
  %985 = vmatpush1.msra.mxu0 0.0
  %986 = vmatprep.subr.mxu0 0.0
  %987 = vmatpush1.msra.mxu0 0.0
  %988 = vmatprep.subr.mxu0 0.0
  %989 = vmatpush1.msra.mxu0 0.0
  %990 = vmatprep.subr.mxu0 0.0
  %991 = vmatpush1.msra.mxu0 0.0
  %992 = vmatprep.subr.mxu0 0.0
  %993 = vmatpush1.msra.mxu0 0.0
  %994 = vmatprep.subr.mxu0 0.0
  %995 = vmatpush1.msra.mxu0 0.0
  %996 = vmatprep.subr.mxu0 0.0
  %997 = vmatpush1.msra.mxu0 0.0
  %998 = vmatprep.subr.mxu0 0.0
  %999 = vmatpush1.msra.mxu0 0.0
  %1000 = vmatprep.subr.mxu0 0.0
  %1001 = vmatpush1.msra.mxu0 0.0
  %1002 = vmatprep.mubr.f32.mxu0 0.0
  %1003 = vmatmul.mubr.f32.gmra.mrb[0].mxu0 %v933
  %v1004 = vpop.f32.mrb[0].mxu0
  %v1005 = vadd.f32 0.0, %v1004
  %v1006 = vpop.f32.mrb[0].mxu0
  %1007 = vmatprep.mubr.f32.mxu0 0.0
  %1008 = vmatmul.mubr.f32.gmra.mrb[0].mxu0 %v936
  %v1009 = vpop.f32.mrb[0].mxu0
  %v1010 = vadd.f32 0.0, %v1009
  %v1011 = vpop.f32.mrb[0].mxu0
  %1012 = vdwg.mxu0
  %v1013 = vadd.f32 %v786, %v1005
  %v1014 = vadd.f32 %v787, %v1010
  %v1015 = vlaneseq
  %v1016 = vshrl.u32 %v1015, 7
  %v1017 = vsub.s32 0, %v1016
  %v1018 = vrot.slane %v128, %v1017
  %v1019 = vadd.f32 %v1013, %v1018
  %v1020 = vadd.f32 %v1014, %v1018
  %v1021 = vld [vmem:[%s5 + $0x20] sm:$0xff]
  %v1022 = vld [vmem:[%s5 + $0x28] sm:$0xff]
  %v1023 = vld [vmem:[%s5 + $0x30] sm:$0xff]
  %v1024 = vld [vmem:[%s5 + $0x38] sm:$0xff]
  %v1025 = vld [vmem:[%s5 + $0x41] sm:$0x1]
  %v1026 = vld [vmem:[%s3 + $0x58] sm:$0xff]
  %v1027 = vld [vmem:[%s3 + $0x60] sm:$0xff]
  %v1028 = vld [vmem:[%s3 + $0x68] sm:$0xff]
  %v1029 = vld [vmem:[%s3 + $0x70] sm:$0xff]
  %v1030 = vld [vmem:[%s3 + $0x79] sm:$0x1]
  %v1031 = vld [vmem:[%s4 + $0x20] sm:$0xff]
  %v1032 = vld [vmem:[%s4 + $0x28] sm:$0xff]
  %v1033 = vld [vmem:[%s4 + $0x30] sm:$0xff]
  %v1034 = vld [vmem:[%s4 + $0x38] sm:$0xff]
  %v1035 = vld [vmem:[%s4 + $0x41] sm:$0x1]
  %v1036 = vld [vmem:[%s3 + $0xc0] sm:$0xff]
  %v1037 = vld [vmem:[%s3 + $0xc8] sm:$0xff]
  %v1038 = vld [vmem:[%s3 + $0xd0] sm:$0xff]
  %v1039 = vld [vmem:[%s3 + $0xd8] sm:$0xff]
  %v1040 = vld [vmem:[%s3 + $0xe0] sm:$0xff]
  %v1041 = vld [vmem:[%s3 + $0xe8] sm:$0xff]
  %v1042 = vld [vmem:[%s3 + $0xf0] sm:$0xff]
  %v1043 = vld [vmem:[%s3 + $0xf8] sm:$0xff]
  %v1044 = vld [vmem:[%s3 + $0x101] sm:$0x1]
  %v1045 = vld [vmem:[%s3 + $0x2c] sm:$0x1]
  %v1046 = vld [vmem:[%s3 + $0x2d] sm:$0x1]
  %v1047 = vsel %vm131, %v1019, 0.0
  %1048 = vadd.xlane.f32.xlu0 %v1047
  %v1049 = vpop.xlane.xlu0 %1048
  %v1050 = vsel %vm131, %v1020, 0.0
  %1051 = vadd.xlane.f32.xlu0 %v1050
  %v1052 = vpop.xlane.xlu0 %1051
  %v1053 = vmul.f32 %v1049, %v138
  %v1054 = vmul.f32 %v1052, %v138
  %v1055 = vsub.f32 %v1019, %v1053
  %v1056 = vsub.f32 %v1020, %v1054
  %v1057 = vmul.f32 %v1055, %v1055
  %v1058 = vmul.f32 %v1056, %v1056
  %v1059 = vsel %vm131, %v1057, 0.0
  %1060 = vadd.xlane.f32.xlu0 %v1059
  %v1061 = vpop.xlane.xlu0 %1060
  %v1062 = vsel %vm131, %v1058, 0.0
  %1063 = vadd.xlane.f32.xlu0 %v1062
  %v1064 = vpop.xlane.xlu0 %1063
  %v1065 = vmul.f32 %v1061, %v138
  %v1066 = vmul.f32 %v1064, %v138
  %v1067 = vadd.f32 %v1065, 1e-05
  %v1068 = vadd.f32 %v1066, 1e-05
  %v1069 = vrsqrt.pop %v1067
  %v1070 = vrsqrt.pop %v1068
  %v1071 = vmul.f32 %v1055, %v1069
  %v1072 = vmul.f32 %v1056, %v1070
  %v1073 = vlaneseq
  %v1074 = vshrl.u32 %v1073, 7
  %v1075 = vsub.s32 0, %v1074
  %v1076 = vrot.slane %v1045, %v1075
  %v1077 = vmul.f32 %v1071, %v1076
  %v1078 = vmul.f32 %v1072, %v1076
  %v1079 = vlaneseq
  %v1080 = vshrl.u32 %v1079, 7
  %v1081 = vsub.s32 0, %v1080
  %v1082 = vrot.slane %v1046, %v1081
  %v1083 = vadd.f32 %v1077, %v1082
  %v1084 = vadd.f32 %v1078, %v1082
  %v1085 = vlaneseq
  %v1086 = vshrl.u32 %v1085, 7
  %v1087 = vsub.s32 0, %v1086
  %v1088 = vrot.slane %v1025, %v1087
  %v1090 = vsel %vm131, %v1083, 0
  %v1093 = vsel %vm131, %v1084, 0
  %1095 = vmatprep.subr.mxu0 0.0
  %1096 = vmatpush1.msra.mxu0 %v1021
  %1097 = vmatprep.subr.mxu0 0.0
  %1098 = vmatpush1.msra.mxu0 %v1022
  %1099 = vmatprep.subr.mxu0 0.0
  %1100 = vmatpush1.msra.mxu0 %v1023
  %1101 = vmatprep.subr.mxu0 0.0
  %1102 = vmatpush1.msra.mxu0 %v1024
  %1103 = vmatprep.subr.mxu0 0.0
  %1104 = vmatpush1.msra.mxu0 0.0
  %1105 = vmatprep.subr.mxu0 0.0
  %1106 = vmatpush1.msra.mxu0 0.0
  %1107 = vmatprep.subr.mxu0 0.0
  %1108 = vmatpush1.msra.mxu0 0.0
  %1109 = vmatprep.subr.mxu0 0.0
  %1110 = vmatpush1.msra.mxu0 0.0
  %1111 = vmatprep.subr.mxu0 0.0
  %1112 = vmatpush1.msra.mxu0 0.0
  %1113 = vmatprep.subr.mxu0 0.0
  %1114 = vmatpush1.msra.mxu0 0.0
  %1115 = vmatprep.subr.mxu0 0.0
  %1116 = vmatpush1.msra.mxu0 0.0
  %1117 = vmatprep.subr.mxu0 0.0
  %1118 = vmatpush1.msra.mxu0 0.0
  %1119 = vmatprep.subr.mxu0 0.0
  %1120 = vmatpush1.msra.mxu0 0.0
  %1121 = vmatprep.subr.mxu0 0.0
  %1122 = vmatpush1.msra.mxu0 0.0
  %1123 = vmatprep.subr.mxu0 0.0
  %1124 = vmatpush1.msra.mxu0 0.0
  %1125 = vmatprep.subr.mxu0 0.0
  %1126 = vmatpush1.msra.mxu0 0.0
  %1127 = vmatprep.subr.mxu0 0.0
  %1128 = vmatpush1.msra.mxu0 0.0
  %1129 = vmatprep.subr.mxu0 0.0
  %1130 = vmatpush1.msra.mxu0 0.0
  %1131 = vmatprep.subr.mxu0 0.0
  %1132 = vmatpush1.msra.mxu0 0.0
  %1133 = vmatprep.subr.mxu0 0.0
  %1134 = vmatpush1.msra.mxu0 0.0
  %1135 = vmatprep.subr.mxu0 0.0
  %1136 = vmatpush1.msra.mxu0 0.0
  %1137 = vmatprep.subr.mxu0 0.0
  %1138 = vmatpush1.msra.mxu0 0.0
  %1139 = vmatprep.subr.mxu0 0.0
  %1140 = vmatpush1.msra.mxu0 0.0
  %1141 = vmatprep.subr.mxu0 0.0
  %1142 = vmatpush1.msra.mxu0 0.0
  %1143 = vmatprep.subr.mxu0 0.0
  %1144 = vmatpush1.msra.mxu0 0.0
  %1145 = vmatprep.subr.mxu0 0.0
  %1146 = vmatpush1.msra.mxu0 0.0
  %1147 = vmatprep.subr.mxu0 0.0
  %1148 = vmatpush1.msra.mxu0 0.0
  %1149 = vmatprep.subr.mxu0 0.0
  %1150 = vmatpush1.msra.mxu0 0.0
  %1151 = vmatprep.subr.mxu0 0.0
  %1152 = vmatpush1.msra.mxu0 0.0
  %1153 = vmatprep.subr.mxu0 0.0
  %1154 = vmatpush1.msra.mxu0 0.0
  %1155 = vmatprep.subr.mxu0 0.0
  %1156 = vmatpush1.msra.mxu0 0.0
  %1157 = vmatprep.subr.mxu0 0.0
  %1158 = vmatpush1.msra.mxu0 0.0
  %1159 = vmatprep.mubr.f32.mxu0 0.0
  %1160 = vmatmul.mubr.f32.gmra.mrb[0].mxu0 %v1090
  %v1161 = vpop.f32.mrb[0].mxu0
  %v1162 = vadd.f32 %v1088, %v1161
  %v1163 = vpop.f32.mrb[0].mxu0
  %1164 = vmatprep.mubr.f32.mxu0 0.0
  %1165 = vmatmul.mubr.f32.gmra.mrb[0].mxu0 %v1093
  %v1166 = vpop.f32.mrb[0].mxu0
  %v1167 = vadd.f32 %v1088, %v1166
  %v1168 = vpop.f32.mrb[0].mxu0
  %1169 = vdwg.mxu0
  %v1170 = vmul.f32 %v1162, %v267
  %v1171 = vmul.f32 %v1167, %v267
  %v1172 = vmul.f32 %v1162, %v269
  %v1173 = vmul.f32 %v1167, %v269
  %v1174 = vmul.f32 %v1162, %v277
  %v1175 = vmul.f32 %v1167, %v277
  %v1176 = vmul.f32 %v1162, %v279
  %v1177 = vmul.f32 %v1167, %v279
  %1180 = vrot.lane.b32.xlu0 %v1170, 96
  %v1181 = vpop.permute.xlu0 %1180
  %1182 = vrot.lane.b32.xlu0 %v1171, 96
  %v1183 = vpop.permute.xlu0 %1182
  %v1185 = vsel %vm131, %v1162, 0
  %v1188 = vsel %vm131, %v1167, 0
  %v1190 = vsel %vm131, %v1181, 0
  %v1192 = vsel %vm131, %v1183, 0
  %1194 = vmatprep.subr.mxu0 0.0
  %1195 = vmatpush1.xpose.msra.mxu0 %v1190
  %1196 = vmatprep.subr.mxu0 0.0
  %1197 = vmatpush1.xpose.msra.mxu0 %v1192
  %1198 = vmatprep.subr.mxu0 0.0
  %1199 = vmatpush1.xpose.msra.mxu0 0.0
  %1200 = vmatprep.subr.mxu0 0.0
  %1201 = vmatpush1.xpose.msra.mxu0 0.0
  %1202 = vmatprep.subr.mxu0 0.0
  %1203 = vmatpush1.xpose.msra.mxu0 0.0
  %1204 = vmatprep.subr.mxu0 0.0
  %1205 = vmatpush1.xpose.msra.mxu0 0.0
  %1206 = vmatprep.subr.mxu0 0.0
  %1207 = vmatpush1.xpose.msra.mxu0 0.0
  %1208 = vmatprep.subr.mxu0 0.0
  %1209 = vmatpush1.xpose.msra.mxu0 0.0
  %1210 = vmatprep.subr.mxu0 0.0
  %1211 = vmatpush1.xpose.msra.mxu0 0.0
  %1212 = vmatprep.subr.mxu0 0.0
  %1213 = vmatpush1.xpose.msra.mxu0 0.0
  %1214 = vmatprep.subr.mxu0 0.0
  %1215 = vmatpush1.xpose.msra.mxu0 0.0
  %1216 = vmatprep.subr.mxu0 0.0
  %1217 = vmatpush1.xpose.msra.mxu0 0.0
  %1218 = vmatprep.subr.mxu0 0.0
  %1219 = vmatpush1.xpose.msra.mxu0 0.0
  %1220 = vmatprep.subr.mxu0 0.0
  %1221 = vmatpush1.xpose.msra.mxu0 0.0
  %1222 = vmatprep.subr.mxu0 0.0
  %1223 = vmatpush1.xpose.msra.mxu0 0.0
  %1224 = vmatprep.subr.mxu0 0.0
  %1225 = vmatpush1.xpose.msra.mxu0 0.0
  %1226 = vmatprep.subr.mxu0 0.0
  %1227 = vmatpush1.xpose.msra.mxu0 0.0
  %1228 = vmatprep.subr.mxu0 0.0
  %1229 = vmatpush1.xpose.msra.mxu0 0.0
  %1230 = vmatprep.subr.mxu0 0.0
  %1231 = vmatpush1.xpose.msra.mxu0 0.0
  %1232 = vmatprep.subr.mxu0 0.0
  %1233 = vmatpush1.xpose.msra.mxu0 0.0
  %1234 = vmatprep.subr.mxu0 0.0
  %1235 = vmatpush1.xpose.msra.mxu0 0.0
  %1236 = vmatprep.subr.mxu0 0.0
  %1237 = vmatpush1.xpose.msra.mxu0 0.0
  %1238 = vmatprep.subr.mxu0 0.0
  %1239 = vmatpush1.xpose.msra.mxu0 0.0
  %1240 = vmatprep.subr.mxu0 0.0
  %1241 = vmatpush1.xpose.msra.mxu0 0.0
  %1242 = vmatprep.subr.mxu0 0.0
  %1243 = vmatpush1.xpose.msra.mxu0 0.0
  %1244 = vmatprep.subr.mxu0 0.0
  %1245 = vmatpush1.xpose.msra.mxu0 0.0
  %1246 = vmatprep.subr.mxu0 0.0
  %1247 = vmatpush1.xpose.msra.mxu0 0.0
  %1248 = vmatprep.subr.mxu0 0.0
  %1249 = vmatpush1.xpose.msra.mxu0 0.0
  %1250 = vmatprep.subr.mxu0 0.0
  %1251 = vmatpush1.xpose.msra.mxu0 0.0
  %1252 = vmatprep.subr.mxu0 0.0
  %1253 = vmatpush1.xpose.msra.mxu0 0.0
  %1254 = vmatprep.subr.mxu0 0.0
  %1255 = vmatpush1.xpose.msra.mxu0 0.0
  %1256 = vmatprep.subr.mxu0 0.0
  %1257 = vmatpush1.xpose.msra.mxu0 0.0
  %1258 = vmatprep.mubr.f32.mxu0 0.0
  %1259 = vmatmul.mubr.f32.gmra.mrb[0].mxu0 %v1185
  %v1260 = vpop.f32.mrb[0].mxu0
  %v1261 = vadd.f32 0.0, %v1260
  %v1262 = vpop.f32.mrb[0].mxu0
  %1263 = vmatprep.mubr.f32.mxu0 0.0
  %1264 = vmatmul.mubr.f32.gmra.mrb[0].mxu0 %v1188
  %v1265 = vpop.f32.mrb[0].mxu0
  %v1266 = vadd.f32 0.0, %v1265
  %v1267 = vpop.f32.mrb[0].mxu0
  %1268 = vdwg.mxu0
  %1271 = vrot.lane.b32.xlu0 %v1172, 96
  %v1272 = vpop.permute.xlu0 %1271
  %1273 = vrot.lane.b32.xlu0 %v1173, 96
  %v1274 = vpop.permute.xlu0 %1273
  %v1275 = vsel %vm131, %v1272, 0
  %v1277 = vsel %vm131, %v1274, 0
  %1279 = vmatprep.subr.mxu0 0.0
  %1280 = vmatpush1.xpose.msra.mxu0 %v1275
  %1281 = vmatprep.subr.mxu0 0.0
  %1282 = vmatpush1.xpose.msra.mxu0 %v1277
  %1283 = vmatprep.subr.mxu0 0.0
  %1284 = vmatpush1.xpose.msra.mxu0 0.0
  %1285 = vmatprep.subr.mxu0 0.0
  %1286 = vmatpush1.xpose.msra.mxu0 0.0
  %1287 = vmatprep.subr.mxu0 0.0
  %1288 = vmatpush1.xpose.msra.mxu0 0.0
  %1289 = vmatprep.subr.mxu0 0.0
  %1290 = vmatpush1.xpose.msra.mxu0 0.0
  %1291 = vmatprep.subr.mxu0 0.0
  %1292 = vmatpush1.xpose.msra.mxu0 0.0
  %1293 = vmatprep.subr.mxu0 0.0
  %1294 = vmatpush1.xpose.msra.mxu0 0.0
  %1295 = vmatprep.subr.mxu0 0.0
  %1296 = vmatpush1.xpose.msra.mxu0 0.0
  %1297 = vmatprep.subr.mxu0 0.0
  %1298 = vmatpush1.xpose.msra.mxu0 0.0
  %1299 = vmatprep.subr.mxu0 0.0
  %1300 = vmatpush1.xpose.msra.mxu0 0.0
  %1301 = vmatprep.subr.mxu0 0.0
  %1302 = vmatpush1.xpose.msra.mxu0 0.0
  %1303 = vmatprep.subr.mxu0 0.0
  %1304 = vmatpush1.xpose.msra.mxu0 0.0
  %1305 = vmatprep.subr.mxu0 0.0
  %1306 = vmatpush1.xpose.msra.mxu0 0.0
  %1307 = vmatprep.subr.mxu0 0.0
  %1308 = vmatpush1.xpose.msra.mxu0 0.0
  %1309 = vmatprep.subr.mxu0 0.0
  %1310 = vmatpush1.xpose.msra.mxu0 0.0
  %1311 = vmatprep.subr.mxu0 0.0
  %1312 = vmatpush1.xpose.msra.mxu0 0.0
  %1313 = vmatprep.subr.mxu0 0.0
  %1314 = vmatpush1.xpose.msra.mxu0 0.0
  %1315 = vmatprep.subr.mxu0 0.0
  %1316 = vmatpush1.xpose.msra.mxu0 0.0
  %1317 = vmatprep.subr.mxu0 0.0
  %1318 = vmatpush1.xpose.msra.mxu0 0.0
  %1319 = vmatprep.subr.mxu0 0.0
  %1320 = vmatpush1.xpose.msra.mxu0 0.0
  %1321 = vmatprep.subr.mxu0 0.0
  %1322 = vmatpush1.xpose.msra.mxu0 0.0
  %1323 = vmatprep.subr.mxu0 0.0
  %1324 = vmatpush1.xpose.msra.mxu0 0.0
  %1325 = vmatprep.subr.mxu0 0.0
  %1326 = vmatpush1.xpose.msra.mxu0 0.0
  %1327 = vmatprep.subr.mxu0 0.0
  %1328 = vmatpush1.xpose.msra.mxu0 0.0
  %1329 = vmatprep.subr.mxu0 0.0
  %1330 = vmatpush1.xpose.msra.mxu0 0.0
  %1331 = vmatprep.subr.mxu0 0.0
  %1332 = vmatpush1.xpose.msra.mxu0 0.0
  %1333 = vmatprep.subr.mxu0 0.0
  %1334 = vmatpush1.xpose.msra.mxu0 0.0
  %1335 = vmatprep.subr.mxu0 0.0
  %1336 = vmatpush1.xpose.msra.mxu0 0.0
  %1337 = vmatprep.subr.mxu0 0.0
  %1338 = vmatpush1.xpose.msra.mxu0 0.0
  %1339 = vmatprep.subr.mxu0 0.0
  %1340 = vmatpush1.xpose.msra.mxu0 0.0
  %1341 = vmatprep.subr.mxu0 0.0
  %1342 = vmatpush1.xpose.msra.mxu0 0.0
  %1343 = vmatprep.mubr.f32.mxu0 0.0
  %1344 = vmatmul.mubr.f32.gmra.mrb[0].mxu0 %v1185
  %v1345 = vpop.f32.mrb[0].mxu0
  %v1346 = vadd.f32 0.0, %v1345
  %v1347 = vpop.f32.mrb[0].mxu0
  %1348 = vmatprep.mubr.f32.mxu0 0.0
  %1349 = vmatmul.mubr.f32.gmra.mrb[0].mxu0 %v1188
  %v1350 = vpop.f32.mrb[0].mxu0
  %v1351 = vadd.f32 0.0, %v1350
  %v1352 = vpop.f32.mrb[0].mxu0
  %1353 = vdwg.mxu0
  %v1354 = vmul.f32 %v1261, 0.25
  %v1355 = vmul.f32 %v1266, 0.25
  %v1356 = vmul.f32 %v1346, 0.25
  %v1357 = vmul.f32 %v1351, 0.25
  %v1358 = vadd.f32 %v1354, %v101
  %v1359 = vadd.f32 %v1355, %v102
  %v1360 = vadd.f32 %v1356, %v101
  %v1361 = vadd.f32 %v1357, %v102
  %v1362 = vsel %vm470, %v1358, -inf
  %1363 = vmax.xlane.f32.xlu0 %v1362
  %v1364 = vpop.xlane.xlu0 %1363
  %v1365 = vsel %vm470, %v1359, -inf
  %1366 = vmax.xlane.f32.xlu0 %v1365
  %v1367 = vpop.xlane.xlu0 %1366
  %v1368 = vsel %vm470, %v1360, -inf
  %1369 = vmax.xlane.f32.xlu0 %v1368
  %v1370 = vpop.xlane.xlu0 %1369
  %v1371 = vsel %vm470, %v1361, -inf
  %1372 = vmax.xlane.f32.xlu0 %v1371
  %v1373 = vpop.xlane.xlu0 %1372
  %v1374 = vsub.f32 %v1358, %v1364
  %v1375 = vsub.f32 %v1359, %v1367
  %v1376 = vsub.f32 %v1360, %v1370
  %v1377 = vsub.f32 %v1361, %v1373
  %v1378 = vmul.f32 %v1374, 1.442695
  %v1379 = vpow.pop %v1378
  %v1380 = vmul.f32 %v1375, 1.442695
  %v1381 = vpow.pop %v1380
  %v1382 = vmul.f32 %v1376, 1.442695
  %v1383 = vpow.pop %v1382
  %v1384 = vmul.f32 %v1377, 1.442695
  %v1385 = vpow.pop %v1384
  %v1386 = vsel %vm470, %v1379, 0.0
  %1387 = vadd.xlane.f32.xlu0 %v1386
  %v1388 = vpop.xlane.xlu0 %1387
  %v1389 = vsel %vm470, %v1381, 0.0
  %1390 = vadd.xlane.f32.xlu0 %v1389
  %v1391 = vpop.xlane.xlu0 %1390
  %v1392 = vsel %vm470, %v1383, 0.0
  %1393 = vadd.xlane.f32.xlu0 %v1392
  %v1394 = vpop.xlane.xlu0 %1393
  %v1395 = vsel %vm470, %v1385, 0.0
  %1396 = vadd.xlane.f32.xlu0 %v1395
  %v1397 = vpop.xlane.xlu0 %1396
  %v1398 = vrcp.pop %v1388
  %v1399 = vrcp.pop %v1391
  %v1400 = vrcp.pop %v1394
  %v1401 = vrcp.pop %v1397
  %v1402 = vmul.f32 %v1379, %v1398
  %v1403 = vmul.f32 %v1381, %v1399
  %v1404 = vmul.f32 %v1383, %v1400
  %v1405 = vmul.f32 %v1385, %v1401
  %1408 = vrot.lane.b32.xlu0 %v1174, 64
  %v1409 = vpop.permute.xlu0 %1408
  %1410 = vrot.lane.b32.xlu0 %v1175, 64
  %v1411 = vpop.permute.xlu0 %1410
  %v1415 = vsel %vm470, %v1402, 0
  %v1418 = vsel %vm470, %v1403, 0
  %1420 = vmatprep.subr.mxu0 0.0
  %1421 = vmatpush1.msra.mxu0 %v1409
  %1422 = vmatprep.subr.mxu0 0.0
  %1423 = vmatpush1.msra.mxu0 %v1411
  %1424 = vmatprep.subr.mxu0 0.0
  %1425 = vmatpush1.msra.mxu0 0.0
  %1426 = vmatprep.subr.mxu0 0.0
  %1427 = vmatpush1.msra.mxu0 0.0
  %1428 = vmatprep.subr.mxu0 0.0
  %1429 = vmatpush1.msra.mxu0 0.0
  %1430 = vmatprep.subr.mxu0 0.0
  %1431 = vmatpush1.msra.mxu0 0.0
  %1432 = vmatprep.subr.mxu0 0.0
  %1433 = vmatpush1.msra.mxu0 0.0
  %1434 = vmatprep.subr.mxu0 0.0
  %1435 = vmatpush1.msra.mxu0 0.0
  %1436 = vmatprep.subr.mxu0 0.0
  %1437 = vmatpush1.msra.mxu0 0.0
  %1438 = vmatprep.subr.mxu0 0.0
  %1439 = vmatpush1.msra.mxu0 0.0
  %1440 = vmatprep.subr.mxu0 0.0
  %1441 = vmatpush1.msra.mxu0 0.0
  %1442 = vmatprep.subr.mxu0 0.0
  %1443 = vmatpush1.msra.mxu0 0.0
  %1444 = vmatprep.subr.mxu0 0.0
  %1445 = vmatpush1.msra.mxu0 0.0
  %1446 = vmatprep.subr.mxu0 0.0
  %1447 = vmatpush1.msra.mxu0 0.0
  %1448 = vmatprep.subr.mxu0 0.0
  %1449 = vmatpush1.msra.mxu0 0.0
  %1450 = vmatprep.subr.mxu0 0.0
  %1451 = vmatpush1.msra.mxu0 0.0
  %1452 = vmatprep.subr.mxu0 0.0
  %1453 = vmatpush1.msra.mxu0 0.0
  %1454 = vmatprep.subr.mxu0 0.0
  %1455 = vmatpush1.msra.mxu0 0.0
  %1456 = vmatprep.subr.mxu0 0.0
  %1457 = vmatpush1.msra.mxu0 0.0
  %1458 = vmatprep.subr.mxu0 0.0
  %1459 = vmatpush1.msra.mxu0 0.0
  %1460 = vmatprep.subr.mxu0 0.0
  %1461 = vmatpush1.msra.mxu0 0.0
  %1462 = vmatprep.subr.mxu0 0.0
  %1463 = vmatpush1.msra.mxu0 0.0
  %1464 = vmatprep.subr.mxu0 0.0
  %1465 = vmatpush1.msra.mxu0 0.0
  %1466 = vmatprep.subr.mxu0 0.0
  %1467 = vmatpush1.msra.mxu0 0.0
  %1468 = vmatprep.subr.mxu0 0.0
  %1469 = vmatpush1.msra.mxu0 0.0
  %1470 = vmatprep.subr.mxu0 0.0
  %1471 = vmatpush1.msra.mxu0 0.0
  %1472 = vmatprep.subr.mxu0 0.0
  %1473 = vmatpush1.msra.mxu0 0.0
  %1474 = vmatprep.subr.mxu0 0.0
  %1475 = vmatpush1.msra.mxu0 0.0
  %1476 = vmatprep.subr.mxu0 0.0
  %1477 = vmatpush1.msra.mxu0 0.0
  %1478 = vmatprep.subr.mxu0 0.0
  %1479 = vmatpush1.msra.mxu0 0.0
  %1480 = vmatprep.subr.mxu0 0.0
  %1481 = vmatpush1.msra.mxu0 0.0
  %1482 = vmatprep.subr.mxu0 0.0
  %1483 = vmatpush1.msra.mxu0 0.0
  %1484 = vmatprep.mubr.f32.mxu0 0.0
  %1485 = vmatmul.mubr.f32.gmra.mrb[0].mxu0 %v1415
  %v1486 = vpop.f32.mrb[0].mxu0
  %v1487 = vadd.f32 0.0, %v1486
  %v1488 = vpop.f32.mrb[0].mxu0
  %1489 = vmatprep.mubr.f32.mxu0 0.0
  %1490 = vmatmul.mubr.f32.gmra.mrb[0].mxu0 %v1418
  %v1491 = vpop.f32.mrb[0].mxu0
  %v1492 = vadd.f32 0.0, %v1491
  %v1493 = vpop.f32.mrb[0].mxu0
  %1494 = vdwg.mxu0
  %1497 = vrot.lane.b32.xlu0 %v1176, 64
  %v1498 = vpop.permute.xlu0 %1497
  %1499 = vrot.lane.b32.xlu0 %v1177, 64
  %v1500 = vpop.permute.xlu0 %1499
  %v1504 = vsel %vm470, %v1404, 0
  %v1507 = vsel %vm470, %v1405, 0
  %1509 = vmatprep.subr.mxu0 0.0
  %1510 = vmatpush1.msra.mxu0 %v1498
  %1511 = vmatprep.subr.mxu0 0.0
  %1512 = vmatpush1.msra.mxu0 %v1500
  %1513 = vmatprep.subr.mxu0 0.0
  %1514 = vmatpush1.msra.mxu0 0.0
  %1515 = vmatprep.subr.mxu0 0.0
  %1516 = vmatpush1.msra.mxu0 0.0
  %1517 = vmatprep.subr.mxu0 0.0
  %1518 = vmatpush1.msra.mxu0 0.0
  %1519 = vmatprep.subr.mxu0 0.0
  %1520 = vmatpush1.msra.mxu0 0.0
  %1521 = vmatprep.subr.mxu0 0.0
  %1522 = vmatpush1.msra.mxu0 0.0
  %1523 = vmatprep.subr.mxu0 0.0
  %1524 = vmatpush1.msra.mxu0 0.0
  %1525 = vmatprep.subr.mxu0 0.0
  %1526 = vmatpush1.msra.mxu0 0.0
  %1527 = vmatprep.subr.mxu0 0.0
  %1528 = vmatpush1.msra.mxu0 0.0
  %1529 = vmatprep.subr.mxu0 0.0
  %1530 = vmatpush1.msra.mxu0 0.0
  %1531 = vmatprep.subr.mxu0 0.0
  %1532 = vmatpush1.msra.mxu0 0.0
  %1533 = vmatprep.subr.mxu0 0.0
  %1534 = vmatpush1.msra.mxu0 0.0
  %1535 = vmatprep.subr.mxu0 0.0
  %1536 = vmatpush1.msra.mxu0 0.0
  %1537 = vmatprep.subr.mxu0 0.0
  %1538 = vmatpush1.msra.mxu0 0.0
  %1539 = vmatprep.subr.mxu0 0.0
  %1540 = vmatpush1.msra.mxu0 0.0
  %1541 = vmatprep.subr.mxu0 0.0
  %1542 = vmatpush1.msra.mxu0 0.0
  %1543 = vmatprep.subr.mxu0 0.0
  %1544 = vmatpush1.msra.mxu0 0.0
  %1545 = vmatprep.subr.mxu0 0.0
  %1546 = vmatpush1.msra.mxu0 0.0
  %1547 = vmatprep.subr.mxu0 0.0
  %1548 = vmatpush1.msra.mxu0 0.0
  %1549 = vmatprep.subr.mxu0 0.0
  %1550 = vmatpush1.msra.mxu0 0.0
  %1551 = vmatprep.subr.mxu0 0.0
  %1552 = vmatpush1.msra.mxu0 0.0
  %1553 = vmatprep.subr.mxu0 0.0
  %1554 = vmatpush1.msra.mxu0 0.0
  %1555 = vmatprep.subr.mxu0 0.0
  %1556 = vmatpush1.msra.mxu0 0.0
  %1557 = vmatprep.subr.mxu0 0.0
  %1558 = vmatpush1.msra.mxu0 0.0
  %1559 = vmatprep.subr.mxu0 0.0
  %1560 = vmatpush1.msra.mxu0 0.0
  %1561 = vmatprep.subr.mxu0 0.0
  %1562 = vmatpush1.msra.mxu0 0.0
  %1563 = vmatprep.subr.mxu0 0.0
  %1564 = vmatpush1.msra.mxu0 0.0
  %1565 = vmatprep.subr.mxu0 0.0
  %1566 = vmatpush1.msra.mxu0 0.0
  %1567 = vmatprep.subr.mxu0 0.0
  %1568 = vmatpush1.msra.mxu0 0.0
  %1569 = vmatprep.subr.mxu0 0.0
  %1570 = vmatpush1.msra.mxu0 0.0
  %1571 = vmatprep.subr.mxu0 0.0
  %1572 = vmatpush1.msra.mxu0 0.0
  %1573 = vmatprep.mubr.f32.mxu0 0.0
  %1574 = vmatmul.mubr.f32.gmra.mrb[0].mxu0 %v1504
  %v1575 = vpop.f32.mrb[0].mxu0
  %v1576 = vadd.f32 0.0, %v1575
  %v1577 = vpop.f32.mrb[0].mxu0
  %1578 = vmatprep.mubr.f32.mxu0 0.0
  %1579 = vmatmul.mubr.f32.gmra.mrb[0].mxu0 %v1507
  %v1580 = vpop.f32.mrb[0].mxu0
  %v1581 = vadd.f32 0.0, %v1580
  %v1582 = vpop.f32.mrb[0].mxu0
  %1583 = vdwg.mxu0
  %v1584 = vsel %vm131, %v1487, 0.0
  %v1585 = vsel %vm131, %v1576, 0.0
  %v1586 = vadd.f32 %v1584, %v1585
  %v1587 = vsel %vm131, %v1492, 0.0
  %v1588 = vsel %vm131, %v1581, 0.0
  %v1589 = vadd.f32 %v1587, %v1588
  %v1591 = vsel %vm131, %v1586, 0
  %v1594 = vsel %vm131, %v1589, 0
  %1596 = vmatprep.subr.mxu0 0.0
  %1597 = vmatpush1.msra.mxu0 %v1026
  %1598 = vmatprep.subr.mxu0 0.0
  %1599 = vmatpush1.msra.mxu0 %v1027
  %1600 = vmatprep.subr.mxu0 0.0
  %1601 = vmatpush1.msra.mxu0 %v1028
  %1602 = vmatprep.subr.mxu0 0.0
  %1603 = vmatpush1.msra.mxu0 %v1029
  %1604 = vmatprep.subr.mxu0 0.0
  %1605 = vmatpush1.msra.mxu0 0.0
  %1606 = vmatprep.subr.mxu0 0.0
  %1607 = vmatpush1.msra.mxu0 0.0
  %1608 = vmatprep.subr.mxu0 0.0
  %1609 = vmatpush1.msra.mxu0 0.0
  %1610 = vmatprep.subr.mxu0 0.0
  %1611 = vmatpush1.msra.mxu0 0.0
  %1612 = vmatprep.subr.mxu0 0.0
  %1613 = vmatpush1.msra.mxu0 0.0
  %1614 = vmatprep.subr.mxu0 0.0
  %1615 = vmatpush1.msra.mxu0 0.0
  %1616 = vmatprep.subr.mxu0 0.0
  %1617 = vmatpush1.msra.mxu0 0.0
  %1618 = vmatprep.subr.mxu0 0.0
  %1619 = vmatpush1.msra.mxu0 0.0
  %1620 = vmatprep.subr.mxu0 0.0
  %1621 = vmatpush1.msra.mxu0 0.0
  %1622 = vmatprep.subr.mxu0 0.0
  %1623 = vmatpush1.msra.mxu0 0.0
  %1624 = vmatprep.subr.mxu0 0.0
  %1625 = vmatpush1.msra.mxu0 0.0
  %1626 = vmatprep.subr.mxu0 0.0
  %1627 = vmatpush1.msra.mxu0 0.0
  %1628 = vmatprep.subr.mxu0 0.0
  %1629 = vmatpush1.msra.mxu0 0.0
  %1630 = vmatprep.subr.mxu0 0.0
  %1631 = vmatpush1.msra.mxu0 0.0
  %1632 = vmatprep.subr.mxu0 0.0
  %1633 = vmatpush1.msra.mxu0 0.0
  %1634 = vmatprep.subr.mxu0 0.0
  %1635 = vmatpush1.msra.mxu0 0.0
  %1636 = vmatprep.subr.mxu0 0.0
  %1637 = vmatpush1.msra.mxu0 0.0
  %1638 = vmatprep.subr.mxu0 0.0
  %1639 = vmatpush1.msra.mxu0 0.0
  %1640 = vmatprep.subr.mxu0 0.0
  %1641 = vmatpush1.msra.mxu0 0.0
  %1642 = vmatprep.subr.mxu0 0.0
  %1643 = vmatpush1.msra.mxu0 0.0
  %1644 = vmatprep.subr.mxu0 0.0
  %1645 = vmatpush1.msra.mxu0 0.0
  %1646 = vmatprep.subr.mxu0 0.0
  %1647 = vmatpush1.msra.mxu0 0.0
  %1648 = vmatprep.subr.mxu0 0.0
  %1649 = vmatpush1.msra.mxu0 0.0
  %1650 = vmatprep.subr.mxu0 0.0
  %1651 = vmatpush1.msra.mxu0 0.0
  %1652 = vmatprep.subr.mxu0 0.0
  %1653 = vmatpush1.msra.mxu0 0.0
  %1654 = vmatprep.subr.mxu0 0.0
  %1655 = vmatpush1.msra.mxu0 0.0
  %1656 = vmatprep.subr.mxu0 0.0
  %1657 = vmatpush1.msra.mxu0 0.0
  %1658 = vmatprep.subr.mxu0 0.0
  %1659 = vmatpush1.msra.mxu0 0.0
  %1660 = vmatprep.mubr.f32.mxu0 0.0
  %1661 = vmatmul.mubr.f32.gmra.mrb[0].mxu0 %v1591
  %v1662 = vpop.f32.mrb[0].mxu0
  %v1663 = vadd.f32 0.0, %v1662
  %v1664 = vpop.f32.mrb[0].mxu0
  %1665 = vmatprep.mubr.f32.mxu0 0.0
  %1666 = vmatmul.mubr.f32.gmra.mrb[0].mxu0 %v1594
  %v1667 = vpop.f32.mrb[0].mxu0
  %v1668 = vadd.f32 0.0, %v1667
  %v1669 = vpop.f32.mrb[0].mxu0
  %1670 = vdwg.mxu0
  %v1671 = vadd.f32 %v1019, %v1663
  %v1672 = vadd.f32 %v1020, %v1668
  %v1673 = vlaneseq
  %v1674 = vshrl.u32 %v1673, 7
  %v1675 = vsub.s32 0, %v1674
  %v1676 = vrot.slane %v1030, %v1675
  %v1677 = vadd.f32 %v1671, %v1676
  %v1678 = vadd.f32 %v1672, %v1676
  %v1679 = vld [vmem:[%s3 + $0x2e] sm:$0x1]
  %v1680 = vld [vmem:[%s3 + $0x2f] sm:$0x1]
  %v1681 = vsel %vm131, %v1677, 0.0
  %1682 = vadd.xlane.f32.xlu0 %v1681
  %v1683 = vpop.xlane.xlu0 %1682
  %v1684 = vsel %vm131, %v1678, 0.0
  %1685 = vadd.xlane.f32.xlu0 %v1684
  %v1686 = vpop.xlane.xlu0 %1685
  %v1687 = vmul.f32 %v1683, %v138
  %v1688 = vmul.f32 %v1686, %v138
  %v1689 = vsub.f32 %v1677, %v1687
  %v1690 = vsub.f32 %v1678, %v1688
  %v1691 = vmul.f32 %v1689, %v1689
  %v1692 = vmul.f32 %v1690, %v1690
  %v1693 = vsel %vm131, %v1691, 0.0
  %1694 = vadd.xlane.f32.xlu0 %v1693
  %v1695 = vpop.xlane.xlu0 %1694
  %v1696 = vsel %vm131, %v1692, 0.0
  %1697 = vadd.xlane.f32.xlu0 %v1696
  %v1698 = vpop.xlane.xlu0 %1697
  %v1699 = vmul.f32 %v1695, %v138
  %v1700 = vmul.f32 %v1698, %v138
  %v1701 = vadd.f32 %v1699, 1e-05
  %v1702 = vadd.f32 %v1700, 1e-05
  %v1703 = vrsqrt.pop %v1701
  %v1704 = vrsqrt.pop %v1702
  %v1705 = vmul.f32 %v1689, %v1703
  %v1706 = vmul.f32 %v1690, %v1704
  %v1707 = vlaneseq
  %v1708 = vshrl.u32 %v1707, 7
  %v1709 = vsub.s32 0, %v1708
  %v1710 = vrot.slane %v1679, %v1709
  %v1711 = vmul.f32 %v1705, %v1710
  %v1712 = vmul.f32 %v1706, %v1710
  %v1713 = vlaneseq
  %v1714 = vshrl.u32 %v1713, 7
  %v1715 = vsub.s32 0, %v1714
  %v1716 = vrot.slane %v1680, %v1715
  %v1717 = vadd.f32 %v1711, %v1716
  %v1718 = vadd.f32 %v1712, %v1716
  %v1719 = vlaneseq
  %v1720 = vshrl.u32 %v1719, 7
  %v1721 = vsub.s32 0, %v1720
  %v1722 = vrot.slane %v1035, %v1721
  %v1724 = vsel %vm131, %v1717, 0
  %v1727 = vsel %vm131, %v1718, 0
  %1729 = vmatprep.subr.mxu0 0.0
  %1730 = vmatpush1.msra.mxu0 %v1031
  %1731 = vmatprep.subr.mxu0 0.0
  %1732 = vmatpush1.msra.mxu0 %v1032
  %1733 = vmatprep.subr.mxu0 0.0
  %1734 = vmatpush1.msra.mxu0 %v1033
  %1735 = vmatprep.subr.mxu0 0.0
  %1736 = vmatpush1.msra.mxu0 %v1034
  %1737 = vmatprep.subr.mxu0 0.0
  %1738 = vmatpush1.msra.mxu0 0.0
  %1739 = vmatprep.subr.mxu0 0.0
  %1740 = vmatpush1.msra.mxu0 0.0
  %1741 = vmatprep.subr.mxu0 0.0
  %1742 = vmatpush1.msra.mxu0 0.0
  %1743 = vmatprep.subr.mxu0 0.0
  %1744 = vmatpush1.msra.mxu0 0.0
  %1745 = vmatprep.subr.mxu0 0.0
  %1746 = vmatpush1.msra.mxu0 0.0
  %1747 = vmatprep.subr.mxu0 0.0
  %1748 = vmatpush1.msra.mxu0 0.0
  %1749 = vmatprep.subr.mxu0 0.0
  %1750 = vmatpush1.msra.mxu0 0.0
  %1751 = vmatprep.subr.mxu0 0.0
  %1752 = vmatpush1.msra.mxu0 0.0
  %1753 = vmatprep.subr.mxu0 0.0
  %1754 = vmatpush1.msra.mxu0 0.0
  %1755 = vmatprep.subr.mxu0 0.0
  %1756 = vmatpush1.msra.mxu0 0.0
  %1757 = vmatprep.subr.mxu0 0.0
  %1758 = vmatpush1.msra.mxu0 0.0
  %1759 = vmatprep.subr.mxu0 0.0
  %1760 = vmatpush1.msra.mxu0 0.0
  %1761 = vmatprep.subr.mxu0 0.0
  %1762 = vmatpush1.msra.mxu0 0.0
  %1763 = vmatprep.subr.mxu0 0.0
  %1764 = vmatpush1.msra.mxu0 0.0
  %1765 = vmatprep.subr.mxu0 0.0
  %1766 = vmatpush1.msra.mxu0 0.0
  %1767 = vmatprep.subr.mxu0 0.0
  %1768 = vmatpush1.msra.mxu0 0.0
  %1769 = vmatprep.subr.mxu0 0.0
  %1770 = vmatpush1.msra.mxu0 0.0
  %1771 = vmatprep.subr.mxu0 0.0
  %1772 = vmatpush1.msra.mxu0 0.0
  %1773 = vmatprep.subr.mxu0 0.0
  %1774 = vmatpush1.msra.mxu0 0.0
  %1775 = vmatprep.subr.mxu0 0.0
  %1776 = vmatpush1.msra.mxu0 0.0
  %1777 = vmatprep.subr.mxu0 0.0
  %1778 = vmatpush1.msra.mxu0 0.0
  %1779 = vmatprep.subr.mxu0 0.0
  %1780 = vmatpush1.msra.mxu0 0.0
  %1781 = vmatprep.subr.mxu0 0.0
  %1782 = vmatpush1.msra.mxu0 0.0
  %1783 = vmatprep.subr.mxu0 0.0
  %1784 = vmatpush1.msra.mxu0 0.0
  %1785 = vmatprep.subr.mxu0 0.0
  %1786 = vmatpush1.msra.mxu0 0.0
  %1787 = vmatprep.subr.mxu0 0.0
  %1788 = vmatpush1.msra.mxu0 0.0
  %1789 = vmatprep.subr.mxu0 0.0
  %1790 = vmatpush1.msra.mxu0 0.0
  %1791 = vmatprep.subr.mxu0 0.0
  %1792 = vmatpush1.msra.mxu0 0.0
  %1793 = vmatprep.mubr.f32.mxu0 0.0
  %1794 = vmatmul.mubr.f32.gmra.mrb[0].mxu0 %v1724
  %v1795 = vpop.f32.mrb[0].mxu0
  %v1796 = vadd.f32 %v1722, %v1795
  %v1797 = vpop.f32.mrb[0].mxu0
  %1798 = vmatprep.mubr.f32.mxu0 0.0
  %1799 = vmatmul.mubr.f32.gmra.mrb[0].mxu0 %v1727
  %v1800 = vpop.f32.mrb[0].mxu0
  %v1801 = vadd.f32 %v1722, %v1800
  %v1802 = vpop.f32.mrb[0].mxu0
  %1803 = vdwg.mxu0
  %v1804 = vmul.f32 %v1796, %v1796
  %v1805 = vmul.f32 %v1801, %v1801
  %v1806 = vmul.f32 %v1796, %v1804
  %v1807 = vmul.f32 %v1801, %v1805
  %v1808 = vmul.f32 %v1806, 0.044715
  %v1809 = vmul.f32 %v1807, 0.044715
  %v1810 = vadd.f32 %v1796, %v1808
  %v1811 = vadd.f32 %v1801, %v1809
  %v1812 = vmul.f32 %v1810, 0.7978846
  %v1813 = vmul.f32 %v1811, 0.7978846
  %v1814 = vtanh.pop %v1812
  %v1815 = vtanh.pop %v1813
  %v1816 = vadd.f32 %v1814, 1.0
  %v1817 = vadd.f32 %v1815, 1.0
  %v1818 = vmul.f32 %v1816, 0.5
  %v1819 = vmul.f32 %v1817, 0.5
  %v1820 = vmul.f32 %v1796, %v1818
  %v1821 = vmul.f32 %v1801, %v1819
  %v1823 = vsel %vm931, %v1820, 0
  %v1826 = vsel %vm931, %v1821, 0
  %1828 = vmatprep.subr.mxu0 0.0
  %1829 = vmatpush1.msra.mxu0 %v1036
  %1830 = vmatprep.subr.mxu0 0.0
  %1831 = vmatpush1.msra.mxu0 %v1037
  %1832 = vmatprep.subr.mxu0 0.0
  %1833 = vmatpush1.msra.mxu0 %v1038
  %1834 = vmatprep.subr.mxu0 0.0
  %1835 = vmatpush1.msra.mxu0 %v1039
  %1836 = vmatprep.subr.mxu0 0.0
  %1837 = vmatpush1.msra.mxu0 %v1040
  %1838 = vmatprep.subr.mxu0 0.0
  %1839 = vmatpush1.msra.mxu0 %v1041
  %1840 = vmatprep.subr.mxu0 0.0
  %1841 = vmatpush1.msra.mxu0 %v1042
  %1842 = vmatprep.subr.mxu0 0.0
  %1843 = vmatpush1.msra.mxu0 %v1043
  %1844 = vmatprep.subr.mxu0 0.0
  %1845 = vmatpush1.msra.mxu0 0.0
  %1846 = vmatprep.subr.mxu0 0.0
  %1847 = vmatpush1.msra.mxu0 0.0
  %1848 = vmatprep.subr.mxu0 0.0
  %1849 = vmatpush1.msra.mxu0 0.0
  %1850 = vmatprep.subr.mxu0 0.0
  %1851 = vmatpush1.msra.mxu0 0.0
  %1852 = vmatprep.subr.mxu0 0.0
  %1853 = vmatpush1.msra.mxu0 0.0
  %1854 = vmatprep.subr.mxu0 0.0
  %1855 = vmatpush1.msra.mxu0 0.0
  %1856 = vmatprep.subr.mxu0 0.0
  %1857 = vmatpush1.msra.mxu0 0.0
  %1858 = vmatprep.subr.mxu0 0.0
  %1859 = vmatpush1.msra.mxu0 0.0
  %1860 = vmatprep.subr.mxu0 0.0
  %1861 = vmatpush1.msra.mxu0 0.0
  %1862 = vmatprep.subr.mxu0 0.0
  %1863 = vmatpush1.msra.mxu0 0.0
  %1864 = vmatprep.subr.mxu0 0.0
  %1865 = vmatpush1.msra.mxu0 0.0
  %1866 = vmatprep.subr.mxu0 0.0
  %1867 = vmatpush1.msra.mxu0 0.0
  %1868 = vmatprep.subr.mxu0 0.0
  %1869 = vmatpush1.msra.mxu0 0.0
  %1870 = vmatprep.subr.mxu0 0.0
  %1871 = vmatpush1.msra.mxu0 0.0
  %1872 = vmatprep.subr.mxu0 0.0
  %1873 = vmatpush1.msra.mxu0 0.0
  %1874 = vmatprep.subr.mxu0 0.0
  %1875 = vmatpush1.msra.mxu0 0.0
  %1876 = vmatprep.subr.mxu0 0.0
  %1877 = vmatpush1.msra.mxu0 0.0
  %1878 = vmatprep.subr.mxu0 0.0
  %1879 = vmatpush1.msra.mxu0 0.0
  %1880 = vmatprep.subr.mxu0 0.0
  %1881 = vmatpush1.msra.mxu0 0.0
  %1882 = vmatprep.subr.mxu0 0.0
  %1883 = vmatpush1.msra.mxu0 0.0
  %1884 = vmatprep.subr.mxu0 0.0
  %1885 = vmatpush1.msra.mxu0 0.0
  %1886 = vmatprep.subr.mxu0 0.0
  %1887 = vmatpush1.msra.mxu0 0.0
  %1888 = vmatprep.subr.mxu0 0.0
  %1889 = vmatpush1.msra.mxu0 0.0
  %1890 = vmatprep.subr.mxu0 0.0
  %1891 = vmatpush1.msra.mxu0 0.0
  %1892 = vmatprep.mubr.f32.mxu0 0.0
  %1893 = vmatmul.mubr.f32.gmra.mrb[0].mxu0 %v1823
  %v1894 = vpop.f32.mrb[0].mxu0
  %v1895 = vpop.f32.mrb[0].mxu0
  %1896 = vmatprep.mubr.f32.mxu0 0.0
  %1897 = vmatmul.mubr.f32.gmra.mrb[0].mxu0 %v1826
  %v1898 = vpop.f32.mrb[0].mxu0
  %v1899 = vadd.f32 0.0, %v1898
  %v1900 = vpop.f32.mrb[0].mxu0
  %1901 = vdwg.mxu0
  %v1902 = vadd.f32 %v1678, %v1899
  %v1903 = vlaneseq
  %v1904 = vshrl.u32 %v1903, 7
  %v1905 = vsub.s32 0, %v1904
  %v1906 = vrot.slane %v1044, %v1905
  %v1907 = vadd.f32 %v1902, %v1906
  %v1908 = vld [vmem:[%s3 + $0x30] sm:$0x1]
  %v1909 = vld [vmem:[%s3 + $0x31] sm:$0x1]
  %v1910 = vsel %vm131, %v1907, 0.0
  %1911 = vadd.xlane.f32.xlu0 %v1910
  %v1912 = vpop.xlane.xlu0 %1911
  %v1913 = vmul.f32 %v1912, %v138
  %v1914 = vsub.f32 %v1907, %v1913
  %v1915 = vmul.f32 %v1914, %v1914
  %v1916 = vsel %vm131, %v1915, 0.0
  %1917 = vadd.xlane.f32.xlu0 %v1916
  %v1918 = vpop.xlane.xlu0 %1917
  %v1919 = vmul.f32 %v1918, %v138
  %v1920 = vadd.f32 %v1919, 1e-05
  %v1921 = vrsqrt.pop %v1920
  %v1922 = vmul.f32 %v1914, %v1921
  %v1923 = vlaneseq
  %v1924 = vshrl.u32 %v1923, 7
  %v1925 = vsub.s32 0, %v1924
  %v1926 = vrot.slane %v1908, %v1925
  %v1927 = vmul.f32 %v1922, %v1926
  %v1928 = vlaneseq
  %v1929 = vshrl.u32 %v1928, 7
  %v1930 = vsub.s32 0, %v1929
  %v1931 = vrot.slane %v1909, %v1930
  %v1932 = vadd.f32 %v1927, %v1931
  %v1933 = vld [vmem:[%s3 + $0x108] sm:$0xff]
  %v1934 = vld [vmem:[%s3 + $0x110] sm:$0xff]
  %v1935 = vld [vmem:[%s3 + $0x118] sm:$0xff]
  %v1936 = vld [vmem:[%s3 + $0x120] sm:$0xff]
  %v1937 = vld [vmem:[%s3 + $0x128] sm:$0x1]
  %v1938 = vld [vmem:[%s3 + $0x130] sm:$0x3]
  %v1939 = vlaneseq
  %v1940 = vshrl.u32 %v1939, 7
  %v1941 = vsub.s32 0, %v1940
  %v1942 = vrot.slane %v1937, %v1941
  %v1944 = vsel %vm131, %v1932, 0
  %1946 = vmatprep.subr.mxu0 0.0
  %1947 = vmatpush1.msra.mxu0 %v1933
  %1948 = vmatprep.subr.mxu0 0.0
  %1949 = vmatpush1.msra.mxu0 %v1934
  %1950 = vmatprep.subr.mxu0 0.0
  %1951 = vmatpush1.msra.mxu0 %v1935
  %1952 = vmatprep.subr.mxu0 0.0
  %1953 = vmatpush1.msra.mxu0 %v1936
  %1954 = vmatprep.subr.mxu0 0.0
  %1955 = vmatpush1.msra.mxu0 0.0
  %1956 = vmatprep.subr.mxu0 0.0
  %1957 = vmatpush1.msra.mxu0 0.0
  %1958 = vmatprep.subr.mxu0 0.0
  %1959 = vmatpush1.msra.mxu0 0.0
  %1960 = vmatprep.subr.mxu0 0.0
  %1961 = vmatpush1.msra.mxu0 0.0
  %1962 = vmatprep.subr.mxu0 0.0
  %1963 = vmatpush1.msra.mxu0 0.0
  %1964 = vmatprep.subr.mxu0 0.0
  %1965 = vmatpush1.msra.mxu0 0.0
  %1966 = vmatprep.subr.mxu0 0.0
  %1967 = vmatpush1.msra.mxu0 0.0
  %1968 = vmatprep.subr.mxu0 0.0
  %1969 = vmatpush1.msra.mxu0 0.0
  %1970 = vmatprep.subr.mxu0 0.0
  %1971 = vmatpush1.msra.mxu0 0.0
  %1972 = vmatprep.subr.mxu0 0.0
  %1973 = vmatpush1.msra.mxu0 0.0
  %1974 = vmatprep.subr.mxu0 0.0
  %1975 = vmatpush1.msra.mxu0 0.0
  %1976 = vmatprep.subr.mxu0 0.0
  %1977 = vmatpush1.msra.mxu0 0.0
  %1978 = vmatprep.subr.mxu0 0.0
  %1979 = vmatpush1.msra.mxu0 0.0
  %1980 = vmatprep.subr.mxu0 0.0
  %1981 = vmatpush1.msra.mxu0 0.0
  %1982 = vmatprep.subr.mxu0 0.0
  %1983 = vmatpush1.msra.mxu0 0.0
  %1984 = vmatprep.subr.mxu0 0.0
  %1985 = vmatpush1.msra.mxu0 0.0
  %1986 = vmatprep.subr.mxu0 0.0
  %1987 = vmatpush1.msra.mxu0 0.0
  %1988 = vmatprep.subr.mxu0 0.0
  %1989 = vmatpush1.msra.mxu0 0.0
  %1990 = vmatprep.subr.mxu0 0.0
  %1991 = vmatpush1.msra.mxu0 0.0
  %1992 = vmatprep.subr.mxu0 0.0
  %1993 = vmatpush1.msra.mxu0 0.0
  %1994 = vmatprep.subr.mxu0 0.0
  %1995 = vmatpush1.msra.mxu0 0.0
  %1996 = vmatprep.subr.mxu0 0.0
  %1997 = vmatpush1.msra.mxu0 0.0
  %1998 = vmatprep.subr.mxu0 0.0
  %1999 = vmatpush1.msra.mxu0 0.0
  %2000 = vmatprep.subr.mxu0 0.0
  %2001 = vmatpush1.msra.mxu0 0.0
  %2002 = vmatprep.subr.mxu0 0.0
  %2003 = vmatpush1.msra.mxu0 0.0
  %2004 = vmatprep.subr.mxu0 0.0
  %2005 = vmatpush1.msra.mxu0 0.0
  %2006 = vmatprep.subr.mxu0 0.0
  %2007 = vmatpush1.msra.mxu0 0.0
  %2008 = vmatprep.subr.mxu0 0.0
  %2009 = vmatpush1.msra.mxu0 0.0
  %2010 = vmatprep.mubr.f32.mxu0 0.0
  %2011 = vmatmul.mubr.f32.gmra.mrb[0].mxu0 %v1944
  %v2012 = vpop.f32.mrb[0].mxu0
  %v2013 = vadd.f32 %v1942, %v2012
  %v2014 = vpop.f32.mrb[0].mxu0
  %2015 = vdwg.mxu0
  %v2016 = vmax.f32 %v2013, -20.0
  %v2017 = vmin.f32 %v2016, 2.0
  %v2018 = vmul.f32 %v2017, 1.442695
  %v2019 = vpow.pop %v2018
  %v2020 = vld [vmem:[%s1] sm:$0xff]
  %v2021 = vld [vmem:[%s1 + $0x8] sm:$0xff]
  %2023 = vrot.lane.b32.xlu0 %v2021, 3
  %v2024 = vpop.permute.xlu0 %2023
  %v2026 = vmul.f32 %v2019, %v2024
  %2028 = vrot.lane.b32.xlu0 %v2026, 125
  %v2029 = vpop.permute.xlu0 %2028
  %v2031 = vadd.f32 %v2013, %v2029
  %v2032 = vmul.f32 %v2021, -0.5
  %v2033 = vmul.f32 %v2032, %v2021
  %2035 = vrot.lane.b32.xlu0 %v2017, 125
  %v2036 = vpop.permute.xlu0 %2035
  %v2038 = vsub.f32 %v2033, %v2036
  %v2039 = vsub.f32 %v2038, 0.9189385
  %vm2040 = vcmask 23552
  %v2041 = vsel %vm2040, %v2039, 0.0
  %2042 = vadd.xlane.f32.xlu0 %v2041
  %v2043 = vpop.xlane.xlu0 %2042
  %v2044 = vsub.f32 0.6931472, %v2031
  %v2045 = vmul.f32 %v2031, -2.0
  %v2046 = vmax.f32 %v2045, 0.0
  %vm2047 = vcmp.ne.f32.partialorder %v2045, %v2045
  %v2048 = vadd.f32 %v2045, 0.0
  %v2049 = vand.u32 2147483647, %v2045
  %v2050 = vsub.f32 0.0, %v2049
  %v2051 = vmul.f32 %v2050, 1.442695
  %v2052 = vpow.pop %v2051
  %v2053 = vadd.f32 %v2052, 1.0
  %v2054 = vlog2.pop %v2053
  %v2055 = vmul.f32 %v2054, 0.6931472
  %v2056 = vmul.f32 -0.5, %v2052
  %v2057 = vadd.f32 %v2056, 1.0
  %v2058 = vmul.f32 %v2057, %v2052
  %v2059 = vand.u32 2147483647, %v2052
  %vm2060 = vcmp.lt.f32.partialorder %v2059, 0.0004427343
  %v2061 = vsel %vm2060, %v2058, %v2055
  %v2062 = vadd.f32 %v2046, %v2061
  %v2063 = vsel %vm2047, %v2048, %v2062
  %v2064 = vsub.f32 %v2044, %v2063
  %v2065 = vmul.f32 %v2064, 2.0
  %v2066 = vsel %vm2040, %v2065, 0.0
  %2067 = vadd.xlane.f32.xlu0 %v2066
  %v2068 = vpop.xlane.xlu0 %2067
  %v2069 = vsub.f32 %v2043, %v2068
  %v2070 = vtanh.pop %v2031
  %v2071 = vadd.f32 %v2070, 1.0
  %v2072 = vmul.f32 %v2071, 0.5
  %v2074 = vrot.slane %v1938, 7
  %v2076 = vsub.f32 %v1938, %v2074
  %v2077 = vlaneseq
  %v2078 = vshrl.u32 %v2077, 7
  %v2079 = vsub.s32 1, %v2078
  %v2080 = vrot.slane %v2076, %v2079
  %v2081 = vmul.f32 %v2072, %v2080
  %v2082 = vlaneseq
  %v2083 = vshrl.u32 %v2082, 7
  %v2084 = vsub.s32 0, %v2083
  %v2085 = vrot.slane %v1938, %v2084
  %v2086 = vadd.f32 %v2085, %v2081
  %v2087 = vld [vmem:[%s4 + $0x48] sm:$0xff]
  %v2088 = vld [vmem:[%s4 + $0x50] sm:$0xff]
  %v2089 = vld [vmem:[%s4 + $0x58] sm:$0xff]
  %v2090 = vld [vmem:[%s4 + $0x60] sm:$0xff]
  %v2091 = vld [vmem:[%s4 + $0x68] sm:$0x7]
  %v2092 = vld [vmem:[%s4 + $0x70] sm:$0x1]
  %v2093 = vld [vmem:[%s4 + $0x78] sm:$0xff]
  %v2094 = vld [vmem:[%s4 + $0x80] sm:$0xff]
  %v2095 = vld [vmem:[%s4 + $0x88] sm:$0xff]
  %v2096 = vld [vmem:[%s4 + $0x90] sm:$0xff]
  %v2097 = vld [vmem:[%s4 + $0x98] sm:$0xff]
  %v2098 = vld [vmem:[%s4 + $0xa0] sm:$0xff]
  %v2099 = vld [vmem:[%s4 + $0xa8] sm:$0xff]
  %v2100 = vld [vmem:[%s4 + $0xb0] sm:$0xff]
  %v2101 = vld [vmem:[%s4 + $0xb8] sm:$0x1]
  %v2102 = vld [vmem:[%s3 + $0x138] sm:$0xff]
  %v2103 = vld [vmem:[%s3 + $0x140] sm:$0xff]
  %v2104 = vld [vmem:[%s3 + $0x148] sm:$0xff]
  %v2105 = vld [vmem:[%s3 + $0x150] sm:$0xff]
  %v2106 = vld [vmem:[%s3 + $0x158] sm:$0xff]
  %v2107 = vld [vmem:[%s3 + $0x160] sm:$0xff]
  %v2108 = vld [vmem:[%s3 + $0x168] sm:$0xff]
  %v2109 = vld [vmem:[%s3 + $0x170] sm:$0xff]
  %v2110 = vld [vmem:[%s3 + $0x178] sm:$0x1]
  %v2111 = vlaneseq
  %v2112 = vshrl.u32 %v2111, 7
  %v2113 = vsub.s32 0, %v2112
  %v2114 = vrot.slane %v2092, %v2113
  %2115 = vmatprep.subr.mxu0 0.0
  %2116 = vmatpush1.msra.mxu0 %v2087
  %2117 = vmatprep.subr.mxu0 0.0
  %2118 = vmatpush1.msra.mxu0 %v2088
  %2119 = vmatprep.subr.mxu0 0.0
  %2120 = vmatpush1.msra.mxu0 %v2089
  %2121 = vmatprep.subr.mxu0 0.0
  %2122 = vmatpush1.msra.mxu0 %v2090
  %2123 = vmatprep.subr.mxu0 0.0
  %2124 = vmatpush1.msra.mxu0 0.0
  %2125 = vmatprep.subr.mxu0 0.0
  %2126 = vmatpush1.msra.mxu0 0.0
  %2127 = vmatprep.subr.mxu0 0.0
  %2128 = vmatpush1.msra.mxu0 0.0
  %2129 = vmatprep.subr.mxu0 0.0
  %2130 = vmatpush1.msra.mxu0 0.0
  %2131 = vmatprep.subr.mxu0 0.0
  %2132 = vmatpush1.msra.mxu0 0.0
  %2133 = vmatprep.subr.mxu0 0.0
  %2134 = vmatpush1.msra.mxu0 0.0
  %2135 = vmatprep.subr.mxu0 0.0
  %2136 = vmatpush1.msra.mxu0 0.0
  %2137 = vmatprep.subr.mxu0 0.0
  %2138 = vmatpush1.msra.mxu0 0.0
  %2139 = vmatprep.subr.mxu0 0.0
  %2140 = vmatpush1.msra.mxu0 0.0
  %2141 = vmatprep.subr.mxu0 0.0
  %2142 = vmatpush1.msra.mxu0 0.0
  %2143 = vmatprep.subr.mxu0 0.0
  %2144 = vmatpush1.msra.mxu0 0.0
  %2145 = vmatprep.subr.mxu0 0.0
  %2146 = vmatpush1.msra.mxu0 0.0
  %2147 = vmatprep.subr.mxu0 0.0
  %2148 = vmatpush1.msra.mxu0 0.0
  %2149 = vmatprep.subr.mxu0 0.0
  %2150 = vmatpush1.msra.mxu0 0.0
  %2151 = vmatprep.subr.mxu0 0.0
  %2152 = vmatpush1.msra.mxu0 0.0
  %2153 = vmatprep.subr.mxu0 0.0
  %2154 = vmatpush1.msra.mxu0 0.0
  %2155 = vmatprep.subr.mxu0 0.0
  %2156 = vmatpush1.msra.mxu0 0.0
  %2157 = vmatprep.subr.mxu0 0.0
  %2158 = vmatpush1.msra.mxu0 0.0
  %2159 = vmatprep.subr.mxu0 0.0
  %2160 = vmatpush1.msra.mxu0 0.0
  %2161 = vmatprep.subr.mxu0 0.0
  %2162 = vmatpush1.msra.mxu0 0.0
  %2163 = vmatprep.subr.mxu0 0.0
  %2164 = vmatpush1.msra.mxu0 0.0
  %2165 = vmatprep.subr.mxu0 0.0
  %2166 = vmatpush1.msra.mxu0 0.0
  %2167 = vmatprep.subr.mxu0 0.0
  %2168 = vmatpush1.msra.mxu0 0.0
  %2169 = vmatprep.subr.mxu0 0.0
  %2170 = vmatpush1.msra.mxu0 0.0
  %2171 = vmatprep.subr.mxu0 0.0
  %2172 = vmatpush1.msra.mxu0 0.0
  %2173 = vmatprep.subr.mxu0 0.0
  %2174 = vmatpush1.msra.mxu0 0.0
  %2175 = vmatprep.subr.mxu0 0.0
  %2176 = vmatpush1.msra.mxu0 0.0
  %2177 = vmatprep.subr.mxu0 0.0
  %2178 = vmatpush1.msra.mxu0 0.0
  %2179 = vmatprep.mubr.f32.mxu0 0.0
  %2180 = vmatmul.mubr.f32.gmra.mrb[0].mxu0 %v1944
  %v2181 = vpop.f32.mrb[0].mxu0
  %v2182 = vadd.f32 %v2114, %v2181
  %v2183 = vpop.f32.mrb[0].mxu0
  %2184 = vdwg.mxu0
  %v2186 = vsel %vm2040, %v2020, 0
  %v2189 = vsel %vm2040, %v2086, 0
  %vm2191 = vcmask 1042432
  %v2193 = vsel %vm2191, %v2091, 0
  %2195 = vmatprep.subr.mxu0 0.0
  %2196 = vmatpush1.msra.mxu0 %v2193
  %2197 = vmatprep.subr.mxu0 0.0
  %2198 = vmatpush1.msra.mxu0 0.0
  %2199 = vmatprep.subr.mxu0 0.0
  %2200 = vmatpush1.msra.mxu0 0.0
  %2201 = vmatprep.subr.mxu0 0.0
  %2202 = vmatpush1.msra.mxu0 0.0
  %2203 = vmatprep.subr.mxu0 0.0
  %2204 = vmatpush1.msra.mxu0 0.0
  %2205 = vmatprep.subr.mxu0 0.0
  %2206 = vmatpush1.msra.mxu0 0.0
  %2207 = vmatprep.subr.mxu0 0.0
  %2208 = vmatpush1.msra.mxu0 0.0
  %2209 = vmatprep.subr.mxu0 0.0
  %2210 = vmatpush1.msra.mxu0 0.0
  %2211 = vmatprep.subr.mxu0 0.0
  %2212 = vmatpush1.msra.mxu0 0.0
  %2213 = vmatprep.subr.mxu0 0.0
  %2214 = vmatpush1.msra.mxu0 0.0
  %2215 = vmatprep.subr.mxu0 0.0
  %2216 = vmatpush1.msra.mxu0 0.0
  %2217 = vmatprep.subr.mxu0 0.0
  %2218 = vmatpush1.msra.mxu0 0.0
  %2219 = vmatprep.subr.mxu0 0.0
  %2220 = vmatpush1.msra.mxu0 0.0
  %2221 = vmatprep.subr.mxu0 0.0
  %2222 = vmatpush1.msra.mxu0 0.0
  %2223 = vmatprep.subr.mxu0 0.0
  %2224 = vmatpush1.msra.mxu0 0.0
  %2225 = vmatprep.subr.mxu0 0.0
  %2226 = vmatpush1.msra.mxu0 0.0
  %2227 = vmatprep.subr.mxu0 0.0
  %2228 = vmatpush1.msra.mxu0 0.0
  %2229 = vmatprep.subr.mxu0 0.0
  %2230 = vmatpush1.msra.mxu0 0.0
  %2231 = vmatprep.subr.mxu0 0.0
  %2232 = vmatpush1.msra.mxu0 0.0
  %2233 = vmatprep.subr.mxu0 0.0
  %2234 = vmatpush1.msra.mxu0 0.0
  %2235 = vmatprep.subr.mxu0 0.0
  %2236 = vmatpush1.msra.mxu0 0.0
  %2237 = vmatprep.subr.mxu0 0.0
  %2238 = vmatpush1.msra.mxu0 0.0
  %2239 = vmatprep.subr.mxu0 0.0
  %2240 = vmatpush1.msra.mxu0 0.0
  %2241 = vmatprep.subr.mxu0 0.0
  %2242 = vmatpush1.msra.mxu0 0.0
  %2243 = vmatprep.subr.mxu0 0.0
  %2244 = vmatpush1.msra.mxu0 0.0
  %2245 = vmatprep.subr.mxu0 0.0
  %2246 = vmatpush1.msra.mxu0 0.0
  %2247 = vmatprep.subr.mxu0 0.0
  %2248 = vmatpush1.msra.mxu0 0.0
  %2249 = vmatprep.subr.mxu0 0.0
  %2250 = vmatpush1.msra.mxu0 0.0
  %2251 = vmatprep.subr.mxu0 0.0
  %2252 = vmatpush1.msra.mxu0 0.0
  %2253 = vmatprep.subr.mxu0 0.0
  %2254 = vmatpush1.msra.mxu0 0.0
  %2255 = vmatprep.subr.mxu0 0.0
  %2256 = vmatpush1.msra.mxu0 0.0
  %2257 = vmatprep.subr.mxu0 0.0
  %2258 = vmatpush1.msra.mxu0 0.0
  %2259 = vmatprep.mubr.f32.mxu0 0.0
  %2260 = vmatmul.mubr.f32.gmra.mrb[0].mxu0 %v2186
  %v2261 = vpop.f32.mrb[0].mxu0
  %v2262 = vadd.f32 0.0, %v2261
  %v2263 = vpop.f32.mrb[0].mxu0
  %2264 = vmatprep.mubr.f32.mxu0 0.0
  %2265 = vmatmul.mubr.f32.gmra.mrb[0].mxu0 %v2189
  %v2266 = vpop.f32.mrb[0].mxu0
  %v2267 = vadd.f32 0.0, %v2266
  %v2268 = vpop.f32.mrb[0].mxu0
  %2269 = vdwg.mxu0
  %v2270 = vadd.f32 %v2182, %v2262
  %v2271 = vadd.f32 %v2182, %v2267
  %v2272 = vmax.f32 %v2270, 0.0
  %v2273 = vmax.f32 %v2271, 0.0
  %v2274 = vlaneseq
  %v2275 = vshrl.u32 %v2274, 7
  %v2276 = vsub.s32 0, %v2275
  %v2277 = vrot.slane %v2101, %v2276
  %v2279 = vsel %vm931, %v2272, 0
  %v2282 = vsel %vm931, %v2273, 0
  %2284 = vmatprep.subr.mxu0 0.0
  %2285 = vmatpush1.msra.mxu0 %v2093
  %2286 = vmatprep.subr.mxu0 0.0
  %2287 = vmatpush1.msra.mxu0 %v2094
  %2288 = vmatprep.subr.mxu0 0.0
  %2289 = vmatpush1.msra.mxu0 %v2095
  %2290 = vmatprep.subr.mxu0 0.0
  %2291 = vmatpush1.msra.mxu0 %v2096
  %2292 = vmatprep.subr.mxu0 0.0
  %2293 = vmatpush1.msra.mxu0 %v2097
  %2294 = vmatprep.subr.mxu0 0.0
  %2295 = vmatpush1.msra.mxu0 %v2098
  %2296 = vmatprep.subr.mxu0 0.0
  %2297 = vmatpush1.msra.mxu0 %v2099
  %2298 = vmatprep.subr.mxu0 0.0
  %2299 = vmatpush1.msra.mxu0 %v2100
  %2300 = vmatprep.subr.mxu0 0.0
  %2301 = vmatpush1.msra.mxu0 0.0
  %2302 = vmatprep.subr.mxu0 0.0
  %2303 = vmatpush1.msra.mxu0 0.0
  %2304 = vmatprep.subr.mxu0 0.0
  %2305 = vmatpush1.msra.mxu0 0.0
  %2306 = vmatprep.subr.mxu0 0.0
  %2307 = vmatpush1.msra.mxu0 0.0
  %2308 = vmatprep.subr.mxu0 0.0
  %2309 = vmatpush1.msra.mxu0 0.0
  %2310 = vmatprep.subr.mxu0 0.0
  %2311 = vmatpush1.msra.mxu0 0.0
  %2312 = vmatprep.subr.mxu0 0.0
  %2313 = vmatpush1.msra.mxu0 0.0
  %2314 = vmatprep.subr.mxu0 0.0
  %2315 = vmatpush1.msra.mxu0 0.0
  %2316 = vmatprep.subr.mxu0 0.0
  %2317 = vmatpush1.msra.mxu0 0.0
  %2318 = vmatprep.subr.mxu0 0.0
  %2319 = vmatpush1.msra.mxu0 0.0
  %2320 = vmatprep.subr.mxu0 0.0
  %2321 = vmatpush1.msra.mxu0 0.0
  %2322 = vmatprep.subr.mxu0 0.0
  %2323 = vmatpush1.msra.mxu0 0.0
  %2324 = vmatprep.subr.mxu0 0.0
  %2325 = vmatpush1.msra.mxu0 0.0
  %2326 = vmatprep.subr.mxu0 0.0
  %2327 = vmatpush1.msra.mxu0 0.0
  %2328 = vmatprep.subr.mxu0 0.0
  %2329 = vmatpush1.msra.mxu0 0.0
  %2330 = vmatprep.subr.mxu0 0.0
  %2331 = vmatpush1.msra.mxu0 0.0
  %2332 = vmatprep.subr.mxu0 0.0
  %2333 = vmatpush1.msra.mxu0 0.0
  %2334 = vmatprep.subr.mxu0 0.0
  %2335 = vmatpush1.msra.mxu0 0.0
  %2336 = vmatprep.subr.mxu0 0.0
  %2337 = vmatpush1.msra.mxu0 0.0
  %2338 = vmatprep.subr.mxu0 0.0
  %2339 = vmatpush1.msra.mxu0 0.0
  %2340 = vmatprep.subr.mxu0 0.0
  %2341 = vmatpush1.msra.mxu0 0.0
  %2342 = vmatprep.subr.mxu0 0.0
  %2343 = vmatpush1.msra.mxu0 0.0
  %2344 = vmatprep.subr.mxu0 0.0
  %2345 = vmatpush1.msra.mxu0 0.0
  %2346 = vmatprep.subr.mxu0 0.0
  %2347 = vmatpush1.msra.mxu0 0.0
  %2348 = vmatprep.mubr.f32.mxu0 0.0
  %2349 = vmatmul.mubr.f32.gmra.mrb[0].mxu0 %v2279
  %v2350 = vpop.f32.mrb[0].mxu0
  %v2351 = vadd.f32 %v2277, %v2350
  %v2352 = vpop.f32.mrb[0].mxu0
  %2353 = vmatprep.mubr.f32.mxu0 0.0
  %2354 = vmatmul.mubr.f32.gmra.mrb[0].mxu0 %v2282
  %v2355 = vpop.f32.mrb[0].mxu0
  %v2356 = vadd.f32 %v2277, %v2355
  %v2357 = vpop.f32.mrb[0].mxu0
  %2358 = vdwg.mxu0
  %v2359 = vmax.f32 %v2351, 0.0
  %v2360 = vmax.f32 %v2356, 0.0
  %v2361 = vlaneseq
  %v2362 = vshrl.u32 %v2361, 7
  %v2363 = vsub.s32 0, %v2362
  %v2364 = vrot.slane %v2110, %v2363
  %v2366 = vsel %vm931, %v2359, 0
  %v2369 = vsel %vm931, %v2360, 0
  %2371 = vmatprep.subr.mxu0 0.0
  %2372 = vmatpush1.msra.mxu0 %v2102
  %2373 = vmatprep.subr.mxu0 0.0
  %2374 = vmatpush1.msra.mxu0 %v2103
  %2375 = vmatprep.subr.mxu0 0.0
  %2376 = vmatpush1.msra.mxu0 %v2104
  %2377 = vmatprep.subr.mxu0 0.0
  %2378 = vmatpush1.msra.mxu0 %v2105
  %2379 = vmatprep.subr.mxu0 0.0
  %2380 = vmatpush1.msra.mxu0 %v2106
  %2381 = vmatprep.subr.mxu0 0.0
  %2382 = vmatpush1.msra.mxu0 %v2107
  %2383 = vmatprep.subr.mxu0 0.0
  %2384 = vmatpush1.msra.mxu0 %v2108
  %2385 = vmatprep.subr.mxu0 0.0
  %2386 = vmatpush1.msra.mxu0 %v2109
  %2387 = vmatprep.subr.mxu0 0.0
  %2388 = vmatpush1.msra.mxu0 0.0
  %2389 = vmatprep.subr.mxu0 0.0
  %2390 = vmatpush1.msra.mxu0 0.0
  %2391 = vmatprep.subr.mxu0 0.0
  %2392 = vmatpush1.msra.mxu0 0.0
  %2393 = vmatprep.subr.mxu0 0.0
  %2394 = vmatpush1.msra.mxu0 0.0
  %2395 = vmatprep.subr.mxu0 0.0
  %2396 = vmatpush1.msra.mxu0 0.0
  %2397 = vmatprep.subr.mxu0 0.0
  %2398 = vmatpush1.msra.mxu0 0.0
  %2399 = vmatprep.subr.mxu0 0.0
  %2400 = vmatpush1.msra.mxu0 0.0
  %2401 = vmatprep.subr.mxu0 0.0
  %2402 = vmatpush1.msra.mxu0 0.0
  %2403 = vmatprep.subr.mxu0 0.0
  %2404 = vmatpush1.msra.mxu0 0.0
  %2405 = vmatprep.subr.mxu0 0.0
  %2406 = vmatpush1.msra.mxu0 0.0
  %2407 = vmatprep.subr.mxu0 0.0
  %2408 = vmatpush1.msra.mxu0 0.0
  %2409 = vmatprep.subr.mxu0 0.0
  %2410 = vmatpush1.msra.mxu0 0.0
  %2411 = vmatprep.subr.mxu0 0.0
  %2412 = vmatpush1.msra.mxu0 0.0
  %2413 = vmatprep.subr.mxu0 0.0
  %2414 = vmatpush1.msra.mxu0 0.0
  %2415 = vmatprep.subr.mxu0 0.0
  %2416 = vmatpush1.msra.mxu0 0.0
  %2417 = vmatprep.subr.mxu0 0.0
  %2418 = vmatpush1.msra.mxu0 0.0
  %2419 = vmatprep.subr.mxu0 0.0
  %2420 = vmatpush1.msra.mxu0 0.0
  %2421 = vmatprep.subr.mxu0 0.0
  %2422 = vmatpush1.msra.mxu0 0.0
  %2423 = vmatprep.subr.mxu0 0.0
  %2424 = vmatpush1.msra.mxu0 0.0
  %2425 = vmatprep.subr.mxu0 0.0
  %2426 = vmatpush1.msra.mxu0 0.0
  %2427 = vmatprep.subr.mxu0 0.0
  %2428 = vmatpush1.msra.mxu0 0.0
  %2429 = vmatprep.subr.mxu0 0.0
  %2430 = vmatpush1.msra.mxu0 0.0
  %2431 = vmatprep.subr.mxu0 0.0
  %2432 = vmatpush1.msra.mxu0 0.0
  %2433 = vmatprep.subr.mxu0 0.0
  %2434 = vmatpush1.msra.mxu0 0.0
  %2435 = vmatprep.mubr.f32.mxu0 0.0
  %2436 = vmatmul.mubr.f32.gmra.mrb[0].mxu0 %v2366
  %v2437 = vpop.f32.mrb[0].mxu0
  %v2438 = vadd.f32 %v2364, %v2437
  %v2439 = vpop.f32.mrb[0].mxu0
  %2440 = vmatprep.mubr.f32.mxu0 0.0
  %2441 = vmatmul.mubr.f32.gmra.mrb[0].mxu0 %v2369
  %v2442 = vpop.f32.mrb[0].mxu0
  %v2443 = vadd.f32 %v2364, %v2442
  %v2444 = vpop.f32.mrb[0].mxu0
  %2445 = vdwg.mxu0
  %2447 = vrot.lane.b32.xlu0 %v2438, 4
  %v2448 = vpop.permute.xlu0 %2447
  %2451 = vrot.lane.b32.xlu0 %v2443, 6
  %v2452 = vpop.permute.xlu0 %2451
  %v2454 = vsel %vm2040, %v2086, %v2069
  %vm2455 = vcmask 31744
  %v2456 = vsel %vm2455, %v2454, %v2448
  %vm2457 = vcmask 48128
  %v2458 = vsel %vm2457, %v2456, %v2452
  %v2459 = vld [vmem:[%s3 + $0x180] sm:$0x3]
  %v2461 = vsel %vm27, %v2459, 0
  %2463 = vmatprep.subr.mxu0 0.0
  %2464 = vmatpush1.msra.mxu0 %v2458
  %2465 = vmatprep.subr.mxu0 0.0
  %2466 = vmatpush1.msra.mxu0 0.0
  %2467 = vmatprep.subr.mxu0 0.0
  %2468 = vmatpush1.msra.mxu0 0.0
  %2469 = vmatprep.subr.mxu0 0.0
  %2470 = vmatpush1.msra.mxu0 0.0
  %2471 = vmatprep.subr.mxu0 0.0
  %2472 = vmatpush1.msra.mxu0 0.0
  %2473 = vmatprep.subr.mxu0 0.0
  %2474 = vmatpush1.msra.mxu0 0.0
  %2475 = vmatprep.subr.mxu0 0.0
  %2476 = vmatpush1.msra.mxu0 0.0
  %2477 = vmatprep.subr.mxu0 0.0
  %2478 = vmatpush1.msra.mxu0 0.0
  %2479 = vmatprep.subr.mxu0 0.0
  %2480 = vmatpush1.msra.mxu0 0.0
  %2481 = vmatprep.subr.mxu0 0.0
  %2482 = vmatpush1.msra.mxu0 0.0
  %2483 = vmatprep.subr.mxu0 0.0
  %2484 = vmatpush1.msra.mxu0 0.0
  %2485 = vmatprep.subr.mxu0 0.0
  %2486 = vmatpush1.msra.mxu0 0.0
  %2487 = vmatprep.subr.mxu0 0.0
  %2488 = vmatpush1.msra.mxu0 0.0
  %2489 = vmatprep.subr.mxu0 0.0
  %2490 = vmatpush1.msra.mxu0 0.0
  %2491 = vmatprep.subr.mxu0 0.0
  %2492 = vmatpush1.msra.mxu0 0.0
  %2493 = vmatprep.subr.mxu0 0.0
  %2494 = vmatpush1.msra.mxu0 0.0
  %2495 = vmatprep.subr.mxu0 0.0
  %2496 = vmatpush1.msra.mxu0 0.0
  %2497 = vmatprep.subr.mxu0 0.0
  %2498 = vmatpush1.msra.mxu0 0.0
  %2499 = vmatprep.subr.mxu0 0.0
  %2500 = vmatpush1.msra.mxu0 0.0
  %2501 = vmatprep.subr.mxu0 0.0
  %2502 = vmatpush1.msra.mxu0 0.0
  %2503 = vmatprep.subr.mxu0 0.0
  %2504 = vmatpush1.msra.mxu0 0.0
  %2505 = vmatprep.subr.mxu0 0.0
  %2506 = vmatpush1.msra.mxu0 0.0
  %2507 = vmatprep.subr.mxu0 0.0
  %2508 = vmatpush1.msra.mxu0 0.0
  %2509 = vmatprep.subr.mxu0 0.0
  %2510 = vmatpush1.msra.mxu0 0.0
  %2511 = vmatprep.subr.mxu0 0.0
  %2512 = vmatpush1.msra.mxu0 0.0
  %2513 = vmatprep.subr.mxu0 0.0
  %2514 = vmatpush1.msra.mxu0 0.0
  %2515 = vmatprep.subr.mxu0 0.0
  %2516 = vmatpush1.msra.mxu0 0.0
  %2517 = vmatprep.subr.mxu0 0.0
  %2518 = vmatpush1.msra.mxu0 0.0
  %2519 = vmatprep.subr.mxu0 0.0
  %2520 = vmatpush1.msra.mxu0 0.0
  %2521 = vmatprep.subr.mxu0 0.0
  %2522 = vmatpush1.msra.mxu0 0.0
  %2523 = vmatprep.subr.mxu0 0.0
  %2524 = vmatpush1.msra.mxu0 0.0
  %2525 = vmatprep.subr.mxu0 0.0
  %2526 = vmatpush1.msra.mxu0 0.0
  %2527 = vmatprep.mubr.f32.mxu0 0.0
  %2528 = vmatmul.mubr.f32.gmra.mrb[0].mxu0 %v2461
  %v2529 = vpop.f32.mrb[0].mxu0
  %v2530 = vadd.f32 0.0, %v2529
  %v2531 = vpop.f32.mrb[0].mxu0
  %2532 = vdwg.mxu0
  %vm2533 = vcmask 58368
  %2534 = vst.msk [vmem:[%s6] sm:$0x3] %vm2533, %v2530
  // Predicated region
  $region26: #{sac_forward.1} parent=0 // pred_check
    _
  $region27: #{sac_forward.1} parent=0 // pred_check_branch
    %2536 = sbr.rel (0) target = $region29
  $region28: #{sac_forward.1} parent=0 // pred_region
    _
  $region29: #{sac_forward.1} parent=0 // pred_fallthru
    _
  // Predicated region
  $region30: #{sac_forward.1} parent=0 // pred_check
    _
  $region31: #{sac_forward.1} parent=0 // pred_check_branch
    %2538 = sbr.rel (0) target = $region33
  $region32: #{sac_forward.1} parent=0 // pred_region
    _
  $region33: #{sac_forward.1} parent=0 // pred_fallthru
    _

</llo_original>
